<compile_context>
chip_gen: v7x
topology: tpu7x:2x2x1
jax: 0.10.0
libtpu: 0.0.40
codegen_flags: <defaults>
</compile_context>

<pallas_src>
import jax
import jax.numpy as jnp
from jax.experimental import pallas as pl
from jax.experimental.pallas import tpu as pltpu

_LANE = 128


def _round_up(x, m):
    return ((x + m - 1) // m) * m


def _pick_t_tile(T, b_tile, H, bytes_per_elem=2, tile_budget_bytes=8 * 2**20):
    """Largest multiple-of-8 divisor of T whose h tile fits the per-buffer budget."""
    max_t = max(8, tile_budget_bytes // max(1, b_tile * H * bytes_per_elem))
    best = None
    t = 8
    while t <= min(T, max_t):
        if T % t == 0:
            best = t
        t += 8
    return best if best is not None else T   # fall back to a single full-T block


def _make_kernel(T_total):
    inv_t = 1.0 / float(T_total)

    def kernel(h_ref, u_ref, ut_ref, wc_ref, bc_ref,
               w1m_ref, w1s_ref, b1_ref, w2_ref, b2_ref,
               w3_ref, b3_ref, w4_ref, b4_ref, w5_ref, b5_ref,
               spoof_ref, spk_ref, mean_ref,
               sum_acc, sq_acc):
        t = pl.program_id(1)

        # --- streaming accumulation over the time grid axis -------------------
        @pl.when(t == 0)
        def _init():
            sum_acc[...] = jnp.zeros_like(sum_acc)
            sq_acc[...] = jnp.zeros_like(sq_acc)

        hf = h_ref[...].astype(jnp.float32)              # (B_TILE, T_TILE, H)
        # Per-tile partial sums accumulated in f32 scratch.  The sublane
        # reduction decomposes into VPU adds plus one cross-sublane reduce per
        # output vreg, so it stays far from binding while the h DMA streams.
        sum_acc[...] += jnp.sum(hf, axis=1)
        sq_acc[...] += jnp.sum(hf * hf, axis=1)

        # --- finalize: mean/std -> null projection -> classifiers -------------
        @pl.when(t == pl.num_programs(1) - 1)
        def _finalize():
            mean = sum_acc[...] * inv_t
            # single-pass biased variance; clamp against cancellation.
            var = jnp.maximum(sq_acc[...] * inv_t - mean * mean, 0.0)
            std = jnp.sqrt(var)

            # speaker null-space projection: e - (e @ U) @ U^T.
            # U^T is precomputed host-side -> no in-kernel transpose.
            coeff = jnp.dot(mean.astype(jnp.bfloat16), u_ref[...],
                            preferred_element_type=jnp.float32)
            proj = jnp.dot(coeff.astype(jnp.bfloat16), ut_ref[...],
                           preferred_element_type=jnp.float32)
            mean_n = mean - proj
            mean_ref[...] = mean_n

            mn = mean_n.astype(jnp.bfloat16)

            # spoof classifier (lane-padded to 128 output columns).
            spoof_ref[...] = (jnp.dot(mn, wc_ref[...],
                                      preferred_element_type=jnp.float32)
                              + bc_ref[...])

            # SpkHead: vec = cat([mean_n, std]); w1 is pre-split so the concat
            # becomes two matmuls (no in-kernel lane concat / ref slicing).
            x = (jnp.dot(mn, w1m_ref[...], preferred_element_type=jnp.float32)
                 + jnp.dot(std.astype(jnp.bfloat16), w1s_ref[...],
                           preferred_element_type=jnp.float32)
                 + b1_ref[...])
            x = jnp.maximum(x, 0.0)
            for w_ref, b_ref in ((w2_ref, b2_ref), (w3_ref, b3_ref),
                                 (w4_ref, b4_ref)):
                x = jnp.maximum(
                    jnp.dot(x.astype(jnp.bfloat16), w_ref[...],
                            preferred_element_type=jnp.float32) + b_ref[...],
                    0.0)
            spk_ref[...] = (jnp.dot(x.astype(jnp.bfloat16), w5_ref[...],
                                    preferred_element_type=jnp.float32)
                            + b5_ref[...])

    return kernel


def wav2v_priv_forward(h, params, *, t_tile=None, h_buffers=2):
    """h: (B, T, H) encoder hidden states. Returns (spoof_logits, spk_logits, mean)."""
    U, wc, bc, w1, b1, w2, b2, w3, b3, w4, b4, w5, b5 = params
    B, T, H = h.shape
    n_classes = wc.shape[1]
    n_spk = w5.shape[1]

    # --- padding / tiling decisions -------------------------------------------
    b_tile = min(_LANE, _round_up(B, 8))      # sublane-pad B; fill MXU M rows
    b_pad = _round_up(B, b_tile)
    c_pad = _round_up(n_classes, _LANE)       # lane-dense spoof output
    s_pad = _round_up(n_spk, _LANE)           # lane-dense spk output
    if t_tile is None:
        t_tile = _pick_t_tile(T, b_tile, H)
    assert T % t_tile == 0, (T, t_tile)

    bf16, f32 = jnp.bfloat16, jnp.float32

    # h lives in HBM as bf16 (halves DMA on the memory-bound read of h);
    # all accumulation is done in f32 inside the kernel.
    h_p = h
    if b_pad != B:
        h_p = jnp.pad(h_p, ((0, b_pad - B), (0, 0), (0, 0)))
    h_p = h_p.astype(bf16)

    def as_bias(b, pad_to=None):
        b2d = b.reshape(1, -1).astype(f32)
        if pad_to is not None and b2d.shape[1] != pad_to:
            b2d = jnp.pad(b2d, ((0, 0), (0, pad_to - b2d.shape[1])))
        return b2d

    weights = (
        U.astype(bf16),                                        # U
        U.T.astype(bf16),                                      # precomputed U^T
        jnp.pad(wc, ((0, 0), (0, c_pad - n_classes))).astype(bf16),
        as_bias(bc, c_pad),
        w1[:H].astype(bf16),                                   # w1 (mean half)
        w1[H:].astype(bf16),                                   # w1 (std half)
        as_bias(b1),
        w2.astype(bf16), as_bias(b2),
        w3.astype(bf16), as_bias(b3),
        w4.astype(bf16), as_bias(b4),
        jnp.pad(w5, ((0, 0), (0, s_pad - n_spk))).astype(bf16),
        as_bias(b5, s_pad),
    )

    # --- specs -----------------------------------------------------------------
    def resident(arr):
        nd = arr.ndim
        return pl.BlockSpec(arr.shape, lambda b, t, _nd=nd: (0,) * _nd)

    h_kwargs = {}
    if h_buffers is not None and h_buffers != 2:
        # sweepable pipeline depth on the streamed h input
        h_kwargs["pipeline_mode"] = pl.Buffered(h_buffers)
    h_spec = pl.BlockSpec((b_tile, t_tile, H), lambda b, t: (b, t, 0), **h_kwargs)

    out_shape = (
        jax.ShapeDtypeStruct((b_pad, c_pad), f32),   # spoof logits (padded)
        jax.ShapeDtypeStruct((b_pad, s_pad), f32),   # spk logits   (padded)
        jax.ShapeDtypeStruct((b_pad, H), f32),       # null-projected mean
    )
    out_specs = (
        pl.BlockSpec((b_tile, c_pad), lambda b, t: (b, 0)),
        pl.BlockSpec((b_tile, s_pad), lambda b, t: (b, 0)),
        pl.BlockSpec((b_tile, H), lambda b, t: (b, 0)),
    )
    scratch_shapes = [pltpu.VMEM((b_tile, H), f32),   # sum(h)   accumulator
                      pltpu.VMEM((b_tile, H), f32)]   # sum(h*h) accumulator

    # --- explicit VMEM budget (v7x: 64 MiB/TC; v5e default scope: 16 MiB) ------
    def _nbytes(a):
        return int(a.size) * a.dtype.itemsize

    weight_bytes = sum(_nbytes(a) for a in weights)
    h_block_bytes = b_tile * t_tile * H * 2 * max(2, h_buffers or 2)
    out_block_bytes = b_tile * (c_pad + s_pad + H) * 4 * 2
    scratch_bytes = 2 * b_tile * H * 4
    est = 2 * weight_bytes + h_block_bytes + out_block_bytes + scratch_bytes
    vmem_limit = int(max(16 * 2**20,
                         min(2 * est, 48 * 2**20),
                         est * 1.25 + (2 << 20)))

    grid = (b_pad // b_tile, T // t_tile)
    spoof_p, spk_p, mean_p = pl.pallas_call(
        _make_kernel(T),
        out_shape=out_shape,
        grid=grid,
        in_specs=[h_spec] + [resident(a) for a in weights],
        out_specs=out_specs,
        scratch_shapes=scratch_shapes,
        compiler_params=pltpu.CompilerParams(
            # batch tiles shard across TensorCores (v7x megacore); the time
            # axis is the streamed reduction and stays "arbitrary" (last).
            dimension_semantics=("parallel", "arbitrary"),
            vmem_limit_bytes=vmem_limit),
    )(h_p, *weights)

    return spoof_p[:B, :n_classes], spk_p[:B, :n_spk], mean_p[:B]


def _reference(h, params):
    U, wc, bc, w1, b1, w2, b2, w3, b3, w4, b4, w5, b5 = params
    mean = h.mean(axis=1)
    std = jnp.sqrt(((h - mean[:, None, :]) ** 2).mean(axis=1))
    mean = mean - mean @ U @ U.T
    spoof = mean @ wc + bc
    vec = jnp.concatenate([mean, std], axis=-1)
    x = jax.nn.relu(vec @ w1 + b1)
    x = jax.nn.relu(x @ w2 + b2)
    x = jax.nn.relu(x @ w3 + b3)
    x = jax.nn.relu(x @ w4 + b4)
    spk = x @ w5 + b5
    return spoof, spk, mean


if __name__ == "__main__":
    # Small shapes consistent with the forward: batch=2, seq=32, hidden=32.
    B, T, H = 2, 32, 32
    null_rank, n_spk, n_classes = 4, 5, 2

    key = jax.random.PRNGKey(0)
    ks = jax.random.split(key, 9)
    h = jax.random.normal(ks[0], (B, T, H), dtype=jnp.float32)

    def lin(k, fan_in, fan_out):
        kw, kb = jax.random.split(k)
        w = jax.random.normal(kw, (fan_in, fan_out), jnp.float32) / jnp.sqrt(fan_in)
        b = jax.random.normal(kb, (1, fan_out), jnp.float32) * 0.01
        return w, b

    # Deterministic parameters. Note: the module's __init__ registers U as zeros
    # with U_ok=False (=> _null is identity); here U is given deterministic
    # nonzero values so the projection kernel path (U_ok=True) is exercised.
    U = jax.random.normal(ks[1], (H, null_rank), jnp.float32) * 0.1
    wc, bc = lin(ks[2], H, n_classes)            # base.classifier: Linear(H, n_classes)
    w1, b1 = lin(ks[3], 2 * H, 768)              # SpkHead Linear(2H, 768)
    w2, b2 = lin(ks[4], 768, 512)
    w3, b3 = lin(ks[5], 512, 256)
    w4, b4 = lin(ks[6], 256, 128)
    w5, b5 = lin(ks[7], 128, n_spk)
    params = (U, wc, bc, w1, b1, w2, b2, w3, b3, w4, b4, w5, b5)

    # t_tile=8 forces 4 streamed time steps so the accumulation path is exercised.
    spoof, spk, mean = jax.block_until_ready(
        wav2v_priv_forward(h, params, t_tile=8))

    # Silent correctness check against a pure-JAX f32 reference.  bf16 MXU
    # operands (per perf review) widen the tolerance slightly vs pure-f32.
    r_spoof, r_spk, r_mean = _reference(h, params)
    assert jnp.allclose(spoof, r_spoof, rtol=3e-2, atol=3e-2)
    assert jnp.allclose(spk, r_spk, rtol=3e-2, atol=3e-2)
    assert jnp.allclose(mean, r_mean, rtol=3e-2, atol=3e-2)

    print("KERNEL_OK")
</pallas_src>

<mosaic_0001>
module attributes {stable_mosaic.version = 11 : i64} {
  func.func @kernel(%arg0: i32, %arg1: i32, %arg2: memref<8x8x32xbf16, #tpu.memory_space<vmem>>, %arg3: memref<32x4xbf16, #tpu.memory_space<vmem>>, %arg4: memref<4x32xbf16, #tpu.memory_space<vmem>>, %arg5: memref<32x128xbf16, #tpu.memory_space<vmem>>, %arg6: memref<1x128xf32, #tpu.memory_space<vmem>>, %arg7: memref<32x768xbf16, #tpu.memory_space<vmem>>, %arg8: memref<32x768xbf16, #tpu.memory_space<vmem>>, %arg9: memref<1x768xf32, #tpu.memory_space<vmem>>, %arg10: memref<768x512xbf16, #tpu.memory_space<vmem>>, %arg11: memref<1x512xf32, #tpu.memory_space<vmem>>, %arg12: memref<512x256xbf16, #tpu.memory_space<vmem>>, %arg13: memref<1x256xf32, #tpu.memory_space<vmem>>, %arg14: memref<256x128xbf16, #tpu.memory_space<vmem>>, %arg15: memref<1x128xf32, #tpu.memory_space<vmem>>, %arg16: memref<128x128xbf16, #tpu.memory_space<vmem>>, %arg17: memref<1x128xf32, #tpu.memory_space<vmem>>, %arg18: memref<8x128xf32, #tpu.memory_space<vmem>>, %arg19: memref<8x128xf32, #tpu.memory_space<vmem>>, %arg20: memref<8x32xf32, #tpu.memory_space<vmem>>, %arg21: memref<8x32xf32, #tpu.memory_space<vmem>>, %arg22: memref<8x32xf32, #tpu.memory_space<vmem>>) attributes {dimension_semantics = [#tpu.dimension_semantics<parallel>, #tpu.dimension_semantics<arbitrary>], iteration_bounds = array<i64: 1, 4>, scalar_prefetch = 0 : i64, scratch_operands = 2 : i64, tpu.core_type = #tpu.core_type<tc>, window_params = [{transform_indices = @transform_0, window_bounds = array<i64: 8, 8, 32>}, {pipeline_mode = #tpu.pipeline_mode<synchronous>, transform_indices = @transform_1, window_bounds = array<i64: 32, 4>}, {pipeline_mode = #tpu.pipeline_mode<synchronous>, transform_indices = @transform_2, window_bounds = array<i64: 4, 32>}, {pipeline_mode = #tpu.pipeline_mode<synchronous>, transform_indices = @transform_3, window_bounds = array<i64: 32, 128>}, {pipeline_mode = #tpu.pipeline_mode<synchronous>, transform_indices = @transform_4, window_bounds = array<i64: 1, 128>}, {pipeline_mode = #tpu.pipeline_mode<synchronous>, transform_indices = @transform_5, window_bounds = array<i64: 32, 768>}, {pipeline_mode = #tpu.pipeline_mode<synchronous>, transform_indices = @transform_6, window_bounds = array<i64: 32, 768>}, {pipeline_mode = #tpu.pipeline_mode<synchronous>, transform_indices = @transform_7, window_bounds = array<i64: 1, 768>}, {pipeline_mode = #tpu.pipeline_mode<synchronous>, transform_indices = @transform_8, window_bounds = array<i64: 768, 512>}, {pipeline_mode = #tpu.pipeline_mode<synchronous>, transform_indices = @transform_9, window_bounds = array<i64: 1, 512>}, {pipeline_mode = #tpu.pipeline_mode<synchronous>, transform_indices = @transform_10, window_bounds = array<i64: 512, 256>}, {pipeline_mode = #tpu.pipeline_mode<synchronous>, transform_indices = @transform_11, window_bounds = array<i64: 1, 256>}, {pipeline_mode = #tpu.pipeline_mode<synchronous>, transform_indices = @transform_12, window_bounds = array<i64: 256, 128>}, {pipeline_mode = #tpu.pipeline_mode<synchronous>, transform_indices = @transform_13, window_bounds = array<i64: 1, 128>}, {pipeline_mode = #tpu.pipeline_mode<synchronous>, transform_indices = @transform_14, window_bounds = array<i64: 128, 128>}, {pipeline_mode = #tpu.pipeline_mode<synchronous>, transform_indices = @transform_15, window_bounds = array<i64: 1, 128>}, {transform_indices = @transform_16, window_bounds = array<i64: 8, 128>}, {transform_indices = @transform_17, window_bounds = array<i64: 8, 128>}, {transform_indices = @transform_18, window_bounds = array<i64: 8, 32>}]} {
    %c0_i32 = arith.constant 0 : i32
    %0 = arith.cmpi eq, %arg1, %c0_i32 : i32
    %1 = arith.extui %0 : i1 to i32
    %c0_i32_0 = arith.constant 0 : i32
    %2 = arith.cmpi ne, %1, %c0_i32_0 : i32
    scf.if %2 {
      %cst_13 = arith.constant 0.000000e+00 : f32
      %17 = vector.broadcast %cst_13 : f32 to vector<8x32xf32>
      %c0_14 = arith.constant 0 : index
      %c0_15 = arith.constant 0 : index
      %18 = vector.load %arg21[%c0_14, %c0_15] : memref<8x32xf32, #tpu.memory_space<vmem>>, vector<8x32xf32>
      tpu.vector_store %arg21[%c0_14, %c0_15], %17 {strides = array<i32>} : memref<8x32xf32, #tpu.memory_space<vmem>>, vector<8x32xf32>,
      %cst_16 = arith.constant 0.000000e+00 : f32
      %19 = vector.broadcast %cst_16 : f32 to vector<8x32xf32>
      %c0_17 = arith.constant 0 : index
      %c0_18 = arith.constant 0 : index
      %20 = vector.load %arg22[%c0_17, %c0_18] : memref<8x32xf32, #tpu.memory_space<vmem>>, vector<8x32xf32>
      tpu.vector_store %arg22[%c0_17, %c0_18], %19 {strides = array<i32>} : memref<8x32xf32, #tpu.memory_space<vmem>>, vector<8x32xf32>,
    } else {
    }
    %c0 = arith.constant 0 : index
    %c0_1 = arith.constant 0 : index
    %c0_2 = arith.constant 0 : index
    %3 = vector.load %arg2[%c0, %c0_1, %c0_2] : memref<8x8x32xbf16, #tpu.memory_space<vmem>>, vector<8x8x32xbf16>
    %4 = arith.extf %3 : vector<8x8x32xbf16> to vector<8x8x32xf32>
    %c0_3 = arith.constant 0 : index
    %c0_4 = arith.constant 0 : index
    %5 = vector.load %arg21[%c0_3, %c0_4] : memref<8x32xf32, #tpu.memory_space<vmem>>, vector<8x32xf32>
    %cst = arith.constant dense<0.000000e+00> : vector<8x32xf32>
    %6 = vector.multi_reduction <add>, %4, %cst [1] : vector<8x8x32xf32> to vector<8x32xf32>
    %7 = arith.addf %5, %6 : vector<8x32xf32>
    %c0_5 = arith.constant 0 : index
    %c0_6 = arith.constant 0 : index
    %8 = vector.load %arg21[%c0_5, %c0_6] : memref<8x32xf32, #tpu.memory_space<vmem>>, vector<8x32xf32>
    tpu.vector_store %arg21[%c0_5, %c0_6], %7 {strides = array<i32>} : memref<8x32xf32, #tpu.memory_space<vmem>>, vector<8x32xf32>,
    %c0_7 = arith.constant 0 : index
    %c0_8 = arith.constant 0 : index
    %9 = vector.load %arg22[%c0_7, %c0_8] : memref<8x32xf32, #tpu.memory_space<vmem>>, vector<8x32xf32>
    %10 = arith.mulf %4, %4 : vector<8x8x32xf32>
    %cst_9 = arith.constant dense<0.000000e+00> : vector<8x32xf32>
    %11 = vector.multi_reduction <add>, %10, %cst_9 [1] : vector<8x8x32xf32> to vector<8x32xf32>
    %12 = arith.addf %9, %11 : vector<8x32xf32>
    %c0_10 = arith.constant 0 : index
    %c0_11 = arith.constant 0 : index
    %13 = vector.load %arg22[%c0_10, %c0_11] : memref<8x32xf32, #tpu.memory_space<vmem>>, vector<8x32xf32>
    tpu.vector_store %arg22[%c0_10, %c0_11], %12 {strides = array<i32>} : memref<8x32xf32, #tpu.memory_space<vmem>>, vector<8x32xf32>,
    %c3_i32 = arith.constant 3 : i32
    %14 = arith.cmpi eq, %arg1, %c3_i32 : i32
    %15 = arith.extui %14 : i1 to i32
    %c0_i32_12 = arith.constant 0 : i32
    %16 = arith.cmpi ne, %15, %c0_i32_12 : i32
    scf.if %16 {
      %c0_13 = arith.constant 0 : index
      %c0_14 = arith.constant 0 : index
      %17 = vector.load %arg21[%c0_13, %c0_14] : memref<8x32xf32, #tpu.memory_space<vmem>>, vector<8x32xf32>
      %cst_15 = arith.constant 3.125000e-02 : f32
      %18 = vector.broadcast %cst_15 : f32 to vector<8x32xf32>
      %19 = arith.mulf %17, %18 : vector<8x32xf32>
      %c0_16 = arith.constant 0 : index
      %c0_17 = arith.constant 0 : index
      %20 = vector.load %arg22[%c0_16, %c0_17] : memref<8x32xf32, #tpu.memory_space<vmem>>, vector<8x32xf32>
      %cst_18 = arith.constant 3.125000e-02 : f32
      %21 = vector.broadcast %cst_18 : f32 to vector<8x32xf32>
      %22 = arith.mulf %20, %21 : vector<8x32xf32>
      %23 = arith.mulf %19, %19 : vector<8x32xf32>
      %24 = arith.subf %22, %23 : vector<8x32xf32>
      %cst_19 = arith.constant 0.000000e+00 : f32
      %25 = vector.broadcast %cst_19 : f32 to vector<8x32xf32>
      %26 = arith.maximumf %24, %25 : vector<8x32xf32>
      %27 = math.sqrt %26 : vector<8x32xf32>
      %28 = arith.truncf %19 : vector<8x32xf32> to vector<8x32xbf16>
      %c0_20 = arith.constant 0 : index
      %c0_21 = arith.constant 0 : index
      %29 = vector.load %arg3[%c0_20, %c0_21] : memref<32x4xbf16, #tpu.memory_space<vmem>>, vector<32x4xbf16>
      %cst_22 = arith.constant dense<0.000000e+00> : vector<8x4xf32>
      %30 = tpu.matmul %28, %29, %cst_22 {dimension_numbers = #tpu.dot_dimension_numbers<[1], [0], [0], [1], [0, 0, 1, 1], [], []>} : vector<8x32xbf16>, vector<32x4xbf16>, vector<8x4xf32> -> vector<8x4xf32>
      %31 = arith.truncf %30 : vector<8x4xf32> to vector<8x4xbf16>
      %c0_23 = arith.constant 0 : index
      %c0_24 = arith.constant 0 : index
      %32 = vector.load %arg4[%c0_23, %c0_24] : memref<4x32xbf16, #tpu.memory_space<vmem>>, vector<4x32xbf16>
      %cst_25 = arith.constant dense<0.000000e+00> : vector<8x32xf32>
      %33 = tpu.matmul %31, %32, %cst_25 {dimension_numbers = #tpu.dot_dimension_numbers<[1], [0], [0], [1], [0, 0, 1, 1], [], []>} : vector<8x4xbf16>, vector<4x32xbf16>, vector<8x32xf32> -> vector<8x32xf32>
      %34 = arith.subf %19, %33 : vector<8x32xf32>
      %c0_26 = arith.constant 0 : index
      %c0_27 = arith.constant 0 : index
      %35 = vector.load %arg20[%c0_26, %c0_27] : memref<8x32xf32, #tpu.memory_space<vmem>>, vector<8x32xf32>
      tpu.vector_store %arg20[%c0_26, %c0_27], %34 {strides = array<i32>} : memref<8x32xf32, #tpu.memory_space<vmem>>, vector<8x32xf32>,
      %36 = arith.truncf %34 : vector<8x32xf32> to vector<8x32xbf16>
      %c0_28 = arith.constant 0 : index
      %c0_29 = arith.constant 0 : index
      %37 = vector.load %arg5[%c0_28, %c0_29] : memref<32x128xbf16, #tpu.memory_space<vmem>>, vector<32x128xbf16>
      %cst_30 = arith.constant dense<0.000000e+00> : vector<8x128xf32>
      %38 = tpu.matmul %36, %37, %cst_30 {dimension_numbers = #tpu.dot_dimension_numbers<[1], [0], [0], [1], [0, 0, 1, 1], [], []>} : vector<8x32xbf16>, vector<32x128xbf16>, vector<8x128xf32> -> vector<8x128xf32>
      %c0_31 = arith.constant 0 : index
      %c0_32 = arith.constant 0 : index
      %39 = vector.load %arg6[%c0_31, %c0_32] : memref<1x128xf32, #tpu.memory_space<vmem>>, vector<1x128xf32>
      %40 = vector.broadcast %39 : vector<1x128xf32> to vector<8x128xf32>
      %41 = arith.addf %38, %40 : vector<8x128xf32>
      %c0_33 = arith.constant 0 : index
      %c0_34 = arith.constant 0 : index
      %42 = vector.load %arg18[%c0_33, %c0_34] : memref<8x128xf32, #tpu.memory_space<vmem>>, vector<8x128xf32>
      tpu.vector_store %arg18[%c0_33, %c0_34], %41 {strides = array<i32>} : memref<8x128xf32, #tpu.memory_space<vmem>>, vector<8x128xf32>,
      %c0_35 = arith.constant 0 : index
      %c0_36 = arith.constant 0 : index
      %43 = vector.load %arg7[%c0_35, %c0_36] : memref<32x768xbf16, #tpu.memory_space<vmem>>, vector<32x768xbf16>
      %cst_37 = arith.constant dense<0.000000e+00> : vector<8x768xf32>
      %44 = tpu.matmul %36, %43, %cst_37 {dimension_numbers = #tpu.dot_dimension_numbers<[1], [0], [0], [1], [0, 0, 1, 1], [], []>} : vector<8x32xbf16>, vector<32x768xbf16>, vector<8x768xf32> -> vector<8x768xf32>
      %45 = arith.truncf %27 : vector<8x32xf32> to vector<8x32xbf16>
      %c0_38 = arith.constant 0 : index
      %c0_39 = arith.constant 0 : index
      %46 = vector.load %arg8[%c0_38, %c0_39] : memref<32x768xbf16, #tpu.memory_space<vmem>>, vector<32x768xbf16>
      %cst_40 = arith.constant dense<0.000000e+00> : vector<8x768xf32>
      %47 = tpu.matmul %45, %46, %cst_40 {dimension_numbers = #tpu.dot_dimension_numbers<[1], [0], [0], [1], [0, 0, 1, 1], [], []>} : vector<8x32xbf16>, vector<32x768xbf16>, vector<8x768xf32> -> vector<8x768xf32>
      %48 = arith.addf %44, %47 : vector<8x768xf32>
      %c0_41 = arith.constant 0 : index
      %c0_42 = arith.constant 0 : index
      %49 = vector.load %arg9[%c0_41, %c0_42] : memref<1x768xf32, #tpu.memory_space<vmem>>, vector<1x768xf32>
      %50 = vector.broadcast %49 : vector<1x768xf32> to vector<8x768xf32>
      %51 = arith.addf %48, %50 : vector<8x768xf32>
      %cst_43 = arith.constant 0.000000e+00 : f32
      %52 = vector.broadcast %cst_43 : f32 to vector<8x768xf32>
      %53 = arith.maximumf %51, %52 : vector<8x768xf32>
      %54 = arith.truncf %53 : vector<8x768xf32> to vector<8x768xbf16>
      %c0_44 = arith.constant 0 : index
      %c0_45 = arith.constant 0 : index
      %55 = vector.load %arg10[%c0_44, %c0_45] : memref<768x512xbf16, #tpu.memory_space<vmem>>, vector<768x512xbf16>
      %cst_46 = arith.constant dense<0.000000e+00> : vector<8x512xf32>
      %56 = tpu.matmul %54, %55, %cst_46 {dimension_numbers = #tpu.dot_dimension_numbers<[1], [0], [0], [1], [0, 0, 1, 1], [], []>} : vector<8x768xbf16>, vector<768x512xbf16>, vector<8x512xf32> -> vector<8x512xf32>
      %c0_47 = arith.constant 0 : index
      %c0_48 = arith.constant 0 : index
      %57 = vector.load %arg11[%c0_47, %c0_48] : memref<1x512xf32, #tpu.memory_space<vmem>>, vector<1x512xf32>
      %58 = vector.broadcast %57 : vector<1x512xf32> to vector<8x512xf32>
      %59 = arith.addf %56, %58 : vector<8x512xf32>
      %cst_49 = arith.constant 0.000000e+00 : f32
      %60 = vector.broadcast %cst_49 : f32 to vector<8x512xf32>
      %61 = arith.maximumf %59, %60 : vector<8x512xf32>
      %62 = arith.truncf %61 : vector<8x512xf32> to vector<8x512xbf16>
      %c0_50 = arith.constant 0 : index
      %c0_51 = arith.constant 0 : index
      %63 = vector.load %arg12[%c0_50, %c0_51] : memref<512x256xbf16, #tpu.memory_space<vmem>>, vector<512x256xbf16>
      %cst_52 = arith.constant dense<0.000000e+00> : vector<8x256xf32>
      %64 = tpu.matmul %62, %63, %cst_52 {dimension_numbers = #tpu.dot_dimension_numbers<[1], [0], [0], [1], [0, 0, 1, 1], [], []>} : vector<8x512xbf16>, vector<512x256xbf16>, vector<8x256xf32> -> vector<8x256xf32>
      %c0_53 = arith.constant 0 : index
      %c0_54 = arith.constant 0 : index
      %65 = vector.load %arg13[%c0_53, %c0_54] : memref<1x256xf32, #tpu.memory_space<vmem>>, vector<1x256xf32>
      %66 = vector.broadcast %65 : vector<1x256xf32> to vector<8x256xf32>
      %67 = arith.addf %64, %66 : vector<8x256xf32>
      %cst_55 = arith.constant 0.000000e+00 : f32
      %68 = vector.broadcast %cst_55 : f32 to vector<8x256xf32>
      %69 = arith.maximumf %67, %68 : vector<8x256xf32>
      %70 = arith.truncf %69 : vector<8x256xf32> to vector<8x256xbf16>
      %c0_56 = arith.constant 0 : index
      %c0_57 = arith.constant 0 : index
      %71 = vector.load %arg14[%c0_56, %c0_57] : memref<256x128xbf16, #tpu.memory_space<vmem>>, vector<256x128xbf16>
      %cst_58 = arith.constant dense<0.000000e+00> : vector<8x128xf32>
      %72 = tpu.matmul %70, %71, %cst_58 {dimension_numbers = #tpu.dot_dimension_numbers<[1], [0], [0], [1], [0, 0, 1, 1], [], []>} : vector<8x256xbf16>, vector<256x128xbf16>, vector<8x128xf32> -> vector<8x128xf32>
      %c0_59 = arith.constant 0 : index
      %c0_60 = arith.constant 0 : index
      %73 = vector.load %arg15[%c0_59, %c0_60] : memref<1x128xf32, #tpu.memory_space<vmem>>, vector<1x128xf32>
      %74 = vector.broadcast %73 : vector<1x128xf32> to vector<8x128xf32>
      %75 = arith.addf %72, %74 : vector<8x128xf32>
      %cst_61 = arith.constant 0.000000e+00 : f32
      %76 = vector.broadcast %cst_61 : f32 to vector<8x128xf32>
      %77 = arith.maximumf %75, %76 : vector<8x128xf32>
      %78 = arith.truncf %77 : vector<8x128xf32> to vector<8x128xbf16>
      %c0_62 = arith.constant 0 : index
      %c0_63 = arith.constant 0 : index
      %79 = vector.load %arg16[%c0_62, %c0_63] : memref<128x128xbf16, #tpu.memory_space<vmem>>, vector<128x128xbf16>
      %cst_64 = arith.constant dense<0.000000e+00> : vector<8x128xf32>
      %80 = tpu.matmul %78, %79, %cst_64 {dimension_numbers = #tpu.dot_dimension_numbers<[1], [0], [0], [1], [0, 0, 1, 1], [], []>} : vector<8x128xbf16>, vector<128x128xbf16>, vector<8x128xf32> -> vector<8x128xf32>
      %c0_65 = arith.constant 0 : index
      %c0_66 = arith.constant 0 : index
      %81 = vector.load %arg17[%c0_65, %c0_66] : memref<1x128xf32, #tpu.memory_space<vmem>>, vector<1x128xf32>
      %82 = vector.broadcast %81 : vector<1x128xf32> to vector<8x128xf32>
      %83 = arith.addf %80, %82 : vector<8x128xf32>
      %c0_67 = arith.constant 0 : index
      %c0_68 = arith.constant 0 : index
      %84 = vector.load %arg19[%c0_67, %c0_68] : memref<8x128xf32, #tpu.memory_space<vmem>>, vector<8x128xf32>
      tpu.vector_store %arg19[%c0_67, %c0_68], %83 {strides = array<i32>} : memref<8x128xf32, #tpu.memory_space<vmem>>, vector<8x128xf32>,
    } else {
    }
    return
  }
  func.func @transform_0(%arg0: i32, %arg1: i32) -> (i32, i32, i32) {
    %c0_i32 = arith.constant 0 : i32
    %c0_i32_0 = arith.constant 0 : i32
    return %arg0, %arg1, %c0_i32 : i32, i32, i32
  }
  func.func @transform_1(%arg0: i32, %arg1: i32) -> (i32, i32) {
    %c0_i32 = arith.constant 0 : i32
    %c0_i32_0 = arith.constant 0 : i32
    %c0_i32_1 = arith.constant 0 : i32
    return %c0_i32, %c0_i32_0 : i32, i32
  }
  func.func @transform_2(%arg0: i32, %arg1: i32) -> (i32, i32) {
    %c0_i32 = arith.constant 0 : i32
    %c0_i32_0 = arith.constant 0 : i32
    %c0_i32_1 = arith.constant 0 : i32
    return %c0_i32, %c0_i32_0 : i32, i32
  }
  func.func @transform_3(%arg0: i32, %arg1: i32) -> (i32, i32) {
    %c0_i32 = arith.constant 0 : i32
    %c0_i32_0 = arith.constant 0 : i32
    %c0_i32_1 = arith.constant 0 : i32
    return %c0_i32, %c0_i32_0 : i32, i32
  }
  func.func @transform_4(%arg0: i32, %arg1: i32) -> (i32, i32) {
    %c0_i32 = arith.constant 0 : i32
    %c0_i32_0 = arith.constant 0 : i32
    %c0_i32_1 = arith.constant 0 : i32
    return %c0_i32, %c0_i32_0 : i32, i32
  }
  func.func @transform_5(%arg0: i32, %arg1: i32) -> (i32, i32) {
    %c0_i32 = arith.constant 0 : i32
    %c0_i32_0 = arith.constant 0 : i32
    %c0_i32_1 = arith.constant 0 : i32
    return %c0_i32, %c0_i32_0 : i32, i32
  }
  func.func @transform_6(%arg0: i32, %arg1: i32) -> (i32, i32) {
    %c0_i32 = arith.constant 0 : i32
    %c0_i32_0 = arith.constant 0 : i32
    %c0_i32_1 = arith.constant 0 : i32
    return %c0_i32, %c0_i32_0 : i32, i32
  }
  func.func @transform_7(%arg0: i32, %arg1: i32) -> (i32, i32) {
    %c0_i32 = arith.constant 0 : i32
    %c0_i32_0 = arith.constant 0 : i32
    %c0_i32_1 = arith.constant 0 : i32
    return %c0_i32, %c0_i32_0 : i32, i32
  }
  func.func @transform_8(%arg0: i32, %arg1: i32) -> (i32, i32) {
    %c0_i32 = arith.constant 0 : i32
    %c0_i32_0 = arith.constant 0 : i32
    %c0_i32_1 = arith.constant 0 : i32
    return %c0_i32, %c0_i32_0 : i32, i32
  }
  func.func @transform_9(%arg0: i32, %arg1: i32) -> (i32, i32) {
    %c0_i32 = arith.constant 0 : i32
    %c0_i32_0 = arith.constant 0 : i32
    %c0_i32_1 = arith.constant 0 : i32
    return %c0_i32, %c0_i32_0 : i32, i32
  }
  func.func @transform_10(%arg0: i32, %arg1: i32) -> (i32, i32) {
    %c0_i32 = arith.constant 0 : i32
    %c0_i32_0 = arith.constant 0 : i32
    %c0_i32_1 = arith.constant 0 : i32
    return %c0_i32, %c0_i32_0 : i32, i32
  }
  func.func @transform_11(%arg0: i32, %arg1: i32) -> (i32, i32) {
    %c0_i32 = arith.constant 0 : i32
    %c0_i32_0 = arith.constant 0 : i32
    %c0_i32_1 = arith.constant 0 : i32
    return %c0_i32, %c0_i32_0 : i32, i32
  }
  func.func @transform_12(%arg0: i32, %arg1: i32) -> (i32, i32) {
    %c0_i32 = arith.constant 0 : i32
    %c0_i32_0 = arith.constant 0 : i32
    %c0_i32_1 = arith.constant 0 : i32
    return %c0_i32, %c0_i32_0 : i32, i32
  }
  func.func @transform_13(%arg0: i32, %arg1: i32) -> (i32, i32) {
    %c0_i32 = arith.constant 0 : i32
    %c0_i32_0 = arith.constant 0 : i32
    %c0_i32_1 = arith.constant 0 : i32
    return %c0_i32, %c0_i32_0 : i32, i32
  }
  func.func @transform_14(%arg0: i32, %arg1: i32) -> (i32, i32) {
    %c0_i32 = arith.constant 0 : i32
    %c0_i32_0 = arith.constant 0 : i32
    %c0_i32_1 = arith.constant 0 : i32
    return %c0_i32, %c0_i32_0 : i32, i32
  }
  func.func @transform_15(%arg0: i32, %arg1: i32) -> (i32, i32) {
    %c0_i32 = arith.constant 0 : i32
    %c0_i32_0 = arith.constant 0 : i32
    %c0_i32_1 = arith.constant 0 : i32
    return %c0_i32, %c0_i32_0 : i32, i32
  }
  func.func @transform_16(%arg0: i32, %arg1: i32) -> (i32, i32) {
    %c0_i32 = arith.constant 0 : i32
    %c0_i32_0 = arith.constant 0 : i32
    return %arg0, %c0_i32 : i32, i32
  }
  func.func @transform_17(%arg0: i32, %arg1: i32) -> (i32, i32) {
    %c0_i32 = arith.constant 0 : i32
    %c0_i32_0 = arith.constant 0 : i32
    return %arg0, %c0_i32 : i32, i32
  }
  func.func @transform_18(%arg0: i32, %arg1: i32) -> (i32, i32) {
    %c0_i32 = arith.constant 0 : i32
    %c0_i32_0 = arith.constant 0 : i32
    return %arg0, %c0_i32 : i32, i32
  }
}

</mosaic_0001>

<llo_original>
// kernel: tpu_custom_call.1
$region0: #{tpu_custom_call.1}
  #allocation0 [shape = 'u32[]', space=smem, size = 0x4, offset = 0x4, fixed_abs, tag = 'smem constant byte address 0x4 - core index']
  #allocation1 [shape = 'u32[144,128]{1,0:T(1,128)}', space=vmem, size = 0x12000, scoped, tag = 'internal scratch']
  #allocation2 [shape = 'f32[8,32]{1,0:T(8,128)}', space=vmem, size = 0x1000, scoped, tag = 'scratch operand']
  #allocation3 [shape = 'f32[8,32]{1,0:T(8,128)}', space=vmem, size = 0x1000, scoped, tag = 'scratch operand']
  %s0 = inlined_call_operand.hbm [shape: bf16[8,32,32], index: 0, kind: input, shape index: {}]
  %s1 = inlined_call_operand.vmem [shape: bf16[32,4], index: 1, kind: input, shape index: {}]
  %s2 = inlined_call_operand.hbm [shape: bf16[4,32], index: 2, kind: input, shape index: {}]
  %s3 = inlined_call_operand.hbm [shape: bf16[32,128], index: 3, kind: input, shape index: {}]
  %s4 = inlined_call_operand.hbm [shape: f32[1,128], index: 4, kind: input, shape index: {}]
  %s5 = inlined_call_operand.hbm [shape: bf16[32,768], index: 5, kind: input, shape index: {}]
  %s6 = inlined_call_operand.hbm [shape: bf16[32,768], index: 6, kind: input, shape index: {}]
  %s7 = inlined_call_operand.vmem [shape: f32[1,768], index: 7, kind: input, shape index: {}]
  %s8 = inlined_call_operand.hbm [shape: bf16[768,512], index: 8, kind: input, shape index: {}]
  %s9 = inlined_call_operand.hbm [shape: f32[1,512], index: 9, kind: input, shape index: {}]
  %s10 = inlined_call_operand.hbm [shape: bf16[512,256], index: 10, kind: input, shape index: {}]
  %s11 = inlined_call_operand.hbm [shape: f32[1,256], index: 11, kind: input, shape index: {}]
  %s12 = inlined_call_operand.hbm [shape: bf16[256,128], index: 12, kind: input, shape index: {}]
  %s13 = inlined_call_operand.hbm [shape: f32[1,128], index: 13, kind: input, shape index: {}]
  %s14 = inlined_call_operand.vmem [shape: bf16[128,128], index: 14, kind: input, shape index: {}]
  %s15 = inlined_call_operand.vmem [shape: f32[1,128], index: 15, kind: input, shape index: {}]
  %s16 = inlined_call_operand.hbm [shape: f32[8,128], index: 16, kind: output, shape index: {0}]
  %s17 = inlined_call_operand.hbm [shape: f32[8,128], index: 17, kind: output, shape index: {1}]
  %s18 = inlined_call_operand.hbm [shape: f32[8,32], index: 18, kind: output, shape index: {2}]
  %19 = xla_tuple %s16, %s17, %s18
  %s20 = sld [smem:[#allocation0]]
  $region169: #{tpu_custom_call.1} parent=0
    _
  %s22 = ssub.s32 1, %s20
  %s23 = scalar_select 0, %s22, %s20
  $region1: #{tpu_custom_call.1} parent=0
    #allocation4 [shape = 'u8[32768]{0}', space=vmem, size = 0x8000, scoped, tag = 'input window, operand 0']
    #allocation5 [shape = 's32[2]{0}', space=sflag, size = 0x8, scoped, tag = 'scoped memory for tpu_custom_call.1']
    #allocation6 [shape = 's32[2]{0}', space=sflag, size = 0x8, scoped, tag = 'scoped memory for tpu_custom_call.1']
    #allocation7 [shape = 'u8[1024]{0}', space=vmem, size = 0x400, scoped, tag = 'input window, operand 2, single buffered']
    #allocation8 [shape = 's32[1]{0}', space=sflag, size = 0x4, scoped, tag = 'scoped memory for tpu_custom_call.1']
    #allocation9 [shape = 'u8[8192]{0}', space=vmem, size = 0x2000, scoped, tag = 'input window, operand 3, single buffered']
    #allocation10 [shape = 'u8[512]{0}', space=vmem, size = 0x400, scoped, tag = 'input window, operand 4, single buffered']
    #allocation11 [shape = 's32[1]{0}', space=sflag, size = 0x4, scoped, tag = 'scoped memory for tpu_custom_call.1']
    #allocation12 [shape = 'u8[49152]{0}', space=vmem, size = 0xc000, scoped, tag = 'input window, operand 5, single buffered']
    #allocation13 [shape = 'u8[49152]{0}', space=vmem, size = 0xc000, scoped, tag = 'input window, operand 6, single buffered']
    #allocation14 [shape = 's32[1]{0}', space=sflag, size = 0x4, scoped, tag = 'scoped memory for tpu_custom_call.1']
    #allocation15 [shape = 'u8[786432]{0}', space=vmem, size = 0xc0000, scoped, tag = 'input window, operand 8, single buffered']
    #allocation16 [shape = 'u8[2048]{0}', space=vmem, size = 0x800, scoped, tag = 'input window, operand 9, single buffered']
    #allocation17 [shape = 's32[1]{0}', space=sflag, size = 0x4, scoped, tag = 'scoped memory for tpu_custom_call.1']
    #allocation18 [shape = 'u8[262144]{0}', space=vmem, size = 0x40000, scoped, tag = 'input window, operand 10, single buffered']
    #allocation19 [shape = 'u8[1024]{0}', space=vmem, size = 0x400, scoped, tag = 'input window, operand 11, single buffered']
    #allocation20 [shape = 's32[1]{0}', space=sflag, size = 0x4, scoped, tag = 'scoped memory for tpu_custom_call.1']
    #allocation21 [shape = 'u8[65536]{0}', space=vmem, size = 0x10000, scoped, tag = 'input window, operand 12, single buffered']
    #allocation22 [shape = 'u8[512]{0}', space=vmem, size = 0x400, scoped, tag = 'input window, operand 13, single buffered']
    #allocation23 [shape = 's32[1]{0}', space=sflag, size = 0x4, scoped, tag = 'scoped memory for tpu_custom_call.1']
    #allocation24 [shape = 'u8[4096]{0}', space=vmem, size = 0x1000, scoped, tag = 'output window, operand 0, single buffered']
    #allocation25 [shape = 'u8[4096]{0}', space=vmem, size = 0x1000, scoped, tag = 'output window, operand 1, single buffered']
    #allocation26 [shape = 's32[1]{0}', space=sflag, size = 0x4, scoped, tag = 'scoped memory for tpu_custom_call.1']
    #allocation27 [shape = 'u8[4096]{0}', space=vmem, size = 0x1000, scoped, tag = 'output window, operand 2, single buffered']
    %24 = vsyncpa [#allocation5], 0
    %s25 = scalar_lea.sflag [#allocation5], 1
    %26 = vsyncpa %s25, 0
    %27 = vsyncpa [#allocation8], 0
    %28 = vsyncpa [#allocation11], 0
    %29 = vsyncpa [#allocation14], 0
    %30 = vsyncpa [#allocation17], 0
    %31 = vsyncpa [#allocation20], 0
    %32 = vsyncpa [#allocation23], 0
    %33 = vsyncpa [#allocation6], 0
    %34 = vsyncpa [#allocation26], 0
    loop: start=0, step=1, limit=6
    $region2: #{tpu_custom_call.1} parent=1 // loop_pre_header
      _
    $region3: #{tpu_custom_call.1} parent=1 // loop_header
      %s36 = sphi 0, %s40
      %p37 = scmp.ge.s32.totalorder %s36, 6
      %s43 = sphi 0, %s55
      %s44 = sphi 0, %s51
      %s45 = sphi 0, %s43
      %s46 = sphi 0, %s44
      %s47 = sphi 0, %s45
      %s48 = sphi 0, %s46
      %s60 = sphi 0, %s62
      %s63 = sphi 0, %s60
      %s64 = sphi 0, %s63
      %s80 = sphi 0, %s64
      %s84 = sphi 0, %s84
      %s86 = sphi 0, %s84
      %s87 = sphi 0, %s86
      %s101 = sphi 0, %s87
      %s105 = sphi 0, %s105
      %s107 = sphi 0, %s105
      %s108 = sphi 0, %s107
      %s122 = sphi 0, %s108
      %s126 = sphi 0, %s126
      %s128 = sphi 0, %s126
      %s129 = sphi 0, %s128
      %s143 = sphi 0, %s129
      %s147 = sphi 0, %s147
      %s149 = sphi 0, %s147
      %s150 = sphi 0, %s149
      %s164 = sphi 0, %s150
      %s168 = sphi 0, %s168
      %s170 = sphi 0, %s168
      %s171 = sphi 0, %s170
      %s185 = sphi 0, %s171
      %s189 = sphi 0, %s189
      %s191 = sphi 0, %s189
      %s192 = sphi 0, %s191
      %s206 = sphi 0, %s192
      %s210 = sphi 0, %s210
      %s212 = sphi 0, %s210
      %s213 = sphi 0, %s212
      %s227 = sphi 0, %s213
      %s231 = sphi 0, %s231
      %s233 = sphi 0, %s231
      %s234 = sphi 0, %s233
      %s248 = sphi 0, %s234
      %s252 = sphi 0, %s252
      %s254 = sphi 0, %s252
      %s255 = sphi 0, %s254
      %s269 = sphi 0, %s255
      %s273 = sphi 0, %s273
      %s275 = sphi 0, %s273
      %s276 = sphi 0, %s275
      %s290 = sphi 0, %s276
      %s294 = sphi 0, %s294
      %s296 = sphi 0, %s294
      %s297 = sphi 0, %s296
      %s311 = sphi 0, %s297
      %s315 = sphi 0, %s315
      %s317 = sphi 0, %s315
      %s318 = sphi 0, %s317
      %s332 = sphi 0, %s318
      %s336 = sphi 0, %s336
      %s338 = sphi 0, %s336
      %s339 = sphi 0, %s338
      %s353 = sphi 0, %s339
      %s357 = sphi 0, %s357
      %s359 = sphi 0, %s357
      %s360 = sphi 0, %s359
      %s374 = sphi 0, %s360
      %s378 = sphi 0, %s378
      %s380 = sphi 0, %s378
      %s381 = sphi 0, %s380
      %s395 = sphi 0, %s381
      %s401 = sphi 0, %s403
      %s404 = sphi 0, %s401
      %s405 = sphi 0, %s404
      %s421 = sphi 0, %s405
      %s427 = sphi 0, %s429
      %s430 = sphi 0, %s427
      %s431 = sphi 0, %s430
      %s447 = sphi 0, %s431
      %s453 = sphi 0, %s455
      %s456 = sphi 0, %s453
      %s457 = sphi 0, %s456
      %s473 = sphi 0, %s457
    $region4: #{tpu_custom_call.1} parent=1 // loop_header_branch
      %39 = sbr.rel (%p37) target = $region8
    $region5: #{tpu_custom_call.1} parent=1 // loop_body
      %s41 = ssub.s32 %s36, 1
      %s42 = ssub.s32 %s36, 2
      %s49 = sadd.s32 1, %s44
      %p50 = scmp.ge.s32.totalorder %s49, 4
      %s51 = scalar_select %p50, 0, %s49
      %s52 = sadd.s32 1, %s43
      %s53 = scalar_select %p50, %s52, %s43
      %p54 = scmp.ge.s32.totalorder %s53, 1
      %s55 = scalar_select %p54, 0, %s53
      %s56 = ssub.s32 %s43, %s55
      %s57 = ssub.s32 %s44, %s51
      %s58 = sor.u32 %s56, %s57
      %p59 = scmp.eq.s32.totalorder %s58, 0
      %s61 = sadd.s32 %s60, 1
      %s62 = scalar_select %p59, %s60, %s61
      %p65 = pneg %p59
      %p66 = scmp.eq.s32.totalorder %s36, 3
      %p67 = por %p65, %p66
      %p68 = scmp.ne.s32.totalorder %s60, %s63
      %p69 = scmp.eq.s32.totalorder %s36, 0
      %p70 = por %p68, %p69
      %p71 = scmp.ne.s32.totalorder %s60, %s63
      %p72 = scmp.eq.s32.totalorder %s41, 3
      %p73 = por %p71, %p72
      %p74 = scmp.ne.s32.totalorder %s63, %s64
      %p75 = scmp.eq.s32.totalorder %s41, 0
      %p76 = por %p74, %p75
      %p77 = scmp.ne.s32.totalorder %s63, %s64
      %p78 = scmp.eq.s32.totalorder %s42, 3
      %p79 = por %p77, %p78
      %p81 = scmp.ne.s32.totalorder %s64, %s80
      %p82 = scmp.eq.s32.totalorder %s42, 0
      %p83 = por %p81, %p82
      %s85 = sadd.s32 %s84, 1
      %p88 = scmp.eq.s32.totalorder %s36, 3
      %p89 = scmp.ne.s32.totalorder %s84, %s86
      %p90 = scmp.eq.s32.totalorder %s36, 0
      %p91 = por %p89, %p90
      %p92 = scmp.ne.s32.totalorder %s84, %s86
      %p93 = scmp.eq.s32.totalorder %s41, 3
      %p94 = por %p92, %p93
      %p95 = scmp.ne.s32.totalorder %s86, %s87
      %p96 = scmp.eq.s32.totalorder %s41, 0
      %p97 = por %p95, %p96
      %p98 = scmp.ne.s32.totalorder %s86, %s87
      %p99 = scmp.eq.s32.totalorder %s42, 3
      %p100 = por %p98, %p99
      %p102 = scmp.ne.s32.totalorder %s87, %s101
      %p103 = scmp.eq.s32.totalorder %s42, 0
      %p104 = por %p102, %p103
      %s106 = sadd.s32 %s105, 1
      %p109 = scmp.eq.s32.totalorder %s36, 3
      %p110 = scmp.ne.s32.totalorder %s105, %s107
      %p111 = scmp.eq.s32.totalorder %s36, 0
      %p112 = por %p110, %p111
      %p113 = scmp.ne.s32.totalorder %s105, %s107
      %p114 = scmp.eq.s32.totalorder %s41, 3
      %p115 = por %p113, %p114
      %p116 = scmp.ne.s32.totalorder %s107, %s108
      %p117 = scmp.eq.s32.totalorder %s41, 0
      %p118 = por %p116, %p117
      %p119 = scmp.ne.s32.totalorder %s107, %s108
      %p120 = scmp.eq.s32.totalorder %s42, 3
      %p121 = por %p119, %p120
      %p123 = scmp.ne.s32.totalorder %s108, %s122
      %p124 = scmp.eq.s32.totalorder %s42, 0
      %p125 = por %p123, %p124
      %s127 = sadd.s32 %s126, 1
      %p130 = scmp.eq.s32.totalorder %s36, 3
      %p131 = scmp.ne.s32.totalorder %s126, %s128
      %p132 = scmp.eq.s32.totalorder %s36, 0
      %p133 = por %p131, %p132
      %p134 = scmp.ne.s32.totalorder %s126, %s128
      %p135 = scmp.eq.s32.totalorder %s41, 3
      %p136 = por %p134, %p135
      %p137 = scmp.ne.s32.totalorder %s128, %s129
      %p138 = scmp.eq.s32.totalorder %s41, 0
      %p139 = por %p137, %p138
      %p140 = scmp.ne.s32.totalorder %s128, %s129
      %p141 = scmp.eq.s32.totalorder %s42, 3
      %p142 = por %p140, %p141
      %p144 = scmp.ne.s32.totalorder %s129, %s143
      %p145 = scmp.eq.s32.totalorder %s42, 0
      %p146 = por %p144, %p145
      %s148 = sadd.s32 %s147, 1
      %p151 = scmp.eq.s32.totalorder %s36, 3
      %p152 = scmp.ne.s32.totalorder %s147, %s149
      %p153 = scmp.eq.s32.totalorder %s36, 0
      %p154 = por %p152, %p153
      %p155 = scmp.ne.s32.totalorder %s147, %s149
      %p156 = scmp.eq.s32.totalorder %s41, 3
      %p157 = por %p155, %p156
      %p158 = scmp.ne.s32.totalorder %s149, %s150
      %p159 = scmp.eq.s32.totalorder %s41, 0
      %p160 = por %p158, %p159
      %p161 = scmp.ne.s32.totalorder %s149, %s150
      %p162 = scmp.eq.s32.totalorder %s42, 3
      %p163 = por %p161, %p162
      %p165 = scmp.ne.s32.totalorder %s150, %s164
      %p166 = scmp.eq.s32.totalorder %s42, 0
      %p167 = por %p165, %p166
      %s169 = sadd.s32 %s168, 1
      %p172 = scmp.eq.s32.totalorder %s36, 3
      %p173 = scmp.ne.s32.totalorder %s168, %s170
      %p174 = scmp.eq.s32.totalorder %s36, 0
      %p175 = por %p173, %p174
      %p176 = scmp.ne.s32.totalorder %s168, %s170
      %p177 = scmp.eq.s32.totalorder %s41, 3
      %p178 = por %p176, %p177
      %p179 = scmp.ne.s32.totalorder %s170, %s171
      %p180 = scmp.eq.s32.totalorder %s41, 0
      %p181 = por %p179, %p180
      %p182 = scmp.ne.s32.totalorder %s170, %s171
      %p183 = scmp.eq.s32.totalorder %s42, 3
      %p184 = por %p182, %p183
      %p186 = scmp.ne.s32.totalorder %s171, %s185
      %p187 = scmp.eq.s32.totalorder %s42, 0
      %p188 = por %p186, %p187
      %s190 = sadd.s32 %s189, 1
      %p193 = scmp.eq.s32.totalorder %s36, 3
      %p194 = scmp.ne.s32.totalorder %s189, %s191
      %p195 = scmp.eq.s32.totalorder %s36, 0
      %p196 = por %p194, %p195
      %p197 = scmp.ne.s32.totalorder %s189, %s191
      %p198 = scmp.eq.s32.totalorder %s41, 3
      %p199 = por %p197, %p198
      %p200 = scmp.ne.s32.totalorder %s191, %s192
      %p201 = scmp.eq.s32.totalorder %s41, 0
      %p202 = por %p200, %p201
      %p203 = scmp.ne.s32.totalorder %s191, %s192
      %p204 = scmp.eq.s32.totalorder %s42, 3
      %p205 = por %p203, %p204
      %p207 = scmp.ne.s32.totalorder %s192, %s206
      %p208 = scmp.eq.s32.totalorder %s42, 0
      %p209 = por %p207, %p208
      %s211 = sadd.s32 %s210, 1
      %p214 = scmp.eq.s32.totalorder %s36, 3
      %p215 = scmp.ne.s32.totalorder %s210, %s212
      %p216 = scmp.eq.s32.totalorder %s36, 0
      %p217 = por %p215, %p216
      %p218 = scmp.ne.s32.totalorder %s210, %s212
      %p219 = scmp.eq.s32.totalorder %s41, 3
      %p220 = por %p218, %p219
      %p221 = scmp.ne.s32.totalorder %s212, %s213
      %p222 = scmp.eq.s32.totalorder %s41, 0
      %p223 = por %p221, %p222
      %p224 = scmp.ne.s32.totalorder %s212, %s213
      %p225 = scmp.eq.s32.totalorder %s42, 3
      %p226 = por %p224, %p225
      %p228 = scmp.ne.s32.totalorder %s213, %s227
      %p229 = scmp.eq.s32.totalorder %s42, 0
      %p230 = por %p228, %p229
      %s232 = sadd.s32 %s231, 1
      %p235 = scmp.eq.s32.totalorder %s36, 3
      %p236 = scmp.ne.s32.totalorder %s231, %s233
      %p237 = scmp.eq.s32.totalorder %s36, 0
      %p238 = por %p236, %p237
      %p239 = scmp.ne.s32.totalorder %s231, %s233
      %p240 = scmp.eq.s32.totalorder %s41, 3
      %p241 = por %p239, %p240
      %p242 = scmp.ne.s32.totalorder %s233, %s234
      %p243 = scmp.eq.s32.totalorder %s41, 0
      %p244 = por %p242, %p243
      %p245 = scmp.ne.s32.totalorder %s233, %s234
      %p246 = scmp.eq.s32.totalorder %s42, 3
      %p247 = por %p245, %p246
      %p249 = scmp.ne.s32.totalorder %s234, %s248
      %p250 = scmp.eq.s32.totalorder %s42, 0
      %p251 = por %p249, %p250
      %s253 = sadd.s32 %s252, 1
      %p256 = scmp.eq.s32.totalorder %s36, 3
      %p257 = scmp.ne.s32.totalorder %s252, %s254
      %p258 = scmp.eq.s32.totalorder %s36, 0
      %p259 = por %p257, %p258
      %p260 = scmp.ne.s32.totalorder %s252, %s254
      %p261 = scmp.eq.s32.totalorder %s41, 3
      %p262 = por %p260, %p261
      %p263 = scmp.ne.s32.totalorder %s254, %s255
      %p264 = scmp.eq.s32.totalorder %s41, 0
      %p265 = por %p263, %p264
      %p266 = scmp.ne.s32.totalorder %s254, %s255
      %p267 = scmp.eq.s32.totalorder %s42, 3
      %p268 = por %p266, %p267
      %p270 = scmp.ne.s32.totalorder %s255, %s269
      %p271 = scmp.eq.s32.totalorder %s42, 0
      %p272 = por %p270, %p271
      %s274 = sadd.s32 %s273, 1
      %p277 = scmp.eq.s32.totalorder %s36, 3
      %p278 = scmp.ne.s32.totalorder %s273, %s275
      %p279 = scmp.eq.s32.totalorder %s36, 0
      %p280 = por %p278, %p279
      %p281 = scmp.ne.s32.totalorder %s273, %s275
      %p282 = scmp.eq.s32.totalorder %s41, 3
      %p283 = por %p281, %p282
      %p284 = scmp.ne.s32.totalorder %s275, %s276
      %p285 = scmp.eq.s32.totalorder %s41, 0
      %p286 = por %p284, %p285
      %p287 = scmp.ne.s32.totalorder %s275, %s276
      %p288 = scmp.eq.s32.totalorder %s42, 3
      %p289 = por %p287, %p288
      %p291 = scmp.ne.s32.totalorder %s276, %s290
      %p292 = scmp.eq.s32.totalorder %s42, 0
      %p293 = por %p291, %p292
      %s295 = sadd.s32 %s294, 1
      %p298 = scmp.eq.s32.totalorder %s36, 3
      %p299 = scmp.ne.s32.totalorder %s294, %s296
      %p300 = scmp.eq.s32.totalorder %s36, 0
      %p301 = por %p299, %p300
      %p302 = scmp.ne.s32.totalorder %s294, %s296
      %p303 = scmp.eq.s32.totalorder %s41, 3
      %p304 = por %p302, %p303
      %p305 = scmp.ne.s32.totalorder %s296, %s297
      %p306 = scmp.eq.s32.totalorder %s41, 0
      %p307 = por %p305, %p306
      %p308 = scmp.ne.s32.totalorder %s296, %s297
      %p309 = scmp.eq.s32.totalorder %s42, 3
      %p310 = por %p308, %p309
      %p312 = scmp.ne.s32.totalorder %s297, %s311
      %p313 = scmp.eq.s32.totalorder %s42, 0
      %p314 = por %p312, %p313
      %s316 = sadd.s32 %s315, 1
      %p319 = scmp.eq.s32.totalorder %s36, 3
      %p320 = scmp.ne.s32.totalorder %s315, %s317
      %p321 = scmp.eq.s32.totalorder %s36, 0
      %p322 = por %p320, %p321
      %p323 = scmp.ne.s32.totalorder %s315, %s317
      %p324 = scmp.eq.s32.totalorder %s41, 3
      %p325 = por %p323, %p324
      %p326 = scmp.ne.s32.totalorder %s317, %s318
      %p327 = scmp.eq.s32.totalorder %s41, 0
      %p328 = por %p326, %p327
      %p329 = scmp.ne.s32.totalorder %s317, %s318
      %p330 = scmp.eq.s32.totalorder %s42, 3
      %p331 = por %p329, %p330
      %p333 = scmp.ne.s32.totalorder %s318, %s332
      %p334 = scmp.eq.s32.totalorder %s42, 0
      %p335 = por %p333, %p334
      %s337 = sadd.s32 %s336, 1
      %p340 = scmp.eq.s32.totalorder %s36, 3
      %p341 = scmp.ne.s32.totalorder %s336, %s338
      %p342 = scmp.eq.s32.totalorder %s36, 0
      %p343 = por %p341, %p342
      %p344 = scmp.ne.s32.totalorder %s336, %s338
      %p345 = scmp.eq.s32.totalorder %s41, 3
      %p346 = por %p344, %p345
      %p347 = scmp.ne.s32.totalorder %s338, %s339
      %p348 = scmp.eq.s32.totalorder %s41, 0
      %p349 = por %p347, %p348
      %p350 = scmp.ne.s32.totalorder %s338, %s339
      %p351 = scmp.eq.s32.totalorder %s42, 3
      %p352 = por %p350, %p351
      %p354 = scmp.ne.s32.totalorder %s339, %s353
      %p355 = scmp.eq.s32.totalorder %s42, 0
      %p356 = por %p354, %p355
      %s358 = sadd.s32 %s357, 1
      %p361 = scmp.eq.s32.totalorder %s36, 3
      %p362 = scmp.ne.s32.totalorder %s357, %s359
      %p363 = scmp.eq.s32.totalorder %s36, 0
      %p364 = por %p362, %p363
      %p365 = scmp.ne.s32.totalorder %s357, %s359
      %p366 = scmp.eq.s32.totalorder %s41, 3
      %p367 = por %p365, %p366
      %p368 = scmp.ne.s32.totalorder %s359, %s360
      %p369 = scmp.eq.s32.totalorder %s41, 0
      %p370 = por %p368, %p369
      %p371 = scmp.ne.s32.totalorder %s359, %s360
      %p372 = scmp.eq.s32.totalorder %s42, 3
      %p373 = por %p371, %p372
      %p375 = scmp.ne.s32.totalorder %s360, %s374
      %p376 = scmp.eq.s32.totalorder %s42, 0
      %p377 = por %p375, %p376
      %s379 = sadd.s32 %s378, 1
      %p382 = scmp.eq.s32.totalorder %s36, 3
      %p383 = scmp.ne.s32.totalorder %s378, %s380
      %p384 = scmp.eq.s32.totalorder %s36, 0
      %p385 = por %p383, %p384
      %p386 = scmp.ne.s32.totalorder %s378, %s380
      %p387 = scmp.eq.s32.totalorder %s41, 3
      %p388 = por %p386, %p387
      %p389 = scmp.ne.s32.totalorder %s380, %s381
      %p390 = scmp.eq.s32.totalorder %s41, 0
      %p391 = por %p389, %p390
      %p392 = scmp.ne.s32.totalorder %s380, %s381
      %p393 = scmp.eq.s32.totalorder %s42, 3
      %p394 = por %p392, %p393
      %p396 = scmp.ne.s32.totalorder %s381, %s395
      %p397 = scmp.eq.s32.totalorder %s42, 0
      %p398 = por %p396, %p397
      %s399 = ssub.s32 %s43, %s55
      %p400 = scmp.eq.s32.totalorder %s399, 0
      %s402 = sadd.s32 %s401, 1
      %s403 = scalar_select %p400, %s401, %s402
      %p406 = pneg %p400
      %p407 = scmp.eq.s32.totalorder %s36, 3
      %p408 = por %p406, %p407
      %p409 = scmp.ne.s32.totalorder %s401, %s404
      %p410 = scmp.eq.s32.totalorder %s36, 0
      %p411 = por %p409, %p410
      %p412 = scmp.ne.s32.totalorder %s401, %s404
      %p413 = scmp.eq.s32.totalorder %s41, 3
      %p414 = por %p412, %p413
      %p415 = scmp.ne.s32.totalorder %s404, %s405
      %p416 = scmp.eq.s32.totalorder %s41, 0
      %p417 = por %p415, %p416
      %p418 = scmp.ne.s32.totalorder %s404, %s405
      %p419 = scmp.eq.s32.totalorder %s42, 3
      %p420 = por %p418, %p419
      %p422 = scmp.ne.s32.totalorder %s405, %s421
      %p423 = scmp.eq.s32.totalorder %s42, 0
      %p424 = por %p422, %p423
      %s425 = ssub.s32 %s43, %s55
      %p426 = scmp.eq.s32.totalorder %s425, 0
      %s428 = sadd.s32 %s427, 1
      %s429 = scalar_select %p426, %s427, %s428
      %p432 = pneg %p426
      %p433 = scmp.eq.s32.totalorder %s36, 3
      %p434 = por %p432, %p433
      %p435 = scmp.ne.s32.totalorder %s427, %s430
      %p436 = scmp.eq.s32.totalorder %s36, 0
      %p437 = por %p435, %p436
      %p438 = scmp.ne.s32.totalorder %s427, %s430
      %p439 = scmp.eq.s32.totalorder %s41, 3
      %p440 = por %p438, %p439
      %p441 = scmp.ne.s32.totalorder %s430, %s431
      %p442 = scmp.eq.s32.totalorder %s41, 0
      %p443 = por %p441, %p442
      %p444 = scmp.ne.s32.totalorder %s430, %s431
      %p445 = scmp.eq.s32.totalorder %s42, 3
      %p446 = por %p444, %p445
      %p448 = scmp.ne.s32.totalorder %s431, %s447
      %p449 = scmp.eq.s32.totalorder %s42, 0
      %p450 = por %p448, %p449
      %s451 = ssub.s32 %s43, %s55
      %p452 = scmp.eq.s32.totalorder %s451, 0
      %s454 = sadd.s32 %s453, 1
      %s455 = scalar_select %p452, %s453, %s454
      %p458 = pneg %p452
      %p459 = scmp.eq.s32.totalorder %s36, 3
      %p460 = por %p458, %p459
      %p461 = scmp.ne.s32.totalorder %s453, %s456
      %p462 = scmp.eq.s32.totalorder %s36, 0
      %p463 = por %p461, %p462
      %p464 = scmp.ne.s32.totalorder %s453, %s456
      %p465 = scmp.eq.s32.totalorder %s41, 3
      %p466 = por %p464, %p465
      %p467 = scmp.ne.s32.totalorder %s456, %s457
      %p468 = scmp.eq.s32.totalorder %s41, 0
      %p469 = por %p467, %p468
      %p470 = scmp.ne.s32.totalorder %s456, %s457
      %p471 = scmp.eq.s32.totalorder %s42, 3
      %p472 = por %p470, %p471
      %p474 = scmp.ne.s32.totalorder %s457, %s473
      %p475 = scmp.eq.s32.totalorder %s42, 0
      %p476 = por %p474, %p475
      %p477 = scmp.le.s32.totalorder 1, %s36
      %p478 = scmp.lt.s32.totalorder %s36, 5
      %p479 = pnand %p477, %p478
      %p480 = pneg %p479
      // Predicated region
      $region9: #{tpu_custom_call.1} parent=5 // pred_check
        _
      $region10: #{tpu_custom_call.1} parent=5 // pred_check_branch
        %482 = sbr.rel (%p479) target = $region12
      $region11: #{tpu_custom_call.1} parent=5 // pred_region
        %s483 = ssub.s32 %s36, 1
        // Predicated region
        $region13: #{tpu_custom_call.1} parent=11 // pred_check
          %p484 = pneg %p97
        $region14: #{tpu_custom_call.1} parent=11 // pred_check_branch
          %486 = sbr.rel (%p484) target = $region16
        $region15: #{tpu_custom_call.1} parent=11 // pred_region
          _
        $region16: #{tpu_custom_call.1} parent=11 // pred_fallthru
          _
        // Predicated region
        $region17: #{tpu_custom_call.1} parent=11 // pred_check
          %p487 = pneg %p118
        $region18: #{tpu_custom_call.1} parent=11 // pred_check_branch
          %489 = sbr.rel (%p487) target = $region20
        $region19: #{tpu_custom_call.1} parent=11 // pred_region
          %s491 = ssub.s32 32, 32
          %492 = vsyncadd [#allocation8], %s491
          %s494 = sshll.u32 [#allocation7], 4
          %s495 = int_to_ptr.vmem [resolvable:$true] %s494
          %497 = dma.hbm_to_vmem [thread:$0]  %s2, 32, %s495, [#allocation8]
        $region20: #{tpu_custom_call.1} parent=11 // pred_fallthru
          _
        // Predicated region
        $region21: #{tpu_custom_call.1} parent=11 // pred_check
          %p498 = pneg %p139
        $region22: #{tpu_custom_call.1} parent=11 // pred_check_branch
          %500 = sbr.rel (%p498) target = $region24
        $region23: #{tpu_custom_call.1} parent=11 // pred_region
          %s502 = ssub.s32 256, 256
          %503 = vsyncadd [#allocation8], %s502
          %s504 = sshll.u32 [#allocation9], 4
          %s505 = int_to_ptr.vmem [resolvable:$true] %s504
          %510 = dma.hbm_to_vmem [thread:$0]  %s3, 256, %s505, [#allocation8], 64, 64, 4
        $region24: #{tpu_custom_call.1} parent=11 // pred_fallthru
          _
        // Predicated region
        $region25: #{tpu_custom_call.1} parent=11 // pred_check
          %p511 = pneg %p160
        $region26: #{tpu_custom_call.1} parent=11 // pred_check_branch
          %513 = sbr.rel (%p511) target = $region28
        $region27: #{tpu_custom_call.1} parent=11 // pred_region
          %s515 = ssub.s32 16, 16
          %516 = vsyncadd [#allocation11], %s515
          %s518 = sshll.u32 [#allocation10], 4
          %s519 = int_to_ptr.vmem [resolvable:$true] %s518
          %521 = dma.hbm_to_vmem [thread:$0]  %s4, 16, %s519, [#allocation11]
        $region28: #{tpu_custom_call.1} parent=11 // pred_fallthru
          _
        // Predicated region
        $region29: #{tpu_custom_call.1} parent=11 // pred_check
          %p522 = pneg %p181
        $region30: #{tpu_custom_call.1} parent=11 // pred_check_branch
          %524 = sbr.rel (%p522) target = $region32
        $region31: #{tpu_custom_call.1} parent=11 // pred_region
          %s526 = ssub.s32 1536, 1536
          %527 = vsyncadd [#allocation11], %s526
          %s528 = sshll.u32 [#allocation12], 4
          %s529 = int_to_ptr.vmem [resolvable:$true] %s528
          %534 = dma.hbm_to_vmem [thread:$0]  %s5, 1536, %s529, [#allocation11], 384, 384, 24
        $region32: #{tpu_custom_call.1} parent=11 // pred_fallthru
          _
        // Predicated region
        $region33: #{tpu_custom_call.1} parent=11 // pred_check
          %p535 = pneg %p202
        $region34: #{tpu_custom_call.1} parent=11 // pred_check_branch
          %537 = sbr.rel (%p535) target = $region36
        $region35: #{tpu_custom_call.1} parent=11 // pred_region
          %s539 = ssub.s32 1536, 1536
          %540 = vsyncadd [#allocation14], %s539
          %s541 = sshll.u32 [#allocation13], 4
          %s542 = int_to_ptr.vmem [resolvable:$true] %s541
          %547 = dma.hbm_to_vmem [thread:$0]  %s6, 1536, %s542, [#allocation14], 384, 384, 24
        $region36: #{tpu_custom_call.1} parent=11 // pred_fallthru
          _
        // Predicated region
        $region37: #{tpu_custom_call.1} parent=11 // pred_check
          %p548 = pneg %p223
        $region38: #{tpu_custom_call.1} parent=11 // pred_check_branch
          %550 = sbr.rel (%p548) target = $region40
        $region39: #{tpu_custom_call.1} parent=11 // pred_region
          _
        $region40: #{tpu_custom_call.1} parent=11 // pred_fallthru
          _
        // Predicated region
        $region41: #{tpu_custom_call.1} parent=11 // pred_check
          %p551 = pneg %p244
        $region42: #{tpu_custom_call.1} parent=11 // pred_check_branch
          %553 = sbr.rel (%p551) target = $region44
        $region43: #{tpu_custom_call.1} parent=11 // pred_region
          %s555 = ssub.s32 24576, 24576
          %556 = vsyncadd [#allocation14], %s555
          %s557 = sshll.u32 [#allocation15], 4
          %s558 = int_to_ptr.vmem [resolvable:$true] %s557
          %563 = dma.hbm_to_vmem [thread:$0]  %s8, 24576, %s558, [#allocation14], 256, 256, 16
        $region44: #{tpu_custom_call.1} parent=11 // pred_fallthru
          _
        // Predicated region
        $region45: #{tpu_custom_call.1} parent=11 // pred_check
          %p564 = pneg %p265
        $region46: #{tpu_custom_call.1} parent=11 // pred_check_branch
          %566 = sbr.rel (%p564) target = $region48
        $region47: #{tpu_custom_call.1} parent=11 // pred_region
          %s568 = ssub.s32 64, 64
          %569 = vsyncadd [#allocation17], %s568
          %s571 = sshll.u32 [#allocation16], 4
          %s572 = int_to_ptr.vmem [resolvable:$true] %s571
          %574 = dma.hbm_to_vmem [thread:$0]  %s9, 64, %s572, [#allocation17]
        $region48: #{tpu_custom_call.1} parent=11 // pred_fallthru
          _
        // Predicated region
        $region49: #{tpu_custom_call.1} parent=11 // pred_check
          %p575 = pneg %p286
        $region50: #{tpu_custom_call.1} parent=11 // pred_check_branch
          %577 = sbr.rel (%p575) target = $region52
        $region51: #{tpu_custom_call.1} parent=11 // pred_region
          %s579 = ssub.s32 8192, 8192
          %580 = vsyncadd [#allocation17], %s579
          %s581 = sshll.u32 [#allocation18], 4
          %s582 = int_to_ptr.vmem [resolvable:$true] %s581
          %587 = dma.hbm_to_vmem [thread:$0]  %s10, 8192, %s582, [#allocation17], 128, 128, 8
        $region52: #{tpu_custom_call.1} parent=11 // pred_fallthru
          _
        // Predicated region
        $region53: #{tpu_custom_call.1} parent=11 // pred_check
          %p588 = pneg %p307
        $region54: #{tpu_custom_call.1} parent=11 // pred_check_branch
          %590 = sbr.rel (%p588) target = $region56
        $region55: #{tpu_custom_call.1} parent=11 // pred_region
          %s592 = ssub.s32 32, 32
          %593 = vsyncadd [#allocation20], %s592
          %s595 = sshll.u32 [#allocation19], 4
          %s596 = int_to_ptr.vmem [resolvable:$true] %s595
          %598 = dma.hbm_to_vmem [thread:$0]  %s11, 32, %s596, [#allocation20]
        $region56: #{tpu_custom_call.1} parent=11 // pred_fallthru
          _
        // Predicated region
        $region57: #{tpu_custom_call.1} parent=11 // pred_check
          %p599 = pneg %p328
        $region58: #{tpu_custom_call.1} parent=11 // pred_check_branch
          %601 = sbr.rel (%p599) target = $region60
        $region59: #{tpu_custom_call.1} parent=11 // pred_region
          %s603 = ssub.s32 2048, 2048
          %604 = vsyncadd [#allocation20], %s603
          %s605 = sshll.u32 [#allocation21], 4
          %s606 = int_to_ptr.vmem [resolvable:$true] %s605
          %611 = dma.hbm_to_vmem [thread:$0]  %s12, 2048, %s606, [#allocation20], 64, 64, 4
        $region60: #{tpu_custom_call.1} parent=11 // pred_fallthru
          _
        // Predicated region
        $region61: #{tpu_custom_call.1} parent=11 // pred_check
          %p612 = pneg %p349
        $region62: #{tpu_custom_call.1} parent=11 // pred_check_branch
          %614 = sbr.rel (%p612) target = $region64
        $region63: #{tpu_custom_call.1} parent=11 // pred_region
          %s616 = ssub.s32 16, 16
          %617 = vsyncadd [#allocation23], %s616
          %s619 = sshll.u32 [#allocation22], 4
          %s620 = int_to_ptr.vmem [resolvable:$true] %s619
          %622 = dma.hbm_to_vmem [thread:$0]  %s13, 16, %s620, [#allocation23]
        $region64: #{tpu_custom_call.1} parent=11 // pred_fallthru
          _
        // Predicated region
        $region65: #{tpu_custom_call.1} parent=11 // pred_check
          %p623 = pneg %p370
        $region66: #{tpu_custom_call.1} parent=11 // pred_check_branch
          %625 = sbr.rel (%p623) target = $region68
        $region67: #{tpu_custom_call.1} parent=11 // pred_region
          _
        $region68: #{tpu_custom_call.1} parent=11 // pred_fallthru
          _
        // Predicated region
        $region69: #{tpu_custom_call.1} parent=11 // pred_check
          %p626 = pneg %p391
        $region70: #{tpu_custom_call.1} parent=11 // pred_check_branch
          %628 = sbr.rel (%p626) target = $region72
        $region71: #{tpu_custom_call.1} parent=11 // pred_region
          _
        $region72: #{tpu_custom_call.1} parent=11 // pred_fallthru
          _
      $region12: #{tpu_custom_call.1} parent=5 // pred_fallthru
        _
      %p629 = scmp.lt.s32.totalorder %s36, 4
      // Predicated region
      $region73: #{tpu_custom_call.1} parent=5 // pred_check
        %p630 = pneg %p629
      $region74: #{tpu_custom_call.1} parent=5 // pred_check_branch
        %632 = sbr.rel (%p630) target = $region76
      $region75: #{tpu_custom_call.1} parent=5 // pred_region
        // Predicated region
        $region77: #{tpu_custom_call.1} parent=75 // pred_check
          %p633 = pneg %p70
        $region78: #{tpu_custom_call.1} parent=75 // pred_check_branch
          %635 = sbr.rel (%p633) target = $region80
        $region79: #{tpu_custom_call.1} parent=75 // pred_region
          %s636 = sand.u32 %s60, 1
          %s637 = scalar_lea.sflag [#allocation5], %s636
          %s638 = sand.u32 %s60, 1
          %s639 = smul.addr %s638, 32
          %s640 = scalar_lea.vmem [#allocation4], %s639
          %s641 = smul.u32 8, %s43
          %s643 = ssub.s32 512, 512
          %644 = vsyncadd %s637, %s643
          %s645 = smul.addr %s641, 4
          %s646 = sadd.s32 %s44, %s645
          %s647 = smul.addr %s646, 64
          %s648 = scalar_lea.hbm %s0, %s647
          %s649 = sshll.u32 %s640, 4
          %s650 = int_to_ptr.vmem [resolvable:$true] %s649
          %655 = dma.hbm_to_vmem [thread:$0]  %s648, 512, %s650, %s637, 256, 64, 4
        $region80: #{tpu_custom_call.1} parent=75 // pred_fallthru
          _
      $region76: #{tpu_custom_call.1} parent=5 // pred_fallthru
        _
      %p656 = scmp.le.s32.totalorder 1, %s36
      %p657 = scmp.lt.s32.totalorder %s36, 5
      %p658 = pnand %p656, %p657
      %p659 = pneg %p658
      // Predicated region
      $region81: #{tpu_custom_call.1} parent=5 // pred_check
        _
      $region82: #{tpu_custom_call.1} parent=5 // pred_check_branch
        %661 = sbr.rel (%p658) target = $region84
      $region83: #{tpu_custom_call.1} parent=5 // pred_region
        %s662 = ssub.s32 %s36, 1
        %s663 = sand.u32 %s63, 1
        %s664 = scalar_lea.sflag [#allocation5], %s663
        %s665 = sand.u32 %s63, 1
        %s666 = smul.addr %s665, 32
        %s667 = scalar_lea.vmem [#allocation4], %s666
        // Predicated region
        $region85: #{tpu_custom_call.1} parent=83 // pred_check
          %p668 = pneg %p76
        $region86: #{tpu_custom_call.1} parent=83 // pred_check_branch
          %670 = sbr.rel (%p668) target = $region88
        $region87: #{tpu_custom_call.1} parent=83 // pred_region
          %671 = dma.done %s664, 512
        $region88: #{tpu_custom_call.1} parent=83 // pred_fallthru
          _
        // Predicated region
        $region89: #{tpu_custom_call.1} parent=83 // pred_check
          %p672 = pneg %p118
        $region90: #{tpu_custom_call.1} parent=83 // pred_check_branch
          %674 = sbr.rel (%p672) target = $region92
        $region91: #{tpu_custom_call.1} parent=83 // pred_region
          %675 = dma.done [#allocation8], 32
        $region92: #{tpu_custom_call.1} parent=83 // pred_fallthru
          _
        // Predicated region
        $region93: #{tpu_custom_call.1} parent=83 // pred_check
          %p676 = pneg %p139
        $region94: #{tpu_custom_call.1} parent=83 // pred_check_branch
          %678 = sbr.rel (%p676) target = $region96
        $region95: #{tpu_custom_call.1} parent=83 // pred_region
          %679 = dma.done [#allocation8], 256
        $region96: #{tpu_custom_call.1} parent=83 // pred_fallthru
          _
        // Predicated region
        $region97: #{tpu_custom_call.1} parent=83 // pred_check
          %p680 = pneg %p160
        $region98: #{tpu_custom_call.1} parent=83 // pred_check_branch
          %682 = sbr.rel (%p680) target = $region100
        $region99: #{tpu_custom_call.1} parent=83 // pred_region
          %683 = dma.done [#allocation11], 16
        $region100: #{tpu_custom_call.1} parent=83 // pred_fallthru
          _
        // Predicated region
        $region101: #{tpu_custom_call.1} parent=83 // pred_check
          %p684 = pneg %p181
        $region102: #{tpu_custom_call.1} parent=83 // pred_check_branch
          %686 = sbr.rel (%p684) target = $region104
        $region103: #{tpu_custom_call.1} parent=83 // pred_region
          %687 = dma.done [#allocation11], 1536
        $region104: #{tpu_custom_call.1} parent=83 // pred_fallthru
          _
        // Predicated region
        $region105: #{tpu_custom_call.1} parent=83 // pred_check
          %p688 = pneg %p202
        $region106: #{tpu_custom_call.1} parent=83 // pred_check_branch
          %690 = sbr.rel (%p688) target = $region108
        $region107: #{tpu_custom_call.1} parent=83 // pred_region
          %691 = dma.done [#allocation14], 1536
        $region108: #{tpu_custom_call.1} parent=83 // pred_fallthru
          _
        // Predicated region
        $region109: #{tpu_custom_call.1} parent=83 // pred_check
          %p692 = pneg %p244
        $region110: #{tpu_custom_call.1} parent=83 // pred_check_branch
          %694 = sbr.rel (%p692) target = $region112
        $region111: #{tpu_custom_call.1} parent=83 // pred_region
          %695 = dma.done [#allocation14], 24576
        $region112: #{tpu_custom_call.1} parent=83 // pred_fallthru
          _
        // Predicated region
        $region113: #{tpu_custom_call.1} parent=83 // pred_check
          %p696 = pneg %p265
        $region114: #{tpu_custom_call.1} parent=83 // pred_check_branch
          %698 = sbr.rel (%p696) target = $region116
        $region115: #{tpu_custom_call.1} parent=83 // pred_region
          %699 = dma.done [#allocation17], 64
        $region116: #{tpu_custom_call.1} parent=83 // pred_fallthru
          _
        // Predicated region
        $region117: #{tpu_custom_call.1} parent=83 // pred_check
          %p700 = pneg %p286
        $region118: #{tpu_custom_call.1} parent=83 // pred_check_branch
          %702 = sbr.rel (%p700) target = $region120
        $region119: #{tpu_custom_call.1} parent=83 // pred_region
          %703 = dma.done [#allocation17], 8192
        $region120: #{tpu_custom_call.1} parent=83 // pred_fallthru
          _
        // Predicated region
        $region121: #{tpu_custom_call.1} parent=83 // pred_check
          %p704 = pneg %p307
        $region122: #{tpu_custom_call.1} parent=83 // pred_check_branch
          %706 = sbr.rel (%p704) target = $region124
        $region123: #{tpu_custom_call.1} parent=83 // pred_region
          %707 = dma.done [#allocation20], 32
        $region124: #{tpu_custom_call.1} parent=83 // pred_fallthru
          _
        // Predicated region
        $region125: #{tpu_custom_call.1} parent=83 // pred_check
          %p708 = pneg %p328
        $region126: #{tpu_custom_call.1} parent=83 // pred_check_branch
          %710 = sbr.rel (%p708) target = $region128
        $region127: #{tpu_custom_call.1} parent=83 // pred_region
          %711 = dma.done [#allocation20], 2048
        $region128: #{tpu_custom_call.1} parent=83 // pred_fallthru
          _
        // Predicated region
        $region129: #{tpu_custom_call.1} parent=83 // pred_check
          %p712 = pneg %p349
        $region130: #{tpu_custom_call.1} parent=83 // pred_check_branch
          %714 = sbr.rel (%p712) target = $region132
        $region131: #{tpu_custom_call.1} parent=83 // pred_region
          %715 = dma.done [#allocation23], 16
        $region132: #{tpu_custom_call.1} parent=83 // pred_fallthru
          _
        %s716 = sand.u32 %s63, 1
        %s717 = scalar_lea.sflag [#allocation5], %s716
        %s718 = sand.u32 %s63, 1
        %s719 = smul.addr %s718, 32
        %s720 = scalar_lea.vmem [#allocation4], %s719
        %p721 = pneg %p76
        %p722 = pneg %p73
        %p723 = pneg %p97
        %p724 = pneg %p94
        %p725 = pneg %p118
        %p726 = pneg %p115
        %p727 = pneg %p139
        %p728 = pneg %p136
        %p729 = pneg %p160
        %p730 = pneg %p157
        %p731 = pneg %p181
        %p732 = pneg %p178
        %p733 = pneg %p202
        %p734 = pneg %p199
        %p735 = pneg %p223
        %p736 = pneg %p220
        %p737 = pneg %p244
        %p738 = pneg %p241
        %p739 = pneg %p265
        %p740 = pneg %p262
        %p741 = pneg %p286
        %p742 = pneg %p283
        %p743 = pneg %p307
        %p744 = pneg %p304
        %p745 = pneg %p328
        %p746 = pneg %p325
        %p747 = pneg %p349
        %p748 = pneg %p346
        %p749 = pneg %p370
        %p750 = pneg %p367
        %p751 = pneg %p391
        %p752 = pneg %p388
        %p753 = pneg %p417
        %p754 = pneg %p414
        %p755 = pneg %p443
        %p756 = pneg %p440
        %p757 = pneg %p469
        %p758 = pneg %p466
        %s759 = smul.u32 8, %s45
        %p761 = scmp.eq.s32.totalorder %s46, 0
        // Predicated region
        $region133: #{tpu_custom_call.1} parent=83 // pred_check
          %p762 = pneg %p761
        $region134: #{tpu_custom_call.1} parent=83 // pred_check_branch
          %764 = sbr.rel (%p762) target = $region136
        $region135: #{tpu_custom_call.1} parent=83 // pred_region
          %vm765 = vcmask 261120
          %766 = vst.msk [vmem:[#allocation2] sm:$0xff] %vm765, 0.0
          %767 = vst.msk [vmem:[#allocation3] sm:$0xff] %vm765, 0.0
        $region136: #{tpu_custom_call.1} parent=83 // pred_fallthru
          _
        %v768 = vld [vmem:[%s667] sm:$0xf]
        %v769 = vld [vmem:[%s667 + $0x4] sm:$0xf]
        %v770 = vld [vmem:[%s667 + $0x8] sm:$0xf]
        %v771 = vld [vmem:[%s667 + $0xc] sm:$0xf]
        %v772 = vld [vmem:[%s667 + $0x10] sm:$0xf]
        %v773 = vld [vmem:[%s667 + $0x14] sm:$0xf]
        %v774 = vld [vmem:[%s667 + $0x18] sm:$0xf]
        %v775 = vld [vmem:[%s667 + $0x1c] sm:$0xf]
        %v776 = vunpack.c.l.bf16 %v768
        %v777 = vunpack.c.l.bf16 %v769
        %v778 = vunpack.c.l.bf16 %v770
        %v779 = vunpack.c.l.bf16 %v771
        %v780 = vunpack.c.l.bf16 %v772
        %v781 = vunpack.c.l.bf16 %v773
        %v782 = vunpack.c.l.bf16 %v774
        %v783 = vunpack.c.l.bf16 %v775
        %v784 = vld [vmem:[#allocation2] sm:$0xff]
        %vm785 = vcmask 261120
        %v786 = vsel %vm785, %v776, 0.0
        %v787 = vrot.slane %v786, 4
        %v788 = vadd.f32 %v786, %v787
        %v789 = vrot.slane %v788, 2
        %v790 = vadd.f32 %v788, %v789
        %v791 = vrot.slane %v790, 1
        %v792 = vadd.f32 %v790, %v791
        %v793 = vsel %vm785, %v777, 0.0
        %v794 = vrot.slane %v793, 4
        %v795 = vadd.f32 %v793, %v794
        %v796 = vrot.slane %v795, 2
        %v797 = vadd.f32 %v795, %v796
        %v798 = vrot.slane %v797, 1
        %v799 = vadd.f32 %v797, %v798
        %v800 = vsel %vm785, %v778, 0.0
        %v801 = vrot.slane %v800, 4
        %v802 = vadd.f32 %v800, %v801
        %v803 = vrot.slane %v802, 2
        %v804 = vadd.f32 %v802, %v803
        %v805 = vrot.slane %v804, 1
        %v806 = vadd.f32 %v804, %v805
        %v807 = vsel %vm785, %v779, 0.0
        %v808 = vrot.slane %v807, 4
        %v809 = vadd.f32 %v807, %v808
        %v810 = vrot.slane %v809, 2
        %v811 = vadd.f32 %v809, %v810
        %v812 = vrot.slane %v811, 1
        %v813 = vadd.f32 %v811, %v812
        %v814 = vsel %vm785, %v780, 0.0
        %v815 = vrot.slane %v814, 4
        %v816 = vadd.f32 %v814, %v815
        %v817 = vrot.slane %v816, 2
        %v818 = vadd.f32 %v816, %v817
        %v819 = vrot.slane %v818, 1
        %v820 = vadd.f32 %v818, %v819
        %v821 = vsel %vm785, %v781, 0.0
        %v822 = vrot.slane %v821, 4
        %v823 = vadd.f32 %v821, %v822
        %v824 = vrot.slane %v823, 2
        %v825 = vadd.f32 %v823, %v824
        %v826 = vrot.slane %v825, 1
        %v827 = vadd.f32 %v825, %v826
        %v828 = vsel %vm785, %v782, 0.0
        %v829 = vrot.slane %v828, 4
        %v830 = vadd.f32 %v828, %v829
        %v831 = vrot.slane %v830, 2
        %v832 = vadd.f32 %v830, %v831
        %v833 = vrot.slane %v832, 1
        %v834 = vadd.f32 %v832, %v833
        %v835 = vsel %vm785, %v783, 0.0
        %v836 = vrot.slane %v835, 4
        %v837 = vadd.f32 %v835, %v836
        %v838 = vrot.slane %v837, 2
        %v839 = vadd.f32 %v837, %v838
        %v840 = vrot.slane %v839, 1
        %v841 = vadd.f32 %v839, %v840
        %vm850 = vcmask 1041409
        %v851 = vsel %vm850, %v799, %v792
        %vm852 = vcmask 1042434
        %v853 = vsel %vm852, %v806, %v851
        %vm854 = vcmask 1043459
        %v855 = vsel %vm854, %v813, %v853
        %vm856 = vcmask 1044484
        %v857 = vsel %vm856, %v820, %v855
        %vm858 = vcmask 1045509
        %v859 = vsel %vm858, %v827, %v857
        %vm860 = vcmask 1046534
        %v861 = vsel %vm860, %v834, %v859
        %vm862 = vcmask 1047559
        %v863 = vsel %vm862, %v841, %v861
        %v865 = vadd.f32 %v784, %v863
        %866 = vst.msk [vmem:[#allocation2] sm:$0xff] %vm785, %v865
        %v867 = vld [vmem:[#allocation3] sm:$0xff]
        %v868 = vmul.f32 %v776, %v776
        %v869 = vmul.f32 %v777, %v777
        %v870 = vmul.f32 %v778, %v778
        %v871 = vmul.f32 %v779, %v779
        %v872 = vmul.f32 %v780, %v780
        %v873 = vmul.f32 %v781, %v781
        %v874 = vmul.f32 %v782, %v782
        %v875 = vmul.f32 %v783, %v783
        %v876 = vsel %vm785, %v868, 0.0
        %v877 = vrot.slane %v876, 4
        %v878 = vadd.f32 %v876, %v877
        %v879 = vrot.slane %v878, 2
        %v880 = vadd.f32 %v878, %v879
        %v881 = vrot.slane %v880, 1
        %v882 = vadd.f32 %v880, %v881
        %v883 = vsel %vm785, %v869, 0.0
        %v884 = vrot.slane %v883, 4
        %v885 = vadd.f32 %v883, %v884
        %v886 = vrot.slane %v885, 2
        %v887 = vadd.f32 %v885, %v886
        %v888 = vrot.slane %v887, 1
        %v889 = vadd.f32 %v887, %v888
        %v890 = vsel %vm785, %v870, 0.0
        %v891 = vrot.slane %v890, 4
        %v892 = vadd.f32 %v890, %v891
        %v893 = vrot.slane %v892, 2
        %v894 = vadd.f32 %v892, %v893
        %v895 = vrot.slane %v894, 1
        %v896 = vadd.f32 %v894, %v895
        %v897 = vsel %vm785, %v871, 0.0
        %v898 = vrot.slane %v897, 4
        %v899 = vadd.f32 %v897, %v898
        %v900 = vrot.slane %v899, 2
        %v901 = vadd.f32 %v899, %v900
        %v902 = vrot.slane %v901, 1
        %v903 = vadd.f32 %v901, %v902
        %v904 = vsel %vm785, %v872, 0.0
        %v905 = vrot.slane %v904, 4
        %v906 = vadd.f32 %v904, %v905
        %v907 = vrot.slane %v906, 2
        %v908 = vadd.f32 %v906, %v907
        %v909 = vrot.slane %v908, 1
        %v910 = vadd.f32 %v908, %v909
        %v911 = vsel %vm785, %v873, 0.0
        %v912 = vrot.slane %v911, 4
        %v913 = vadd.f32 %v911, %v912
        %v914 = vrot.slane %v913, 2
        %v915 = vadd.f32 %v913, %v914
        %v916 = vrot.slane %v915, 1
        %v917 = vadd.f32 %v915, %v916
        %v918 = vsel %vm785, %v874, 0.0
        %v919 = vrot.slane %v918, 4
        %v920 = vadd.f32 %v918, %v919
        %v921 = vrot.slane %v920, 2
        %v922 = vadd.f32 %v920, %v921
        %v923 = vrot.slane %v922, 1
        %v924 = vadd.f32 %v922, %v923
        %v925 = vsel %vm785, %v875, 0.0
        %v926 = vrot.slane %v925, 4
        %v927 = vadd.f32 %v925, %v926
        %v928 = vrot.slane %v927, 2
        %v929 = vadd.f32 %v927, %v928
        %v930 = vrot.slane %v929, 1
        %v931 = vadd.f32 %v929, %v930
        %v940 = vsel %vm850, %v889, %v882
        %v941 = vsel %vm852, %v896, %v940
        %v942 = vsel %vm854, %v903, %v941
        %v943 = vsel %vm856, %v910, %v942
        %v944 = vsel %vm858, %v917, %v943
        %v945 = vsel %vm860, %v924, %v944
        %v946 = vsel %vm862, %v931, %v945
        %v948 = vadd.f32 %v867, %v946
        %949 = vst.msk [vmem:[#allocation3] sm:$0xff] %vm785, %v948
        %p950 = scmp.eq.s32.totalorder %s46, 3
        // Predicated region
        $region137: #{tpu_custom_call.1} parent=83 // pred_check
          %p951 = pneg %p950
        $region138: #{tpu_custom_call.1} parent=83 // pred_check_branch
          %953 = sbr.rel (%p951) target = $region140
        $region139: #{tpu_custom_call.1} parent=83 // pred_region
          %v954 = vld [vmem:[#allocation2] sm:$0xff]
          %v955 = vmul.f32 %v954, 0.03125
          %v956 = vld [vmem:[#allocation3] sm:$0xff]
          %v957 = vmul.f32 %v956, 0.03125
          %v958 = vmul.f32 %v955, %v955
          %v959 = vsub.f32 %v957, %v958
          %v960 = vmax.f32 %v959, 0.0
          %v961 = vrsqrt.pop %v960
          %v962 = vmul.f32 %v960, %v961
          %vm963 = vcmp.eq.f32.partialorder %v960, inf
          %v964 = vsel %vm963, %v960, %v962
          %vm965 = vcmp.eq.f32.partialorder %v960, 0.0
          %v966 = vand.u32 %v960, 2147483648
          %v967 = vsel %vm965, %v966, %v964
          %v968 = vpack.c.bf16 %v955, %v955
          %v969 = vld [vmem:[%s1] sm:$0xf]
          %v970 = vld [vmem:[%s1 + $0x4] sm:$0xf]
          %v971 = vld [vmem:[%s1 + $0x8] sm:$0xf]
          %v972 = vld [vmem:[%s1 + $0xc] sm:$0xf]
          %v977 = vunpack.c.l.b16 %v969
          %v978 = vunpack.c.l.b16 %v970
          %v979 = vunpack.c.l.b16 %v971
          %v980 = vunpack.c.l.b16 %v972
          %v981 = vpack.c.b16 %v978, %v977
          %v982 = vpack.c.b16 %v980, %v979
          %v986 = vsel %vm785, %v968, 0
          %988 = vmatprep.subr.bf16.mxu0 0
          %989 = vmatpush1.bf16.msra.mxu0 %v981
          %990 = vmatprep.subr.bf16.mxu0 0
          %991 = vmatpush1.bf16.msra.mxu0 %v982
          %992 = vmatprep.subr.bf16.mxu0 0
          %993 = vmatpush1.bf16.msra.mxu0 0
          %994 = vmatprep.subr.bf16.mxu0 0
          %995 = vmatpush1.bf16.msra.mxu0 0
          %996 = vmatprep.subr.bf16.mxu0 0
          %997 = vmatpush1.bf16.msra.mxu0 0
          %998 = vmatprep.subr.bf16.mxu0 0
          %999 = vmatpush1.bf16.msra.mxu0 0
          %1000 = vmatprep.subr.bf16.mxu0 0
          %1001 = vmatpush1.bf16.msra.mxu0 0
          %1002 = vmatprep.subr.bf16.mxu0 0
          %1003 = vmatpush1.bf16.msra.mxu0 0
          %1004 = vmatprep.subr.bf16.mxu0 0
          %1005 = vmatpush1.bf16.msra.mxu0 0
          %1006 = vmatprep.subr.bf16.mxu0 0
          %1007 = vmatpush1.bf16.msra.mxu0 0
          %1008 = vmatprep.subr.bf16.mxu0 0
          %1009 = vmatpush1.bf16.msra.mxu0 0
          %1010 = vmatprep.subr.bf16.mxu0 0
          %1011 = vmatpush1.bf16.msra.mxu0 0
          %1012 = vmatprep.subr.bf16.mxu0 0
          %1013 = vmatpush1.bf16.msra.mxu0 0
          %1014 = vmatprep.subr.bf16.mxu0 0
          %1015 = vmatpush1.bf16.msra.mxu0 0
          %1016 = vmatprep.subr.bf16.mxu0 0
          %1017 = vmatpush1.bf16.msra.mxu0 0
          %1018 = vmatprep.subr.bf16.mxu0 0
          %1019 = vmatpush1.bf16.msra.mxu0 0
          %1020 = vmatprep.mubr.bf16.mxu0 0
          %1021 = vmatmul.mubr.bf16.gmra.mrb[0].mxu0 %v986
          %v1022 = vpop.f32.mrb[0].mxu0
          %v1023 = vadd.f32 0.0, %v1022
          %v1024 = vpop.f32.mrb[0].mxu0
          %v1025 = vpop.f32.mrb[0].mxu0
          %v1026 = vpop.f32.mrb[0].mxu0
          %1027 = vdwg.mxu0
          %v1028 = vpack.c.bf16 %v1023, %v1023
          %v1029 = vld [vmem:[#allocation7] sm:$0x3]
          %vm1030 = vcmask 31744
          %v1032 = vsel %vm1030, %v1028, 0
          %vm1034 = vcmask 1041408
          %v1036 = vsel %vm1034, %v1029, 0
          %1038 = vmatprep.subr.bf16.mxu0 0
          %1039 = vmatpush1.bf16.msra.mxu0 %v1036
          %1040 = vmatprep.subr.bf16.mxu0 0
          %1041 = vmatpush1.bf16.msra.mxu0 0
          %1042 = vmatprep.subr.bf16.mxu0 0
          %1043 = vmatpush1.bf16.msra.mxu0 0
          %1044 = vmatprep.subr.bf16.mxu0 0
          %1045 = vmatpush1.bf16.msra.mxu0 0
          %1046 = vmatprep.subr.bf16.mxu0 0
          %1047 = vmatpush1.bf16.msra.mxu0 0
          %1048 = vmatprep.subr.bf16.mxu0 0
          %1049 = vmatpush1.bf16.msra.mxu0 0
          %1050 = vmatprep.subr.bf16.mxu0 0
          %1051 = vmatpush1.bf16.msra.mxu0 0
          %1052 = vmatprep.subr.bf16.mxu0 0
          %1053 = vmatpush1.bf16.msra.mxu0 0
          %1054 = vmatprep.subr.bf16.mxu0 0
          %1055 = vmatpush1.bf16.msra.mxu0 0
          %1056 = vmatprep.subr.bf16.mxu0 0
          %1057 = vmatpush1.bf16.msra.mxu0 0
          %1058 = vmatprep.subr.bf16.mxu0 0
          %1059 = vmatpush1.bf16.msra.mxu0 0
          %1060 = vmatprep.subr.bf16.mxu0 0
          %1061 = vmatpush1.bf16.msra.mxu0 0
          %1062 = vmatprep.subr.bf16.mxu0 0
          %1063 = vmatpush1.bf16.msra.mxu0 0
          %1064 = vmatprep.subr.bf16.mxu0 0
          %1065 = vmatpush1.bf16.msra.mxu0 0
          %1066 = vmatprep.subr.bf16.mxu0 0
          %1067 = vmatpush1.bf16.msra.mxu0 0
          %1068 = vmatprep.subr.bf16.mxu0 0
          %1069 = vmatpush1.bf16.msra.mxu0 0
          %1070 = vmatprep.mubr.bf16.mxu0 0
          %1071 = vmatmul.mubr.bf16.gmra.mrb[0].mxu0 %v1032
          %v1072 = vpop.f32.mrb[0].mxu0
          %v1073 = vadd.f32 0.0, %v1072
          %v1074 = vpop.f32.mrb[0].mxu0
          %v1075 = vpop.f32.mrb[0].mxu0
          %v1076 = vpop.f32.mrb[0].mxu0
          %1077 = vdwg.mxu0
          %v1078 = vsub.f32 %v955, %v1073
          %1079 = vst.msk [vmem:[#allocation27] sm:$0xff] %vm785, %v1078
          %v1080 = vpack.c.bf16 %v1078, %v1078
          %v1081 = vld [vmem:[#allocation9] sm:$0xf]
          %v1082 = vld [vmem:[#allocation9 + $0x4] sm:$0xf]
          %v1083 = vld [vmem:[#allocation9 + $0x8] sm:$0xf]
          %v1084 = vld [vmem:[#allocation9 + $0xc] sm:$0xf]
          %v1085 = vld [vmem:[#allocation10] sm:$0x1]
          %v1087 = vlaneseq
          %v1088 = vshrl.u32 %v1087, 7
          %v1089 = vsub.s32 0, %v1088
          %v1090 = vrot.slane %v1085, %v1089
          %v1096 = vunpack.c.l.b16 %v1081
          %v1097 = vunpack.c.l.b16 %v1082
          %v1098 = vunpack.c.l.b16 %v1083
          %v1099 = vunpack.c.l.b16 %v1084
          %v1100 = vpack.c.b16 %v1097, %v1096
          %v1101 = vpack.c.b16 %v1099, %v1098
          %v1105 = vsel %vm785, %v1080, 0
          %1107 = vmatprep.subr.bf16.mxu0 0
          %1108 = vmatpush1.bf16.msra.mxu0 %v1100
          %1109 = vmatprep.subr.bf16.mxu0 0
          %1110 = vmatpush1.bf16.msra.mxu0 %v1101
          %1111 = vmatprep.subr.bf16.mxu0 0
          %1112 = vmatpush1.bf16.msra.mxu0 0
          %1113 = vmatprep.subr.bf16.mxu0 0
          %1114 = vmatpush1.bf16.msra.mxu0 0
          %1115 = vmatprep.subr.bf16.mxu0 0
          %1116 = vmatpush1.bf16.msra.mxu0 0
          %1117 = vmatprep.subr.bf16.mxu0 0
          %1118 = vmatpush1.bf16.msra.mxu0 0
          %1119 = vmatprep.subr.bf16.mxu0 0
          %1120 = vmatpush1.bf16.msra.mxu0 0
          %1121 = vmatprep.subr.bf16.mxu0 0
          %1122 = vmatpush1.bf16.msra.mxu0 0
          %1123 = vmatprep.subr.bf16.mxu0 0
          %1124 = vmatpush1.bf16.msra.mxu0 0
          %1125 = vmatprep.subr.bf16.mxu0 0
          %1126 = vmatpush1.bf16.msra.mxu0 0
          %1127 = vmatprep.subr.bf16.mxu0 0
          %1128 = vmatpush1.bf16.msra.mxu0 0
          %1129 = vmatprep.subr.bf16.mxu0 0
          %1130 = vmatpush1.bf16.msra.mxu0 0
          %1131 = vmatprep.subr.bf16.mxu0 0
          %1132 = vmatpush1.bf16.msra.mxu0 0
          %1133 = vmatprep.subr.bf16.mxu0 0
          %1134 = vmatpush1.bf16.msra.mxu0 0
          %1135 = vmatprep.subr.bf16.mxu0 0
          %1136 = vmatpush1.bf16.msra.mxu0 0
          %1137 = vmatprep.subr.bf16.mxu0 0
          %1138 = vmatpush1.bf16.msra.mxu0 0
          %1139 = vmatprep.mubr.bf16.mxu0 0
          %1140 = vmatmul.mubr.bf16.gmra.mrb[0].mxu0 %v1105
          %v1141 = vpop.f32.mrb[0].mxu0
          %v1142 = vadd.f32 %v1090, %v1141
          %v1143 = vpop.f32.mrb[0].mxu0
          %v1144 = vpop.f32.mrb[0].mxu0
          %v1145 = vpop.f32.mrb[0].mxu0
          %1146 = vdwg.mxu0
          %1147 = vst [vmem:[#allocation24] sm:$0xff] %v1142
          %v1148 = vld [vmem:[#allocation12] sm:$0xff]
          %v1149 = vld [vmem:[#allocation12 + $0x8] sm:$0xff]
          %v1150 = vld [vmem:[#allocation12 + $0x10] sm:$0xff]
          %v1151 = vld [vmem:[#allocation12 + $0x18] sm:$0xff]
          %v1152 = vld [vmem:[#allocation12 + $0x20] sm:$0xff]
          %v1153 = vld [vmem:[#allocation12 + $0x28] sm:$0xff]
          %v1154 = vld [vmem:[#allocation12 + $0x30] sm:$0xff]
          %v1155 = vld [vmem:[#allocation12 + $0x38] sm:$0xff]
          %v1156 = vld [vmem:[#allocation12 + $0x40] sm:$0xff]
          %v1157 = vld [vmem:[#allocation12 + $0x48] sm:$0xff]
          %v1158 = vld [vmem:[#allocation12 + $0x50] sm:$0xff]
          %v1159 = vld [vmem:[#allocation12 + $0x58] sm:$0xff]
          %v1160 = vpack.c.bf16 %v967, %v967
          %v1161 = vld [vmem:[#allocation13] sm:$0xff]
          %v1162 = vld [vmem:[#allocation13 + $0x8] sm:$0xff]
          %v1163 = vld [vmem:[#allocation13 + $0x10] sm:$0xff]
          %v1164 = vld [vmem:[#allocation13 + $0x18] sm:$0xff]
          %v1165 = vld [vmem:[#allocation13 + $0x20] sm:$0xff]
          %v1166 = vld [vmem:[#allocation13 + $0x28] sm:$0xff]
          %v1167 = vld [vmem:[#allocation13 + $0x30] sm:$0xff]
          %v1168 = vld [vmem:[#allocation13 + $0x38] sm:$0xff]
          %v1169 = vld [vmem:[#allocation13 + $0x40] sm:$0xff]
          %v1170 = vld [vmem:[#allocation13 + $0x48] sm:$0xff]
          %v1171 = vld [vmem:[#allocation13 + $0x50] sm:$0xff]
          %v1172 = vld [vmem:[#allocation13 + $0x58] sm:$0xff]
          %v1185 = vunpack.c.l.b16 %v1161
          %v1186 = vunpack.c.h.b16 %v1161
          %v1187 = vunpack.c.l.b16 %v1162
          %v1188 = vunpack.c.h.b16 %v1162
          %v1189 = vunpack.c.l.b16 %v1163
          %v1190 = vunpack.c.h.b16 %v1163
          %v1191 = vunpack.c.l.b16 %v1164
          %v1192 = vunpack.c.h.b16 %v1164
          %v1193 = vunpack.c.l.b16 %v1165
          %v1194 = vunpack.c.h.b16 %v1165
          %v1195 = vunpack.c.l.b16 %v1166
          %v1196 = vunpack.c.h.b16 %v1166
          %v1197 = vunpack.c.l.b16 %v1167
          %v1198 = vunpack.c.h.b16 %v1167
          %v1199 = vunpack.c.l.b16 %v1168
          %v1200 = vunpack.c.h.b16 %v1168
          %v1201 = vunpack.c.l.b16 %v1169
          %v1202 = vunpack.c.h.b16 %v1169
          %v1203 = vunpack.c.l.b16 %v1170
          %v1204 = vunpack.c.h.b16 %v1170
          %v1205 = vunpack.c.l.b16 %v1171
          %v1206 = vunpack.c.h.b16 %v1171
          %v1207 = vunpack.c.l.b16 %v1172
          %v1208 = vunpack.c.h.b16 %v1172
          %v1209 = vpack.c.b16 %v1191, %v1185
          %v1210 = vpack.c.b16 %v1192, %v1186
          %v1211 = vpack.c.b16 %v1193, %v1187
          %v1212 = vpack.c.b16 %v1194, %v1188
          %v1213 = vpack.c.b16 %v1195, %v1189
          %v1214 = vpack.c.b16 %v1196, %v1190
          %v1215 = vpack.c.b16 %v1203, %v1197
          %v1216 = vpack.c.b16 %v1204, %v1198
          %v1217 = vpack.c.b16 %v1205, %v1199
          %v1218 = vpack.c.b16 %v1206, %v1200
          %v1219 = vpack.c.b16 %v1207, %v1201
          %v1220 = vpack.c.b16 %v1208, %v1202
          %v1234 = vsel %vm785, %v1160, 0
          %1236 = vmatprep.subr.bf16.mxu0 %v1210
          %1237 = vmatpush1.bf16.msra.mxu0 %v1209
          %1238 = vmatprep.subr.bf16.mxu0 %v1216
          %1239 = vmatpush1.bf16.msra.mxu0 %v1215
          %1240 = vmatprep.subr.bf16.mxu0 0
          %1241 = vmatpush1.bf16.msra.mxu0 0
          %1242 = vmatprep.subr.bf16.mxu0 0
          %1243 = vmatpush1.bf16.msra.mxu0 0
          %1244 = vmatprep.subr.bf16.mxu0 0
          %1245 = vmatpush1.bf16.msra.mxu0 0
          %1246 = vmatprep.subr.bf16.mxu0 0
          %1247 = vmatpush1.bf16.msra.mxu0 0
          %1248 = vmatprep.subr.bf16.mxu0 0
          %1249 = vmatpush1.bf16.msra.mxu0 0
          %1250 = vmatprep.subr.bf16.mxu0 0
          %1251 = vmatpush1.bf16.msra.mxu0 0
          %1252 = vmatprep.subr.bf16.mxu0 0
          %1253 = vmatpush1.bf16.msra.mxu0 0
          %1254 = vmatprep.subr.bf16.mxu0 0
          %1255 = vmatpush1.bf16.msra.mxu0 0
          %1256 = vmatprep.subr.bf16.mxu0 0
          %1257 = vmatpush1.bf16.msra.mxu0 0
          %1258 = vmatprep.subr.bf16.mxu0 0
          %1259 = vmatpush1.bf16.msra.mxu0 0
          %1260 = vmatprep.subr.bf16.mxu0 0
          %1261 = vmatpush1.bf16.msra.mxu0 0
          %1262 = vmatprep.subr.bf16.mxu0 0
          %1263 = vmatpush1.bf16.msra.mxu0 0
          %1264 = vmatprep.subr.bf16.mxu0 0
          %1265 = vmatpush1.bf16.msra.mxu0 0
          %1266 = vmatprep.subr.bf16.mxu0 0
          %1267 = vmatpush1.bf16.msra.mxu0 0
          %1268 = vmatprep.mubr.bf16.mxu0 0
          %1269 = vmatmul.mubr.bf16.gmra.mrb[0].mxu0 %v1234
          %v1270 = vpop.f32.mrb[0].mxu0
          %v1271 = vadd.f32 0.0, %v1270
          %v1272 = vpop.f32.mrb[0].mxu0
          %v1273 = vadd.f32 0.0, %v1272
          %v1274 = vpop.f32.mrb[0].mxu0
          %v1275 = vpop.f32.mrb[0].mxu0
          %1276 = vdwg.mxu0
          %1277 = vmatprep.subr.bf16.mxu0 %v1212
          %1278 = vmatpush1.bf16.msra.mxu0 %v1211
          %1279 = vmatprep.subr.bf16.mxu0 %v1218
          %1280 = vmatpush1.bf16.msra.mxu0 %v1217
          %1281 = vmatprep.subr.bf16.mxu0 0
          %1282 = vmatpush1.bf16.msra.mxu0 0
          %1283 = vmatprep.subr.bf16.mxu0 0
          %1284 = vmatpush1.bf16.msra.mxu0 0
          %1285 = vmatprep.subr.bf16.mxu0 0
          %1286 = vmatpush1.bf16.msra.mxu0 0
          %1287 = vmatprep.subr.bf16.mxu0 0
          %1288 = vmatpush1.bf16.msra.mxu0 0
          %1289 = vmatprep.subr.bf16.mxu0 0
          %1290 = vmatpush1.bf16.msra.mxu0 0
          %1291 = vmatprep.subr.bf16.mxu0 0
          %1292 = vmatpush1.bf16.msra.mxu0 0
          %1293 = vmatprep.subr.bf16.mxu0 0
          %1294 = vmatpush1.bf16.msra.mxu0 0
          %1295 = vmatprep.subr.bf16.mxu0 0
          %1296 = vmatpush1.bf16.msra.mxu0 0
          %1297 = vmatprep.subr.bf16.mxu0 0
          %1298 = vmatpush1.bf16.msra.mxu0 0
          %1299 = vmatprep.subr.bf16.mxu0 0
          %1300 = vmatpush1.bf16.msra.mxu0 0
          %1301 = vmatprep.subr.bf16.mxu0 0
          %1302 = vmatpush1.bf16.msra.mxu0 0
          %1303 = vmatprep.subr.bf16.mxu0 0
          %1304 = vmatpush1.bf16.msra.mxu0 0
          %1305 = vmatprep.subr.bf16.mxu0 0
          %1306 = vmatpush1.bf16.msra.mxu0 0
          %1307 = vmatprep.subr.bf16.mxu0 0
          %1308 = vmatpush1.bf16.msra.mxu0 0
          %1309 = vmatprep.mubr.bf16.mxu0 0
          %1310 = vmatmul.mubr.bf16.gmra.mrb[0].mxu0 %v1234
          %v1311 = vpop.f32.mrb[0].mxu0
          %v1312 = vadd.f32 0.0, %v1311
          %v1313 = vpop.f32.mrb[0].mxu0
          %v1314 = vadd.f32 0.0, %v1313
          %v1315 = vpop.f32.mrb[0].mxu0
          %v1316 = vpop.f32.mrb[0].mxu0
          %1317 = vdwg.mxu0
          %1318 = vmatprep.subr.bf16.mxu0 %v1214
          %1319 = vmatpush1.bf16.msra.mxu0 %v1213
          %1320 = vmatprep.subr.bf16.mxu0 %v1220
          %1321 = vmatpush1.bf16.msra.mxu0 %v1219
          %1322 = vmatprep.subr.bf16.mxu0 0
          %1323 = vmatpush1.bf16.msra.mxu0 0
          %1324 = vmatprep.subr.bf16.mxu0 0
          %1325 = vmatpush1.bf16.msra.mxu0 0
          %1326 = vmatprep.subr.bf16.mxu0 0
          %1327 = vmatpush1.bf16.msra.mxu0 0
          %1328 = vmatprep.subr.bf16.mxu0 0
          %1329 = vmatpush1.bf16.msra.mxu0 0
          %1330 = vmatprep.subr.bf16.mxu0 0
          %1331 = vmatpush1.bf16.msra.mxu0 0
          %1332 = vmatprep.subr.bf16.mxu0 0
          %1333 = vmatpush1.bf16.msra.mxu0 0
          %1334 = vmatprep.subr.bf16.mxu0 0
          %1335 = vmatpush1.bf16.msra.mxu0 0
          %1336 = vmatprep.subr.bf16.mxu0 0
          %1337 = vmatpush1.bf16.msra.mxu0 0
          %1338 = vmatprep.subr.bf16.mxu0 0
          %1339 = vmatpush1.bf16.msra.mxu0 0
          %1340 = vmatprep.subr.bf16.mxu0 0
          %1341 = vmatpush1.bf16.msra.mxu0 0
          %1342 = vmatprep.subr.bf16.mxu0 0
          %1343 = vmatpush1.bf16.msra.mxu0 0
          %1344 = vmatprep.subr.bf16.mxu0 0
          %1345 = vmatpush1.bf16.msra.mxu0 0
          %1346 = vmatprep.subr.bf16.mxu0 0
          %1347 = vmatpush1.bf16.msra.mxu0 0
          %1348 = vmatprep.subr.bf16.mxu0 0
          %1349 = vmatpush1.bf16.msra.mxu0 0
          %1350 = vmatprep.mubr.bf16.mxu0 0
          %1351 = vmatmul.mubr.bf16.gmra.mrb[0].mxu0 %v1234
          %v1352 = vpop.f32.mrb[0].mxu0
          %v1353 = vadd.f32 0.0, %v1352
          %v1354 = vpop.f32.mrb[0].mxu0
          %v1355 = vadd.f32 0.0, %v1354
          %v1356 = vpop.f32.mrb[0].mxu0
          %v1357 = vpop.f32.mrb[0].mxu0
          %1358 = vdwg.mxu0
          %v1371 = vunpack.c.l.b16 %v1148
          %v1372 = vunpack.c.h.b16 %v1148
          %v1373 = vunpack.c.l.b16 %v1149
          %v1374 = vunpack.c.h.b16 %v1149
          %v1375 = vunpack.c.l.b16 %v1150
          %v1376 = vunpack.c.h.b16 %v1150
          %v1377 = vunpack.c.l.b16 %v1151
          %v1378 = vunpack.c.h.b16 %v1151
          %v1379 = vunpack.c.l.b16 %v1152
          %v1380 = vunpack.c.h.b16 %v1152
          %v1381 = vunpack.c.l.b16 %v1153
          %v1382 = vunpack.c.h.b16 %v1153
          %v1383 = vunpack.c.l.b16 %v1154
          %v1384 = vunpack.c.h.b16 %v1154
          %v1385 = vunpack.c.l.b16 %v1155
          %v1386 = vunpack.c.h.b16 %v1155
          %v1387 = vunpack.c.l.b16 %v1156
          %v1388 = vunpack.c.h.b16 %v1156
          %v1389 = vunpack.c.l.b16 %v1157
          %v1390 = vunpack.c.h.b16 %v1157
          %v1391 = vunpack.c.l.b16 %v1158
          %v1392 = vunpack.c.h.b16 %v1158
          %v1393 = vunpack.c.l.b16 %v1159
          %v1394 = vunpack.c.h.b16 %v1159
          %v1395 = vpack.c.b16 %v1377, %v1371
          %v1396 = vpack.c.b16 %v1378, %v1372
          %v1397 = vpack.c.b16 %v1379, %v1373
          %v1398 = vpack.c.b16 %v1380, %v1374
          %v1399 = vpack.c.b16 %v1381, %v1375
          %v1400 = vpack.c.b16 %v1382, %v1376
          %v1401 = vpack.c.b16 %v1389, %v1383
          %v1402 = vpack.c.b16 %v1390, %v1384
          %v1403 = vpack.c.b16 %v1391, %v1385
          %v1404 = vpack.c.b16 %v1392, %v1386
          %v1405 = vpack.c.b16 %v1393, %v1387
          %v1406 = vpack.c.b16 %v1394, %v1388
          %1419 = vmatprep.subr.bf16.mxu0 %v1396
          %1420 = vmatpush1.bf16.msra.mxu0 %v1395
          %1421 = vmatprep.subr.bf16.mxu0 %v1402
          %1422 = vmatpush1.bf16.msra.mxu0 %v1401
          %1423 = vmatprep.subr.bf16.mxu0 0
          %1424 = vmatpush1.bf16.msra.mxu0 0
          %1425 = vmatprep.subr.bf16.mxu0 0
          %1426 = vmatpush1.bf16.msra.mxu0 0
          %1427 = vmatprep.subr.bf16.mxu0 0
          %1428 = vmatpush1.bf16.msra.mxu0 0
          %1429 = vmatprep.subr.bf16.mxu0 0
          %1430 = vmatpush1.bf16.msra.mxu0 0
          %1431 = vmatprep.subr.bf16.mxu0 0
          %1432 = vmatpush1.bf16.msra.mxu0 0
          %1433 = vmatprep.subr.bf16.mxu0 0
          %1434 = vmatpush1.bf16.msra.mxu0 0
          %1435 = vmatprep.subr.bf16.mxu0 0
          %1436 = vmatpush1.bf16.msra.mxu0 0
          %1437 = vmatprep.subr.bf16.mxu0 0
          %1438 = vmatpush1.bf16.msra.mxu0 0
          %1439 = vmatprep.subr.bf16.mxu0 0
          %1440 = vmatpush1.bf16.msra.mxu0 0
          %1441 = vmatprep.subr.bf16.mxu0 0
          %1442 = vmatpush1.bf16.msra.mxu0 0
          %1443 = vmatprep.subr.bf16.mxu0 0
          %1444 = vmatpush1.bf16.msra.mxu0 0
          %1445 = vmatprep.subr.bf16.mxu0 0
          %1446 = vmatpush1.bf16.msra.mxu0 0
          %1447 = vmatprep.subr.bf16.mxu0 0
          %1448 = vmatpush1.bf16.msra.mxu0 0
          %1449 = vmatprep.subr.bf16.mxu0 0
          %1450 = vmatpush1.bf16.msra.mxu0 0
          %1451 = vmatprep.mubr.bf16.mxu0 0
          %1452 = vmatmul.mubr.bf16.gmra.mrb[0].mxu0 %v1105
          %v1453 = vpop.f32.mrb[0].mxu0
          %v1454 = vadd.f32 %v1271, %v1453
          %v1455 = vpop.f32.mrb[0].mxu0
          %v1456 = vadd.f32 %v1273, %v1455
          %v1457 = vpop.f32.mrb[0].mxu0
          %v1458 = vpop.f32.mrb[0].mxu0
          %1459 = vdwg.mxu0
          %1460 = vmatprep.subr.bf16.mxu0 %v1398
          %1461 = vmatpush1.bf16.msra.mxu0 %v1397
          %1462 = vmatprep.subr.bf16.mxu0 %v1404
          %1463 = vmatpush1.bf16.msra.mxu0 %v1403
          %1464 = vmatprep.subr.bf16.mxu0 0
          %1465 = vmatpush1.bf16.msra.mxu0 0
          %1466 = vmatprep.subr.bf16.mxu0 0
          %1467 = vmatpush1.bf16.msra.mxu0 0
          %1468 = vmatprep.subr.bf16.mxu0 0
          %1469 = vmatpush1.bf16.msra.mxu0 0
          %1470 = vmatprep.subr.bf16.mxu0 0
          %1471 = vmatpush1.bf16.msra.mxu0 0
          %1472 = vmatprep.subr.bf16.mxu0 0
          %1473 = vmatpush1.bf16.msra.mxu0 0
          %1474 = vmatprep.subr.bf16.mxu0 0
          %1475 = vmatpush1.bf16.msra.mxu0 0
          %1476 = vmatprep.subr.bf16.mxu0 0
          %1477 = vmatpush1.bf16.msra.mxu0 0
          %1478 = vmatprep.subr.bf16.mxu0 0
          %1479 = vmatpush1.bf16.msra.mxu0 0
          %1480 = vmatprep.subr.bf16.mxu0 0
          %1481 = vmatpush1.bf16.msra.mxu0 0
          %1482 = vmatprep.subr.bf16.mxu0 0
          %1483 = vmatpush1.bf16.msra.mxu0 0
          %1484 = vmatprep.subr.bf16.mxu0 0
          %1485 = vmatpush1.bf16.msra.mxu0 0
          %1486 = vmatprep.subr.bf16.mxu0 0
          %1487 = vmatpush1.bf16.msra.mxu0 0
          %1488 = vmatprep.subr.bf16.mxu0 0
          %1489 = vmatpush1.bf16.msra.mxu0 0
          %1490 = vmatprep.subr.bf16.mxu0 0
          %1491 = vmatpush1.bf16.msra.mxu0 0
          %1492 = vmatprep.mubr.bf16.mxu0 0
          %1493 = vmatmul.mubr.bf16.gmra.mrb[0].mxu0 %v1105
          %v1494 = vpop.f32.mrb[0].mxu0
          %v1495 = vadd.f32 %v1312, %v1494
          %v1496 = vpop.f32.mrb[0].mxu0
          %v1497 = vadd.f32 %v1314, %v1496
          %v1498 = vpop.f32.mrb[0].mxu0
          %v1499 = vpop.f32.mrb[0].mxu0
          %1500 = vdwg.mxu0
          %1501 = vmatprep.subr.bf16.mxu0 %v1400
          %1502 = vmatpush1.bf16.msra.mxu0 %v1399
          %1503 = vmatprep.subr.bf16.mxu0 %v1406
          %1504 = vmatpush1.bf16.msra.mxu0 %v1405
          %1505 = vmatprep.subr.bf16.mxu0 0
          %1506 = vmatpush1.bf16.msra.mxu0 0
          %1507 = vmatprep.subr.bf16.mxu0 0
          %1508 = vmatpush1.bf16.msra.mxu0 0
          %1509 = vmatprep.subr.bf16.mxu0 0
          %1510 = vmatpush1.bf16.msra.mxu0 0
          %1511 = vmatprep.subr.bf16.mxu0 0
          %1512 = vmatpush1.bf16.msra.mxu0 0
          %1513 = vmatprep.subr.bf16.mxu0 0
          %1514 = vmatpush1.bf16.msra.mxu0 0
          %1515 = vmatprep.subr.bf16.mxu0 0
          %1516 = vmatpush1.bf16.msra.mxu0 0
          %1517 = vmatprep.subr.bf16.mxu0 0
          %1518 = vmatpush1.bf16.msra.mxu0 0
          %1519 = vmatprep.subr.bf16.mxu0 0
          %1520 = vmatpush1.bf16.msra.mxu0 0
          %1521 = vmatprep.subr.bf16.mxu0 0
          %1522 = vmatpush1.bf16.msra.mxu0 0
          %1523 = vmatprep.subr.bf16.mxu0 0
          %1524 = vmatpush1.bf16.msra.mxu0 0
          %1525 = vmatprep.subr.bf16.mxu0 0
          %1526 = vmatpush1.bf16.msra.mxu0 0
          %1527 = vmatprep.subr.bf16.mxu0 0
          %1528 = vmatpush1.bf16.msra.mxu0 0
          %1529 = vmatprep.subr.bf16.mxu0 0
          %1530 = vmatpush1.bf16.msra.mxu0 0
          %1531 = vmatprep.subr.bf16.mxu0 0
          %1532 = vmatpush1.bf16.msra.mxu0 0
          %1533 = vmatprep.mubr.bf16.mxu0 0
          %1534 = vmatmul.mubr.bf16.gmra.mrb[0].mxu0 %v1105
          %v1535 = vpop.f32.mrb[0].mxu0
          %v1536 = vadd.f32 %v1353, %v1535
          %v1537 = vpop.f32.mrb[0].mxu0
          %v1538 = vadd.f32 %v1355, %v1537
          %v1539 = vpop.f32.mrb[0].mxu0
          %v1540 = vpop.f32.mrb[0].mxu0
          %1541 = vdwg.mxu0
          %v1542 = vld [vmem:[%s7] sm:$0x3f]
          %v1544 = vlaneseq
          %v1545 = vshrl.u32 %v1544, 7
          %v1546 = vsub.s32 0, %v1545
          %v1547 = vrot.slane %v1542, %v1546
          %v1548 = vlaneseq
          %v1549 = vshrl.u32 %v1548, 7
          %v1550 = vsub.s32 1, %v1549
          %v1551 = vrot.slane %v1542, %v1550
          %v1552 = vlaneseq
          %v1553 = vshrl.u32 %v1552, 7
          %v1554 = vsub.s32 2, %v1553
          %v1555 = vrot.slane %v1542, %v1554
          %v1556 = vlaneseq
          %v1557 = vshrl.u32 %v1556, 7
          %v1558 = vsub.s32 3, %v1557
          %v1559 = vrot.slane %v1542, %v1558
          %v1560 = vlaneseq
          %v1561 = vshrl.u32 %v1560, 7
          %v1562 = vsub.s32 4, %v1561
          %v1563 = vrot.slane %v1542, %v1562
          %v1564 = vlaneseq
          %v1565 = vshrl.u32 %v1564, 7
          %v1566 = vsub.s32 5, %v1565
          %v1567 = vrot.slane %v1542, %v1566
          %v1574 = vadd.f32 %v1454, %v1547
          %v1575 = vadd.f32 %v1456, %v1551
          %v1576 = vadd.f32 %v1495, %v1555
          %v1577 = vadd.f32 %v1497, %v1559
          %v1578 = vadd.f32 %v1536, %v1563
          %v1579 = vadd.f32 %v1538, %v1567
          %v1580 = vmax.f32 %v1574, 0.0
          %v1581 = vmax.f32 %v1575, 0.0
          %v1582 = vmax.f32 %v1576, 0.0
          %v1583 = vmax.f32 %v1577, 0.0
          %v1584 = vmax.f32 %v1578, 0.0
          %v1585 = vmax.f32 %v1579, 0.0
          %v1586 = vpack.c.bf16 %v1580, %v1580
          %v1587 = vpack.c.bf16 %v1581, %v1581
          %v1588 = vpack.c.bf16 %v1582, %v1582
          %v1589 = vpack.c.bf16 %v1583, %v1583
          %v1590 = vpack.c.bf16 %v1584, %v1584
          %v1591 = vpack.c.bf16 %v1585, %v1585
          %v1592 = vld [vmem:[#allocation15] sm:$0xff]
          %v1593 = vld [vmem:[#allocation15 + $0x8] sm:$0xff]
          %v1594 = vld [vmem:[#allocation15 + $0x10] sm:$0xff]
          %v1595 = vld [vmem:[#allocation15 + $0x18] sm:$0xff]
          %v1596 = vld [vmem:[#allocation15 + $0x20] sm:$0xff]
          %v1597 = vld [vmem:[#allocation15 + $0x28] sm:$0xff]
          %v1598 = vld [vmem:[#allocation15 + $0x30] sm:$0xff]
          %v1599 = vld [vmem:[#allocation15 + $0x38] sm:$0xff]
          %v1600 = vld [vmem:[#allocation15 + $0x40] sm:$0xff]
          %v1601 = vld [vmem:[#allocation15 + $0x48] sm:$0xff]
          %v1602 = vld [vmem:[#allocation15 + $0x50] sm:$0xff]
          %v1603 = vld [vmem:[#allocation15 + $0x58] sm:$0xff]
          %v1604 = vld [vmem:[#allocation15 + $0x60] sm:$0xff]
          %v1605 = vld [vmem:[#allocation15 + $0x68] sm:$0xff]
          %v1606 = vld [vmem:[#allocation15 + $0x70] sm:$0xff]
          %v1607 = vld [vmem:[#allocation15 + $0x78] sm:$0xff]
          %v1608 = vld [vmem:[#allocation15 + $0x80] sm:$0xff]
          %v1609 = vld [vmem:[#allocation15 + $0x88] sm:$0xff]
          %v1610 = vld [vmem:[#allocation15 + $0x90] sm:$0xff]
          %v1611 = vld [vmem:[#allocation15 + $0x98] sm:$0xff]
          %v1612 = vld [vmem:[#allocation15 + $0xa0] sm:$0xff]
          %v1613 = vld [vmem:[#allocation15 + $0xa8] sm:$0xff]
          %v1614 = vld [vmem:[#allocation15 + $0xb0] sm:$0xff]
          %v1615 = vld [vmem:[#allocation15 + $0xb8] sm:$0xff]
          %v1616 = vld [vmem:[#allocation15 + $0xc0] sm:$0xff]
          %v1617 = vld [vmem:[#allocation15 + $0xc8] sm:$0xff]
          %v1618 = vld [vmem:[#allocation15 + $0xd0] sm:$0xff]
          %v1619 = vld [vmem:[#allocation15 + $0xd8] sm:$0xff]
          %v1620 = vld [vmem:[#allocation15 + $0xe0] sm:$0xff]
          %v1621 = vld [vmem:[#allocation15 + $0xe8] sm:$0xff]
          %v1622 = vld [vmem:[#allocation15 + $0xf0] sm:$0xff]
          %v1623 = vld [vmem:[#allocation15 + $0xf8] sm:$0xff]
          %v1624 = vld [vmem:[#allocation15 + $0x100] sm:$0xff]
          %v1625 = vld [vmem:[#allocation15 + $0x108] sm:$0xff]
          %v1626 = vld [vmem:[#allocation15 + $0x110] sm:$0xff]
          %v1627 = vld [vmem:[#allocation15 + $0x118] sm:$0xff]
          %v1628 = vld [vmem:[#allocation15 + $0x120] sm:$0xff]
          %v1629 = vld [vmem:[#allocation15 + $0x128] sm:$0xff]
          %v1630 = vld [vmem:[#allocation15 + $0x130] sm:$0xff]
          %v1631 = vld [vmem:[#allocation15 + $0x138] sm:$0xff]
          %v1632 = vld [vmem:[#allocation15 + $0x140] sm:$0xff]
          %v1633 = vld [vmem:[#allocation15 + $0x148] sm:$0xff]
          %v1634 = vld [vmem:[#allocation15 + $0x150] sm:$0xff]
          %v1635 = vld [vmem:[#allocation15 + $0x158] sm:$0xff]
          %v1636 = vld [vmem:[#allocation15 + $0x160] sm:$0xff]
          %v1637 = vld [vmem:[#allocation15 + $0x168] sm:$0xff]
          %v1638 = vld [vmem:[#allocation15 + $0x170] sm:$0xff]
          %v1639 = vld [vmem:[#allocation15 + $0x178] sm:$0xff]
          %v1640 = vld [vmem:[#allocation15 + $0x180] sm:$0xff]
          %v1641 = vld [vmem:[#allocation15 + $0x188] sm:$0xff]
          %v1642 = vld [vmem:[#allocation15 + $0x190] sm:$0xff]
          %v1643 = vld [vmem:[#allocation15 + $0x198] sm:$0xff]
          %v1644 = vld [vmem:[#allocation15 + $0x1a0] sm:$0xff]
          %v1645 = vld [vmem:[#allocation15 + $0x1a8] sm:$0xff]
          %v1646 = vld [vmem:[#allocation15 + $0x1b0] sm:$0xff]
          %v1647 = vld [vmem:[#allocation15 + $0x1b8] sm:$0xff]
          %v1648 = vld [vmem:[#allocation15 + $0x1c0] sm:$0xff]
          %v1649 = vld [vmem:[#allocation15 + $0x1c8] sm:$0xff]
          %v1650 = vld [vmem:[#allocation15 + $0x1d0] sm:$0xff]
          %v1651 = vld [vmem:[#allocation15 + $0x1d8] sm:$0xff]
          %v1652 = vld [vmem:[#allocation15 + $0x1e0] sm:$0xff]
          %v1653 = vld [vmem:[#allocation15 + $0x1e8] sm:$0xff]
          %v1654 = vld [vmem:[#allocation15 + $0x1f0] sm:$0xff]
          %v1655 = vld [vmem:[#allocation15 + $0x1f8] sm:$0xff]
          %v1656 = vld [vmem:[#allocation15 + $0x200] sm:$0xff]
          %v1657 = vld [vmem:[#allocation15 + $0x208] sm:$0xff]
          %v1658 = vld [vmem:[#allocation15 + $0x210] sm:$0xff]
          %v1659 = vld [vmem:[#allocation15 + $0x218] sm:$0xff]
          %v1660 = vld [vmem:[#allocation15 + $0x220] sm:$0xff]
          %v1661 = vld [vmem:[#allocation15 + $0x228] sm:$0xff]
          %v1662 = vld [vmem:[#allocation15 + $0x230] sm:$0xff]
          %v1663 = vld [vmem:[#allocation15 + $0x238] sm:$0xff]
          %v1664 = vld [vmem:[#allocation15 + $0x240] sm:$0xff]
          %v1665 = vld [vmem:[#allocation15 + $0x248] sm:$0xff]
          %v1666 = vld [vmem:[#allocation15 + $0x250] sm:$0xff]
          %v1667 = vld [vmem:[#allocation15 + $0x258] sm:$0xff]
          %v1668 = vld [vmem:[#allocation15 + $0x260] sm:$0xff]
          %v1669 = vld [vmem:[#allocation15 + $0x268] sm:$0xff]
          %v1670 = vld [vmem:[#allocation15 + $0x270] sm:$0xff]
          %v1671 = vld [vmem:[#allocation15 + $0x278] sm:$0xff]
          %v1672 = vld [vmem:[#allocation15 + $0x280] sm:$0xff]
          %v1673 = vld [vmem:[#allocation15 + $0x288] sm:$0xff]
          %v1674 = vld [vmem:[#allocation15 + $0x290] sm:$0xff]
          %v1675 = vld [vmem:[#allocation15 + $0x298] sm:$0xff]
          %v1676 = vld [vmem:[#allocation15 + $0x2a0] sm:$0xff]
          %v1677 = vld [vmem:[#allocation15 + $0x2a8] sm:$0xff]
          %v1678 = vld [vmem:[#allocation15 + $0x2b0] sm:$0xff]
          %v1679 = vld [vmem:[#allocation15 + $0x2b8] sm:$0xff]
          %v1680 = vld [vmem:[#allocation15 + $0x2c0] sm:$0xff]
          %v1681 = vld [vmem:[#allocation15 + $0x2c8] sm:$0xff]
          %v1682 = vld [vmem:[#allocation15 + $0x2d0] sm:$0xff]
          %v1683 = vld [vmem:[#allocation15 + $0x2d8] sm:$0xff]
          %v1684 = vld [vmem:[#allocation15 + $0x2e0] sm:$0xff]
          %v1685 = vld [vmem:[#allocation15 + $0x2e8] sm:$0xff]
          %v1686 = vld [vmem:[#allocation15 + $0x2f0] sm:$0xff]
          %v1687 = vld [vmem:[#allocation15 + $0x2f8] sm:$0xff]
          %v1688 = vld [vmem:[#allocation15 + $0x300] sm:$0xff]
          %v1689 = vld [vmem:[#allocation15 + $0x308] sm:$0xff]
          %v1690 = vld [vmem:[#allocation15 + $0x310] sm:$0xff]
          %v1691 = vld [vmem:[#allocation15 + $0x318] sm:$0xff]
          %v1692 = vld [vmem:[#allocation15 + $0x320] sm:$0xff]
          %v1693 = vld [vmem:[#allocation15 + $0x328] sm:$0xff]
          %v1694 = vld [vmem:[#allocation15 + $0x330] sm:$0xff]
          %v1695 = vld [vmem:[#allocation15 + $0x338] sm:$0xff]
          %v1696 = vld [vmem:[#allocation15 + $0x340] sm:$0xff]
          %v1697 = vld [vmem:[#allocation15 + $0x348] sm:$0xff]
          %v1698 = vld [vmem:[#allocation15 + $0x350] sm:$0xff]
          %v1699 = vld [vmem:[#allocation15 + $0x358] sm:$0xff]
          %v1700 = vld [vmem:[#allocation15 + $0x360] sm:$0xff]
          %v1701 = vld [vmem:[#allocation15 + $0x368] sm:$0xff]
          %v1702 = vld [vmem:[#allocation15 + $0x370] sm:$0xff]
          %v1703 = vld [vmem:[#allocation15 + $0x378] sm:$0xff]
          %v1704 = vld [vmem:[#allocation15 + $0x380] sm:$0xff]
          %v1705 = vld [vmem:[#allocation15 + $0x388] sm:$0xff]
          %v1706 = vld [vmem:[#allocation15 + $0x390] sm:$0xff]
          %v1707 = vld [vmem:[#allocation15 + $0x398] sm:$0xff]
          %v1708 = vld [vmem:[#allocation15 + $0x3a0] sm:$0xff]
          %v1709 = vld [vmem:[#allocation15 + $0x3a8] sm:$0xff]
          %v1710 = vld [vmem:[#allocation15 + $0x3b0] sm:$0xff]
          %v1711 = vld [vmem:[#allocation15 + $0x3b8] sm:$0xff]
          %v1712 = vld [vmem:[#allocation15 + $0x3c0] sm:$0xff]
          %v1713 = vld [vmem:[#allocation15 + $0x3c8] sm:$0xff]
          %v1714 = vld [vmem:[#allocation15 + $0x3d0] sm:$0xff]
          %v1715 = vld [vmem:[#allocation15 + $0x3d8] sm:$0xff]
          %v1716 = vld [vmem:[#allocation15 + $0x3e0] sm:$0xff]
          %v1717 = vld [vmem:[#allocation15 + $0x3e8] sm:$0xff]
          %v1718 = vld [vmem:[#allocation15 + $0x3f0] sm:$0xff]
          %v1719 = vld [vmem:[#allocation15 + $0x3f8] sm:$0xff]
          %v1720 = vld [vmem:[#allocation15 + $0x400] sm:$0xff]
          %v1721 = vld [vmem:[#allocation15 + $0x408] sm:$0xff]
          %v1722 = vld [vmem:[#allocation15 + $0x410] sm:$0xff]
          %v1723 = vld [vmem:[#allocation15 + $0x418] sm:$0xff]
          %v1724 = vld [vmem:[#allocation15 + $0x420] sm:$0xff]
          %v1725 = vld [vmem:[#allocation15 + $0x428] sm:$0xff]
          %v1726 = vld [vmem:[#allocation15 + $0x430] sm:$0xff]
          %v1727 = vld [vmem:[#allocation15 + $0x438] sm:$0xff]
          %v1728 = vld [vmem:[#allocation15 + $0x440] sm:$0xff]
          %v1729 = vld [vmem:[#allocation15 + $0x448] sm:$0xff]
          %v1730 = vld [vmem:[#allocation15 + $0x450] sm:$0xff]
          %v1731 = vld [vmem:[#allocation15 + $0x458] sm:$0xff]
          %v1732 = vld [vmem:[#allocation15 + $0x460] sm:$0xff]
          %v1733 = vld [vmem:[#allocation15 + $0x468] sm:$0xff]
          %v1734 = vld [vmem:[#allocation15 + $0x470] sm:$0xff]
          %v1735 = vld [vmem:[#allocation15 + $0x478] sm:$0xff]
          %v1736 = vld [vmem:[#allocation15 + $0x480] sm:$0xff]
          %v1737 = vld [vmem:[#allocation15 + $0x488] sm:$0xff]
          %v1738 = vld [vmem:[#allocation15 + $0x490] sm:$0xff]
          %v1739 = vld [vmem:[#allocation15 + $0x498] sm:$0xff]
          %v1740 = vld [vmem:[#allocation15 + $0x4a0] sm:$0xff]
          %v1741 = vld [vmem:[#allocation15 + $0x4a8] sm:$0xff]
          %v1742 = vld [vmem:[#allocation15 + $0x4b0] sm:$0xff]
          %v1743 = vld [vmem:[#allocation15 + $0x4b8] sm:$0xff]
          %v1744 = vld [vmem:[#allocation15 + $0x4c0] sm:$0xff]
          %v1745 = vld [vmem:[#allocation15 + $0x4c8] sm:$0xff]
          %v1746 = vld [vmem:[#allocation15 + $0x4d0] sm:$0xff]
          %v1747 = vld [vmem:[#allocation15 + $0x4d8] sm:$0xff]
          %v1748 = vld [vmem:[#allocation15 + $0x4e0] sm:$0xff]
          %v1749 = vld [vmem:[#allocation15 + $0x4e8] sm:$0xff]
          %v1750 = vld [vmem:[#allocation15 + $0x4f0] sm:$0xff]
          %v1751 = vld [vmem:[#allocation15 + $0x4f8] sm:$0xff]
          %v1752 = vld [vmem:[#allocation15 + $0x500] sm:$0xff]
          %v1753 = vld [vmem:[#allocation15 + $0x508] sm:$0xff]
          %v1754 = vld [vmem:[#allocation15 + $0x510] sm:$0xff]
          %v1755 = vld [vmem:[#allocation15 + $0x518] sm:$0xff]
          %v1756 = vld [vmem:[#allocation15 + $0x520] sm:$0xff]
          %v1757 = vld [vmem:[#allocation15 + $0x528] sm:$0xff]
          %v1758 = vld [vmem:[#allocation15 + $0x530] sm:$0xff]
          %v1759 = vld [vmem:[#allocation15 + $0x538] sm:$0xff]
          %v1760 = vld [vmem:[#allocation15 + $0x540] sm:$0xff]
          %v1761 = vld [vmem:[#allocation15 + $0x548] sm:$0xff]
          %v1762 = vld [vmem:[#allocation15 + $0x550] sm:$0xff]
          %v1763 = vld [vmem:[#allocation15 + $0x558] sm:$0xff]
          %v1764 = vld [vmem:[#allocation15 + $0x560] sm:$0xff]
          %v1765 = vld [vmem:[#allocation15 + $0x568] sm:$0xff]
          %v1766 = vld [vmem:[#allocation15 + $0x570] sm:$0xff]
          %v1767 = vld [vmem:[#allocation15 + $0x578] sm:$0xff]
          %v1768 = vld [vmem:[#allocation15 + $0x580] sm:$0xff]
          %v1769 = vld [vmem:[#allocation15 + $0x588] sm:$0xff]
          %v1770 = vld [vmem:[#allocation15 + $0x590] sm:$0xff]
          %v1771 = vld [vmem:[#allocation15 + $0x598] sm:$0xff]
          %v1772 = vld [vmem:[#allocation15 + $0x5a0] sm:$0xff]
          %v1773 = vld [vmem:[#allocation15 + $0x5a8] sm:$0xff]
          %v1774 = vld [vmem:[#allocation15 + $0x5b0] sm:$0xff]
          %v1775 = vld [vmem:[#allocation15 + $0x5b8] sm:$0xff]
          %v1776 = vld [vmem:[#allocation15 + $0x5c0] sm:$0xff]
          %v1777 = vld [vmem:[#allocation15 + $0x5c8] sm:$0xff]
          %v1778 = vld [vmem:[#allocation15 + $0x5d0] sm:$0xff]
          %v1779 = vld [vmem:[#allocation15 + $0x5d8] sm:$0xff]
          %v1780 = vld [vmem:[#allocation15 + $0x5e0] sm:$0xff]
          %v1781 = vld [vmem:[#allocation15 + $0x5e8] sm:$0xff]
          %v1782 = vld [vmem:[#allocation15 + $0x5f0] sm:$0xff]
          %v1783 = vld [vmem:[#allocation15 + $0x5f8] sm:$0xff]
          %v1784 = vld [vmem:[#allocation16] sm:$0xf]
          %v1786 = vlaneseq
          %v1787 = vshrl.u32 %v1786, 7
          %v1788 = vsub.s32 0, %v1787
          %v1789 = vrot.slane %v1784, %v1788
          %v1790 = vlaneseq
          %v1791 = vshrl.u32 %v1790, 7
          %v1792 = vsub.s32 1, %v1791
          %v1793 = vrot.slane %v1784, %v1792
          %v1794 = vlaneseq
          %v1795 = vshrl.u32 %v1794, 7
          %v1796 = vsub.s32 2, %v1795
          %v1797 = vrot.slane %v1784, %v1796
          %v1798 = vlaneseq
          %v1799 = vshrl.u32 %v1798, 7
          %v1800 = vsub.s32 3, %v1799
          %v1801 = vrot.slane %v1784, %v1800
          %v1998 = vunpack.c.l.b16 %v1592
          %v1999 = vunpack.c.h.b16 %v1592
          %v2000 = vunpack.c.l.b16 %v1593
          %v2001 = vunpack.c.h.b16 %v1593
          %v2002 = vunpack.c.l.b16 %v1594
          %v2003 = vunpack.c.h.b16 %v1594
          %v2004 = vunpack.c.l.b16 %v1595
          %v2005 = vunpack.c.h.b16 %v1595
          %v2006 = vunpack.c.l.b16 %v1596
          %v2007 = vunpack.c.h.b16 %v1596
          %v2008 = vunpack.c.l.b16 %v1597
          %v2009 = vunpack.c.h.b16 %v1597
          %v2010 = vunpack.c.l.b16 %v1598
          %v2011 = vunpack.c.h.b16 %v1598
          %v2012 = vunpack.c.l.b16 %v1599
          %v2013 = vunpack.c.h.b16 %v1599
          %v2014 = vunpack.c.l.b16 %v1600
          %v2015 = vunpack.c.h.b16 %v1600
          %v2016 = vunpack.c.l.b16 %v1601
          %v2017 = vunpack.c.h.b16 %v1601
          %v2018 = vunpack.c.l.b16 %v1602
          %v2019 = vunpack.c.h.b16 %v1602
          %v2020 = vunpack.c.l.b16 %v1603
          %v2021 = vunpack.c.h.b16 %v1603
          %v2022 = vunpack.c.l.b16 %v1604
          %v2023 = vunpack.c.h.b16 %v1604
          %v2024 = vunpack.c.l.b16 %v1605
          %v2025 = vunpack.c.h.b16 %v1605
          %v2026 = vunpack.c.l.b16 %v1606
          %v2027 = vunpack.c.h.b16 %v1606
          %v2028 = vunpack.c.l.b16 %v1607
          %v2029 = vunpack.c.h.b16 %v1607
          %v2030 = vunpack.c.l.b16 %v1608
          %v2031 = vunpack.c.h.b16 %v1608
          %v2032 = vunpack.c.l.b16 %v1609
          %v2033 = vunpack.c.h.b16 %v1609
          %v2034 = vunpack.c.l.b16 %v1610
          %v2035 = vunpack.c.h.b16 %v1610
          %v2036 = vunpack.c.l.b16 %v1611
          %v2037 = vunpack.c.h.b16 %v1611
          %v2038 = vunpack.c.l.b16 %v1612
          %v2039 = vunpack.c.h.b16 %v1612
          %v2040 = vunpack.c.l.b16 %v1613
          %v2041 = vunpack.c.h.b16 %v1613
          %v2042 = vunpack.c.l.b16 %v1614
          %v2043 = vunpack.c.h.b16 %v1614
          %v2044 = vunpack.c.l.b16 %v1615
          %v2045 = vunpack.c.h.b16 %v1615
          %v2046 = vunpack.c.l.b16 %v1616
          %v2047 = vunpack.c.h.b16 %v1616
          %v2048 = vunpack.c.l.b16 %v1617
          %v2049 = vunpack.c.h.b16 %v1617
          %v2050 = vunpack.c.l.b16 %v1618
          %v2051 = vunpack.c.h.b16 %v1618
          %v2052 = vunpack.c.l.b16 %v1619
          %v2053 = vunpack.c.h.b16 %v1619
          %v2054 = vunpack.c.l.b16 %v1620
          %v2055 = vunpack.c.h.b16 %v1620
          %v2056 = vunpack.c.l.b16 %v1621
          %v2057 = vunpack.c.h.b16 %v1621
          %v2058 = vunpack.c.l.b16 %v1622
          %v2059 = vunpack.c.h.b16 %v1622
          %v2060 = vunpack.c.l.b16 %v1623
          %v2061 = vunpack.c.h.b16 %v1623
          %v2062 = vunpack.c.l.b16 %v1624
          %v2063 = vunpack.c.h.b16 %v1624
          %v2064 = vunpack.c.l.b16 %v1625
          %v2065 = vunpack.c.h.b16 %v1625
          %v2066 = vunpack.c.l.b16 %v1626
          %v2067 = vunpack.c.h.b16 %v1626
          %v2068 = vunpack.c.l.b16 %v1627
          %v2069 = vunpack.c.h.b16 %v1627
          %v2070 = vunpack.c.l.b16 %v1628
          %v2071 = vunpack.c.h.b16 %v1628
          %v2072 = vunpack.c.l.b16 %v1629
          %v2073 = vunpack.c.h.b16 %v1629
          %v2074 = vunpack.c.l.b16 %v1630
          %v2075 = vunpack.c.h.b16 %v1630
          %v2076 = vunpack.c.l.b16 %v1631
          %v2077 = vunpack.c.h.b16 %v1631
          %v2078 = vunpack.c.l.b16 %v1632
          %v2079 = vunpack.c.h.b16 %v1632
          %v2080 = vunpack.c.l.b16 %v1633
          %v2081 = vunpack.c.h.b16 %v1633
          %v2082 = vunpack.c.l.b16 %v1634
          %v2083 = vunpack.c.h.b16 %v1634
          %v2084 = vunpack.c.l.b16 %v1635
          %v2085 = vunpack.c.h.b16 %v1635
          %v2086 = vunpack.c.l.b16 %v1636
          %v2087 = vunpack.c.h.b16 %v1636
          %v2088 = vunpack.c.l.b16 %v1637
          %v2089 = vunpack.c.h.b16 %v1637
          %v2090 = vunpack.c.l.b16 %v1638
          %v2091 = vunpack.c.h.b16 %v1638
          %v2092 = vunpack.c.l.b16 %v1639
          %v2093 = vunpack.c.h.b16 %v1639
          %v2094 = vunpack.c.l.b16 %v1640
          %v2095 = vunpack.c.h.b16 %v1640
          %v2096 = vunpack.c.l.b16 %v1641
          %v2097 = vunpack.c.h.b16 %v1641
          %v2098 = vunpack.c.l.b16 %v1642
          %v2099 = vunpack.c.h.b16 %v1642
          %v2100 = vunpack.c.l.b16 %v1643
          %v2101 = vunpack.c.h.b16 %v1643
          %v2102 = vunpack.c.l.b16 %v1644
          %v2103 = vunpack.c.h.b16 %v1644
          %v2104 = vunpack.c.l.b16 %v1645
          %v2105 = vunpack.c.h.b16 %v1645
          %v2106 = vunpack.c.l.b16 %v1646
          %v2107 = vunpack.c.h.b16 %v1646
          %v2108 = vunpack.c.l.b16 %v1647
          %v2109 = vunpack.c.h.b16 %v1647
          %v2110 = vunpack.c.l.b16 %v1648
          %v2111 = vunpack.c.h.b16 %v1648
          %v2112 = vunpack.c.l.b16 %v1649
          %v2113 = vunpack.c.h.b16 %v1649
          %v2114 = vunpack.c.l.b16 %v1650
          %v2115 = vunpack.c.h.b16 %v1650
          %v2116 = vunpack.c.l.b16 %v1651
          %v2117 = vunpack.c.h.b16 %v1651
          %v2118 = vunpack.c.l.b16 %v1652
          %v2119 = vunpack.c.h.b16 %v1652
          %v2120 = vunpack.c.l.b16 %v1653
          %v2121 = vunpack.c.h.b16 %v1653
          %v2122 = vunpack.c.l.b16 %v1654
          %v2123 = vunpack.c.h.b16 %v1654
          %v2124 = vunpack.c.l.b16 %v1655
          %v2125 = vunpack.c.h.b16 %v1655
          %v2126 = vunpack.c.l.b16 %v1656
          %v2127 = vunpack.c.h.b16 %v1656
          %v2128 = vunpack.c.l.b16 %v1657
          %v2129 = vunpack.c.h.b16 %v1657
          %v2130 = vunpack.c.l.b16 %v1658
          %v2131 = vunpack.c.h.b16 %v1658
          %v2132 = vunpack.c.l.b16 %v1659
          %v2133 = vunpack.c.h.b16 %v1659
          %v2134 = vunpack.c.l.b16 %v1660
          %v2135 = vunpack.c.h.b16 %v1660
          %v2136 = vunpack.c.l.b16 %v1661
          %v2137 = vunpack.c.h.b16 %v1661
          %v2138 = vunpack.c.l.b16 %v1662
          %v2139 = vunpack.c.h.b16 %v1662
          %v2140 = vunpack.c.l.b16 %v1663
          %v2141 = vunpack.c.h.b16 %v1663
          %v2142 = vunpack.c.l.b16 %v1664
          %v2143 = vunpack.c.h.b16 %v1664
          %v2144 = vunpack.c.l.b16 %v1665
          %v2145 = vunpack.c.h.b16 %v1665
          %v2146 = vunpack.c.l.b16 %v1666
          %v2147 = vunpack.c.h.b16 %v1666
          %v2148 = vunpack.c.l.b16 %v1667
          %v2149 = vunpack.c.h.b16 %v1667
          %v2150 = vunpack.c.l.b16 %v1668
          %v2151 = vunpack.c.h.b16 %v1668
          %v2152 = vunpack.c.l.b16 %v1669
          %v2153 = vunpack.c.h.b16 %v1669
          %v2154 = vunpack.c.l.b16 %v1670
          %v2155 = vunpack.c.h.b16 %v1670
          %v2156 = vunpack.c.l.b16 %v1671
          %v2157 = vunpack.c.h.b16 %v1671
          %v2158 = vunpack.c.l.b16 %v1672
          %v2159 = vunpack.c.h.b16 %v1672
          %v2160 = vunpack.c.l.b16 %v1673
          %v2161 = vunpack.c.h.b16 %v1673
          %v2162 = vunpack.c.l.b16 %v1674
          %v2163 = vunpack.c.h.b16 %v1674
          %v2164 = vunpack.c.l.b16 %v1675
          %v2165 = vunpack.c.h.b16 %v1675
          %v2166 = vunpack.c.l.b16 %v1676
          %v2167 = vunpack.c.h.b16 %v1676
          %v2168 = vunpack.c.l.b16 %v1677
          %v2169 = vunpack.c.h.b16 %v1677
          %v2170 = vunpack.c.l.b16 %v1678
          %v2171 = vunpack.c.h.b16 %v1678
          %v2172 = vunpack.c.l.b16 %v1679
          %v2173 = vunpack.c.h.b16 %v1679
          %v2174 = vunpack.c.l.b16 %v1680
          %v2175 = vunpack.c.h.b16 %v1680
          %v2176 = vunpack.c.l.b16 %v1681
          %v2177 = vunpack.c.h.b16 %v1681
          %v2178 = vunpack.c.l.b16 %v1682
          %v2179 = vunpack.c.h.b16 %v1682
          %v2180 = vunpack.c.l.b16 %v1683
          %v2181 = vunpack.c.h.b16 %v1683
          %v2182 = vunpack.c.l.b16 %v1684
          %v2183 = vunpack.c.h.b16 %v1684
          %v2184 = vunpack.c.l.b16 %v1685
          %v2185 = vunpack.c.h.b16 %v1685
          %v2186 = vunpack.c.l.b16 %v1686
          %v2187 = vunpack.c.h.b16 %v1686
          %v2188 = vunpack.c.l.b16 %v1687
          %v2189 = vunpack.c.h.b16 %v1687
          %v2190 = vunpack.c.l.b16 %v1688
          %v2191 = vunpack.c.h.b16 %v1688
          %v2192 = vunpack.c.l.b16 %v1689
          %v2193 = vunpack.c.h.b16 %v1689
          %v2194 = vunpack.c.l.b16 %v1690
          %v2195 = vunpack.c.h.b16 %v1690
          %v2196 = vunpack.c.l.b16 %v1691
          %v2197 = vunpack.c.h.b16 %v1691
          %v2198 = vunpack.c.l.b16 %v1692
          %v2199 = vunpack.c.h.b16 %v1692
          %v2200 = vunpack.c.l.b16 %v1693
          %v2201 = vunpack.c.h.b16 %v1693
          %v2202 = vunpack.c.l.b16 %v1694
          %v2203 = vunpack.c.h.b16 %v1694
          %v2204 = vunpack.c.l.b16 %v1695
          %v2205 = vunpack.c.h.b16 %v1695
          %v2206 = vunpack.c.l.b16 %v1696
          %v2207 = vunpack.c.h.b16 %v1696
          %v2208 = vunpack.c.l.b16 %v1697
          %v2209 = vunpack.c.h.b16 %v1697
          %v2210 = vunpack.c.l.b16 %v1698
          %v2211 = vunpack.c.h.b16 %v1698
          %v2212 = vunpack.c.l.b16 %v1699
          %v2213 = vunpack.c.h.b16 %v1699
          %v2214 = vunpack.c.l.b16 %v1700
          %v2215 = vunpack.c.h.b16 %v1700
          %v2216 = vunpack.c.l.b16 %v1701
          %v2217 = vunpack.c.h.b16 %v1701
          %v2218 = vunpack.c.l.b16 %v1702
          %v2219 = vunpack.c.h.b16 %v1702
          %v2220 = vunpack.c.l.b16 %v1703
          %v2221 = vunpack.c.h.b16 %v1703
          %v2222 = vunpack.c.l.b16 %v1704
          %v2223 = vunpack.c.h.b16 %v1704
          %v2224 = vunpack.c.l.b16 %v1705
          %v2225 = vunpack.c.h.b16 %v1705
          %v2226 = vunpack.c.l.b16 %v1706
          %v2227 = vunpack.c.h.b16 %v1706
          %v2228 = vunpack.c.l.b16 %v1707
          %v2229 = vunpack.c.h.b16 %v1707
          %v2230 = vunpack.c.l.b16 %v1708
          %v2231 = vunpack.c.h.b16 %v1708
          %v2232 = vunpack.c.l.b16 %v1709
          %v2233 = vunpack.c.h.b16 %v1709
          %v2234 = vunpack.c.l.b16 %v1710
          %v2235 = vunpack.c.h.b16 %v1710
          %v2236 = vunpack.c.l.b16 %v1711
          %v2237 = vunpack.c.h.b16 %v1711
          %v2238 = vunpack.c.l.b16 %v1712
          %v2239 = vunpack.c.h.b16 %v1712
          %v2240 = vunpack.c.l.b16 %v1713
          %v2241 = vunpack.c.h.b16 %v1713
          %v2242 = vunpack.c.l.b16 %v1714
          %v2243 = vunpack.c.h.b16 %v1714
          %v2244 = vunpack.c.l.b16 %v1715
          %v2245 = vunpack.c.h.b16 %v1715
          %v2246 = vunpack.c.l.b16 %v1716
          %v2247 = vunpack.c.h.b16 %v1716
          %v2248 = vunpack.c.l.b16 %v1717
          %v2249 = vunpack.c.h.b16 %v1717
          %v2250 = vunpack.c.l.b16 %v1718
          %v2251 = vunpack.c.h.b16 %v1718
          %v2252 = vunpack.c.l.b16 %v1719
          %v2253 = vunpack.c.h.b16 %v1719
          %v2254 = vunpack.c.l.b16 %v1720
          %v2255 = vunpack.c.h.b16 %v1720
          %v2256 = vunpack.c.l.b16 %v1721
          %v2257 = vunpack.c.h.b16 %v1721
          %v2258 = vunpack.c.l.b16 %v1722
          %v2259 = vunpack.c.h.b16 %v1722
          %v2260 = vunpack.c.l.b16 %v1723
          %v2261 = vunpack.c.h.b16 %v1723
          %v2262 = vunpack.c.l.b16 %v1724
          %v2263 = vunpack.c.h.b16 %v1724
          %v2264 = vunpack.c.l.b16 %v1725
          %v2265 = vunpack.c.h.b16 %v1725
          %v2266 = vunpack.c.l.b16 %v1726
          %v2267 = vunpack.c.h.b16 %v1726
          %v2268 = vunpack.c.l.b16 %v1727
          %v2269 = vunpack.c.h.b16 %v1727
          %v2270 = vunpack.c.l.b16 %v1728
          %v2271 = vunpack.c.h.b16 %v1728
          %v2272 = vunpack.c.l.b16 %v1729
          %v2273 = vunpack.c.h.b16 %v1729
          %v2274 = vunpack.c.l.b16 %v1730
          %v2275 = vunpack.c.h.b16 %v1730
          %v2276 = vunpack.c.l.b16 %v1731
          %v2277 = vunpack.c.h.b16 %v1731
          %v2278 = vunpack.c.l.b16 %v1732
          %v2279 = vunpack.c.h.b16 %v1732
          %v2280 = vunpack.c.l.b16 %v1733
          %v2281 = vunpack.c.h.b16 %v1733
          %v2282 = vunpack.c.l.b16 %v1734
          %v2283 = vunpack.c.h.b16 %v1734
          %v2284 = vunpack.c.l.b16 %v1735
          %v2285 = vunpack.c.h.b16 %v1735
          %v2286 = vunpack.c.l.b16 %v1736
          %v2287 = vunpack.c.h.b16 %v1736
          %v2288 = vunpack.c.l.b16 %v1737
          %v2289 = vunpack.c.h.b16 %v1737
          %v2290 = vunpack.c.l.b16 %v1738
          %v2291 = vunpack.c.h.b16 %v1738
          %v2292 = vunpack.c.l.b16 %v1739
          %v2293 = vunpack.c.h.b16 %v1739
          %v2294 = vunpack.c.l.b16 %v1740
          %v2295 = vunpack.c.h.b16 %v1740
          %v2296 = vunpack.c.l.b16 %v1741
          %v2297 = vunpack.c.h.b16 %v1741
          %v2298 = vunpack.c.l.b16 %v1742
          %v2299 = vunpack.c.h.b16 %v1742
          %v2300 = vunpack.c.l.b16 %v1743
          %v2301 = vunpack.c.h.b16 %v1743
          %v2302 = vunpack.c.l.b16 %v1744
          %v2303 = vunpack.c.h.b16 %v1744
          %v2304 = vunpack.c.l.b16 %v1745
          %v2305 = vunpack.c.h.b16 %v1745
          %v2306 = vunpack.c.l.b16 %v1746
          %v2307 = vunpack.c.h.b16 %v1746
          %v2308 = vunpack.c.l.b16 %v1747
          %v2309 = vunpack.c.h.b16 %v1747
          %v2310 = vunpack.c.l.b16 %v1748
          %v2311 = vunpack.c.h.b16 %v1748
          %v2312 = vunpack.c.l.b16 %v1749
          %v2313 = vunpack.c.h.b16 %v1749
          %v2314 = vunpack.c.l.b16 %v1750
          %v2315 = vunpack.c.h.b16 %v1750
          %v2316 = vunpack.c.l.b16 %v1751
          %v2317 = vunpack.c.h.b16 %v1751
          %v2318 = vunpack.c.l.b16 %v1752
          %v2319 = vunpack.c.h.b16 %v1752
          %v2320 = vunpack.c.l.b16 %v1753
          %v2321 = vunpack.c.h.b16 %v1753
          %v2322 = vunpack.c.l.b16 %v1754
          %v2323 = vunpack.c.h.b16 %v1754
          %v2324 = vunpack.c.l.b16 %v1755
          %v2325 = vunpack.c.h.b16 %v1755
          %v2326 = vunpack.c.l.b16 %v1756
          %v2327 = vunpack.c.h.b16 %v1756
          %v2328 = vunpack.c.l.b16 %v1757
          %v2329 = vunpack.c.h.b16 %v1757
          %v2330 = vunpack.c.l.b16 %v1758
          %v2331 = vunpack.c.h.b16 %v1758
          %v2332 = vunpack.c.l.b16 %v1759
          %v2333 = vunpack.c.h.b16 %v1759
          %v2334 = vunpack.c.l.b16 %v1760
          %v2335 = vunpack.c.h.b16 %v1760
          %v2336 = vunpack.c.l.b16 %v1761
          %v2337 = vunpack.c.h.b16 %v1761
          %v2338 = vunpack.c.l.b16 %v1762
          %v2339 = vunpack.c.h.b16 %v1762
          %v2340 = vunpack.c.l.b16 %v1763
          %v2341 = vunpack.c.h.b16 %v1763
          %v2342 = vunpack.c.l.b16 %v1764
          %v2343 = vunpack.c.h.b16 %v1764
          %v2344 = vunpack.c.l.b16 %v1765
          %v2345 = vunpack.c.h.b16 %v1765
          %v2346 = vunpack.c.l.b16 %v1766
          %v2347 = vunpack.c.h.b16 %v1766
          %v2348 = vunpack.c.l.b16 %v1767
          %v2349 = vunpack.c.h.b16 %v1767
          %v2350 = vunpack.c.l.b16 %v1768
          %v2351 = vunpack.c.h.b16 %v1768
          %v2352 = vunpack.c.l.b16 %v1769
          %v2353 = vunpack.c.h.b16 %v1769
          %v2354 = vunpack.c.l.b16 %v1770
          %v2355 = vunpack.c.h.b16 %v1770
          %v2356 = vunpack.c.l.b16 %v1771
          %v2357 = vunpack.c.h.b16 %v1771
          %v2358 = vunpack.c.l.b16 %v1772
          %v2359 = vunpack.c.h.b16 %v1772
          %v2360 = vunpack.c.l.b16 %v1773
          %v2361 = vunpack.c.h.b16 %v1773
          %v2362 = vunpack.c.l.b16 %v1774
          %v2363 = vunpack.c.h.b16 %v1774
          %v2364 = vunpack.c.l.b16 %v1775
          %v2365 = vunpack.c.h.b16 %v1775
          %v2366 = vunpack.c.l.b16 %v1776
          %v2367 = vunpack.c.h.b16 %v1776
          %v2368 = vunpack.c.l.b16 %v1777
          %v2369 = vunpack.c.h.b16 %v1777
          %v2370 = vunpack.c.l.b16 %v1778
          %v2371 = vunpack.c.h.b16 %v1778
          %v2372 = vunpack.c.l.b16 %v1779
          %v2373 = vunpack.c.h.b16 %v1779
          %v2374 = vunpack.c.l.b16 %v1780
          %v2375 = vunpack.c.h.b16 %v1780
          %v2376 = vunpack.c.l.b16 %v1781
          %v2377 = vunpack.c.h.b16 %v1781
          %v2378 = vunpack.c.l.b16 %v1782
          %v2379 = vunpack.c.h.b16 %v1782
          %v2380 = vunpack.c.l.b16 %v1783
          %v2381 = vunpack.c.h.b16 %v1783
          %v2382 = vpack.c.b16 %v2002, %v1998
          %v2383 = vpack.c.b16 %v2003, %v1999
          %v2384 = vpack.c.b16 %v2004, %v2000
          %v2385 = vpack.c.b16 %v2005, %v2001
          %v2386 = vpack.c.b16 %v2010, %v2006
          %v2387 = vpack.c.b16 %v2011, %v2007
          %v2388 = vpack.c.b16 %v2012, %v2008
          %v2389 = vpack.c.b16 %v2013, %v2009
          %v2390 = vpack.c.b16 %v2018, %v2014
          %v2391 = vpack.c.b16 %v2019, %v2015
          %v2392 = vpack.c.b16 %v2020, %v2016
          %v2393 = vpack.c.b16 %v2021, %v2017
          %v2394 = vpack.c.b16 %v2026, %v2022
          %v2395 = vpack.c.b16 %v2027, %v2023
          %v2396 = vpack.c.b16 %v2028, %v2024
          %v2397 = vpack.c.b16 %v2029, %v2025
          %v2398 = vpack.c.b16 %v2034, %v2030
          %v2399 = vpack.c.b16 %v2035, %v2031
          %v2400 = vpack.c.b16 %v2036, %v2032
          %v2401 = vpack.c.b16 %v2037, %v2033
          %v2402 = vpack.c.b16 %v2042, %v2038
          %v2403 = vpack.c.b16 %v2043, %v2039
          %v2404 = vpack.c.b16 %v2044, %v2040
          %v2405 = vpack.c.b16 %v2045, %v2041
          %v2406 = vpack.c.b16 %v2050, %v2046
          %v2407 = vpack.c.b16 %v2051, %v2047
          %v2408 = vpack.c.b16 %v2052, %v2048
          %v2409 = vpack.c.b16 %v2053, %v2049
          %v2410 = vpack.c.b16 %v2058, %v2054
          %v2411 = vpack.c.b16 %v2059, %v2055
          %v2412 = vpack.c.b16 %v2060, %v2056
          %v2413 = vpack.c.b16 %v2061, %v2057
          %v2414 = vpack.c.b16 %v2066, %v2062
          %v2415 = vpack.c.b16 %v2067, %v2063
          %v2416 = vpack.c.b16 %v2068, %v2064
          %v2417 = vpack.c.b16 %v2069, %v2065
          %v2418 = vpack.c.b16 %v2074, %v2070
          %v2419 = vpack.c.b16 %v2075, %v2071
          %v2420 = vpack.c.b16 %v2076, %v2072
          %v2421 = vpack.c.b16 %v2077, %v2073
          %v2422 = vpack.c.b16 %v2082, %v2078
          %v2423 = vpack.c.b16 %v2083, %v2079
          %v2424 = vpack.c.b16 %v2084, %v2080
          %v2425 = vpack.c.b16 %v2085, %v2081
          %v2426 = vpack.c.b16 %v2090, %v2086
          %v2427 = vpack.c.b16 %v2091, %v2087
          %v2428 = vpack.c.b16 %v2092, %v2088
          %v2429 = vpack.c.b16 %v2093, %v2089
          %v2430 = vpack.c.b16 %v2098, %v2094
          %v2431 = vpack.c.b16 %v2099, %v2095
          %v2432 = vpack.c.b16 %v2100, %v2096
          %v2433 = vpack.c.b16 %v2101, %v2097
          %v2434 = vpack.c.b16 %v2106, %v2102
          %v2435 = vpack.c.b16 %v2107, %v2103
          %v2436 = vpack.c.b16 %v2108, %v2104
          %v2437 = vpack.c.b16 %v2109, %v2105
          %v2438 = vpack.c.b16 %v2114, %v2110
          %v2439 = vpack.c.b16 %v2115, %v2111
          %v2440 = vpack.c.b16 %v2116, %v2112
          %v2441 = vpack.c.b16 %v2117, %v2113
          %v2442 = vpack.c.b16 %v2122, %v2118
          %v2443 = vpack.c.b16 %v2123, %v2119
          %v2444 = vpack.c.b16 %v2124, %v2120
          %v2445 = vpack.c.b16 %v2125, %v2121
          %v2446 = vpack.c.b16 %v2130, %v2126
          %v2447 = vpack.c.b16 %v2131, %v2127
          %v2448 = vpack.c.b16 %v2132, %v2128
          %v2449 = vpack.c.b16 %v2133, %v2129
          %v2450 = vpack.c.b16 %v2138, %v2134
          %v2451 = vpack.c.b16 %v2139, %v2135
          %v2452 = vpack.c.b16 %v2140, %v2136
          %v2453 = vpack.c.b16 %v2141, %v2137
          %v2454 = vpack.c.b16 %v2146, %v2142
          %v2455 = vpack.c.b16 %v2147, %v2143
          %v2456 = vpack.c.b16 %v2148, %v2144
          %v2457 = vpack.c.b16 %v2149, %v2145
          %v2458 = vpack.c.b16 %v2154, %v2150
          %v2459 = vpack.c.b16 %v2155, %v2151
          %v2460 = vpack.c.b16 %v2156, %v2152
          %v2461 = vpack.c.b16 %v2157, %v2153
          %v2462 = vpack.c.b16 %v2162, %v2158
          %v2463 = vpack.c.b16 %v2163, %v2159
          %v2464 = vpack.c.b16 %v2164, %v2160
          %v2465 = vpack.c.b16 %v2165, %v2161
          %v2466 = vpack.c.b16 %v2170, %v2166
          %v2467 = vpack.c.b16 %v2171, %v2167
          %v2468 = vpack.c.b16 %v2172, %v2168
          %v2469 = vpack.c.b16 %v2173, %v2169
          %v2470 = vpack.c.b16 %v2178, %v2174
          %v2471 = vpack.c.b16 %v2179, %v2175
          %v2472 = vpack.c.b16 %v2180, %v2176
          %v2473 = vpack.c.b16 %v2181, %v2177
          %v2474 = vpack.c.b16 %v2186, %v2182
          %v2475 = vpack.c.b16 %v2187, %v2183
          %v2476 = vpack.c.b16 %v2188, %v2184
          %v2477 = vpack.c.b16 %v2189, %v2185
          %v2478 = vpack.c.b16 %v2194, %v2190
          %v2479 = vpack.c.b16 %v2195, %v2191
          %v2480 = vpack.c.b16 %v2196, %v2192
          %v2481 = vpack.c.b16 %v2197, %v2193
          %v2482 = vpack.c.b16 %v2202, %v2198
          %v2483 = vpack.c.b16 %v2203, %v2199
          %v2484 = vpack.c.b16 %v2204, %v2200
          %v2485 = vpack.c.b16 %v2205, %v2201
          %v2486 = vpack.c.b16 %v2210, %v2206
          %v2487 = vpack.c.b16 %v2211, %v2207
          %v2488 = vpack.c.b16 %v2212, %v2208
          %v2489 = vpack.c.b16 %v2213, %v2209
          %v2490 = vpack.c.b16 %v2218, %v2214
          %v2491 = vpack.c.b16 %v2219, %v2215
          %v2492 = vpack.c.b16 %v2220, %v2216
          %v2493 = vpack.c.b16 %v2221, %v2217
          %v2494 = vpack.c.b16 %v2226, %v2222
          %v2495 = vpack.c.b16 %v2227, %v2223
          %v2496 = vpack.c.b16 %v2228, %v2224
          %v2497 = vpack.c.b16 %v2229, %v2225
          %v2498 = vpack.c.b16 %v2234, %v2230
          %v2499 = vpack.c.b16 %v2235, %v2231
          %v2500 = vpack.c.b16 %v2236, %v2232
          %v2501 = vpack.c.b16 %v2237, %v2233
          %v2502 = vpack.c.b16 %v2242, %v2238
          %v2503 = vpack.c.b16 %v2243, %v2239
          %v2504 = vpack.c.b16 %v2244, %v2240
          %v2505 = vpack.c.b16 %v2245, %v2241
          %v2506 = vpack.c.b16 %v2250, %v2246
          %v2507 = vpack.c.b16 %v2251, %v2247
          %v2508 = vpack.c.b16 %v2252, %v2248
          %v2509 = vpack.c.b16 %v2253, %v2249
          %v2510 = vpack.c.b16 %v2258, %v2254
          %v2511 = vpack.c.b16 %v2259, %v2255
          %v2512 = vpack.c.b16 %v2260, %v2256
          %v2513 = vpack.c.b16 %v2261, %v2257
          %v2514 = vpack.c.b16 %v2266, %v2262
          %v2515 = vpack.c.b16 %v2267, %v2263
          %v2516 = vpack.c.b16 %v2268, %v2264
          %v2517 = vpack.c.b16 %v2269, %v2265
          %v2518 = vpack.c.b16 %v2274, %v2270
          %v2519 = vpack.c.b16 %v2275, %v2271
          %v2520 = vpack.c.b16 %v2276, %v2272
          %v2521 = vpack.c.b16 %v2277, %v2273
          %v2522 = vpack.c.b16 %v2282, %v2278
          %v2523 = vpack.c.b16 %v2283, %v2279
          %v2524 = vpack.c.b16 %v2284, %v2280
          %v2525 = vpack.c.b16 %v2285, %v2281
          %v2526 = vpack.c.b16 %v2290, %v2286
          %v2527 = vpack.c.b16 %v2291, %v2287
          %v2528 = vpack.c.b16 %v2292, %v2288
          %v2529 = vpack.c.b16 %v2293, %v2289
          %v2530 = vpack.c.b16 %v2298, %v2294
          %v2531 = vpack.c.b16 %v2299, %v2295
          %v2532 = vpack.c.b16 %v2300, %v2296
          %v2533 = vpack.c.b16 %v2301, %v2297
          %v2534 = vpack.c.b16 %v2306, %v2302
          %v2535 = vpack.c.b16 %v2307, %v2303
          %v2536 = vpack.c.b16 %v2308, %v2304
          %v2537 = vpack.c.b16 %v2309, %v2305
          %v2538 = vpack.c.b16 %v2314, %v2310
          %v2539 = vpack.c.b16 %v2315, %v2311
          %v2540 = vpack.c.b16 %v2316, %v2312
          %v2541 = vpack.c.b16 %v2317, %v2313
          %v2542 = vpack.c.b16 %v2322, %v2318
          %v2543 = vpack.c.b16 %v2323, %v2319
          %v2544 = vpack.c.b16 %v2324, %v2320
          %v2545 = vpack.c.b16 %v2325, %v2321
          %v2546 = vpack.c.b16 %v2330, %v2326
          %v2547 = vpack.c.b16 %v2331, %v2327
          %v2548 = vpack.c.b16 %v2332, %v2328
          %v2549 = vpack.c.b16 %v2333, %v2329
          %v2550 = vpack.c.b16 %v2338, %v2334
          %v2551 = vpack.c.b16 %v2339, %v2335
          %v2552 = vpack.c.b16 %v2340, %v2336
          %v2553 = vpack.c.b16 %v2341, %v2337
          %v2554 = vpack.c.b16 %v2346, %v2342
          %v2555 = vpack.c.b16 %v2347, %v2343
          %v2556 = vpack.c.b16 %v2348, %v2344
          %v2557 = vpack.c.b16 %v2349, %v2345
          %v2558 = vpack.c.b16 %v2354, %v2350
          %v2559 = vpack.c.b16 %v2355, %v2351
          %v2560 = vpack.c.b16 %v2356, %v2352
          %v2561 = vpack.c.b16 %v2357, %v2353
          %v2562 = vpack.c.b16 %v2362, %v2358
          %v2563 = vpack.c.b16 %v2363, %v2359
          %v2564 = vpack.c.b16 %v2364, %v2360
          %v2565 = vpack.c.b16 %v2365, %v2361
          %v2566 = vpack.c.b16 %v2370, %v2366
          %v2567 = vpack.c.b16 %v2371, %v2367
          %v2568 = vpack.c.b16 %v2372, %v2368
          %v2569 = vpack.c.b16 %v2373, %v2369
          %v2570 = vpack.c.b16 %v2378, %v2374
          %v2571 = vpack.c.b16 %v2379, %v2375
          %v2572 = vpack.c.b16 %v2380, %v2376
          %v2573 = vpack.c.b16 %v2381, %v2377
          %2766 = vmatprep.subr.bf16.mxu0 %v2383
          %2767 = vmatpush1.bf16.msra.mxu0 %v2382
          %2768 = vmatprep.subr.bf16.mxu0 %v2387
          %2769 = vmatpush1.bf16.msra.mxu0 %v2386
          %2770 = vmatprep.subr.bf16.mxu0 %v2391
          %2771 = vmatpush1.bf16.msra.mxu0 %v2390
          %2772 = vmatprep.subr.bf16.mxu0 %v2395
          %2773 = vmatpush1.bf16.msra.mxu0 %v2394
          %2774 = vmatprep.subr.bf16.mxu0 %v2399
          %2775 = vmatpush1.bf16.msra.mxu0 %v2398
          %2776 = vmatprep.subr.bf16.mxu0 %v2403
          %2777 = vmatpush1.bf16.msra.mxu0 %v2402
          %2778 = vmatprep.subr.bf16.mxu0 %v2407
          %2779 = vmatpush1.bf16.msra.mxu0 %v2406
          %2780 = vmatprep.subr.bf16.mxu0 %v2411
          %2781 = vmatpush1.bf16.msra.mxu0 %v2410
          %2782 = vmatprep.subr.bf16.mxu0 %v2415
          %2783 = vmatpush1.bf16.msra.mxu0 %v2414
          %2784 = vmatprep.subr.bf16.mxu0 %v2419
          %2785 = vmatpush1.bf16.msra.mxu0 %v2418
          %2786 = vmatprep.subr.bf16.mxu0 %v2423
          %2787 = vmatpush1.bf16.msra.mxu0 %v2422
          %2788 = vmatprep.subr.bf16.mxu0 %v2427
          %2789 = vmatpush1.bf16.msra.mxu0 %v2426
          %2790 = vmatprep.subr.bf16.mxu0 %v2431
          %2791 = vmatpush1.bf16.msra.mxu0 %v2430
          %2792 = vmatprep.subr.bf16.mxu0 %v2435
          %2793 = vmatpush1.bf16.msra.mxu0 %v2434
          %2794 = vmatprep.subr.bf16.mxu0 %v2439
          %2795 = vmatpush1.bf16.msra.mxu0 %v2438
          %2796 = vmatprep.subr.bf16.mxu0 %v2443
          %2797 = vmatpush1.bf16.msra.mxu0 %v2442
          %2798 = vmatprep.mubr.bf16.mxu0 %v1587
          %2799 = vmatmul.mubr.bf16.gmra.mrb[0].mxu0 %v1586
          %v2800 = vpop.f32.mrb[0].mxu0
          %v2801 = vadd.f32 %v1789, %v2800
          %v2802 = vpop.f32.mrb[0].mxu0
          %v2803 = vadd.f32 %v1793, %v2802
          %v2804 = vpop.f32.mrb[0].mxu0
          %v2805 = vpop.f32.mrb[0].mxu0
          %2806 = vdwg.mxu0
          %2807 = vmatprep.subr.bf16.mxu0 %v2447
          %2808 = vmatpush1.bf16.msra.mxu0 %v2446
          %2809 = vmatprep.subr.bf16.mxu0 %v2451
          %2810 = vmatpush1.bf16.msra.mxu0 %v2450
          %2811 = vmatprep.subr.bf16.mxu0 %v2455
          %2812 = vmatpush1.bf16.msra.mxu0 %v2454
          %2813 = vmatprep.subr.bf16.mxu0 %v2459
          %2814 = vmatpush1.bf16.msra.mxu0 %v2458
          %2815 = vmatprep.subr.bf16.mxu0 %v2463
          %2816 = vmatpush1.bf16.msra.mxu0 %v2462
          %2817 = vmatprep.subr.bf16.mxu0 %v2467
          %2818 = vmatpush1.bf16.msra.mxu0 %v2466
          %2819 = vmatprep.subr.bf16.mxu0 %v2471
          %2820 = vmatpush1.bf16.msra.mxu0 %v2470
          %2821 = vmatprep.subr.bf16.mxu0 %v2475
          %2822 = vmatpush1.bf16.msra.mxu0 %v2474
          %2823 = vmatprep.subr.bf16.mxu0 %v2479
          %2824 = vmatpush1.bf16.msra.mxu0 %v2478
          %2825 = vmatprep.subr.bf16.mxu0 %v2483
          %2826 = vmatpush1.bf16.msra.mxu0 %v2482
          %2827 = vmatprep.subr.bf16.mxu0 %v2487
          %2828 = vmatpush1.bf16.msra.mxu0 %v2486
          %2829 = vmatprep.subr.bf16.mxu0 %v2491
          %2830 = vmatpush1.bf16.msra.mxu0 %v2490
          %2831 = vmatprep.subr.bf16.mxu0 %v2495
          %2832 = vmatpush1.bf16.msra.mxu0 %v2494
          %2833 = vmatprep.subr.bf16.mxu0 %v2499
          %2834 = vmatpush1.bf16.msra.mxu0 %v2498
          %2835 = vmatprep.subr.bf16.mxu0 %v2503
          %2836 = vmatpush1.bf16.msra.mxu0 %v2502
          %2837 = vmatprep.subr.bf16.mxu0 %v2507
          %2838 = vmatpush1.bf16.msra.mxu0 %v2506
          %2839 = vmatprep.mubr.bf16.mxu0 %v1589
          %2840 = vmatmul.mubr.bf16.gmra.mrb[0].mxu0 %v1588
          %v2841 = vpop.f32.mrb[0].mxu0
          %v2842 = vadd.f32 %v2801, %v2841
          %v2843 = vpop.f32.mrb[0].mxu0
          %v2844 = vadd.f32 %v2803, %v2843
          %v2845 = vpop.f32.mrb[0].mxu0
          %v2846 = vpop.f32.mrb[0].mxu0
          %2847 = vdwg.mxu0
          %2848 = vmatprep.subr.bf16.mxu0 %v2511
          %2849 = vmatpush1.bf16.msra.mxu0 %v2510
          %2850 = vmatprep.subr.bf16.mxu0 %v2515
          %2851 = vmatpush1.bf16.msra.mxu0 %v2514
          %2852 = vmatprep.subr.bf16.mxu0 %v2519
          %2853 = vmatpush1.bf16.msra.mxu0 %v2518
          %2854 = vmatprep.subr.bf16.mxu0 %v2523
          %2855 = vmatpush1.bf16.msra.mxu0 %v2522
          %2856 = vmatprep.subr.bf16.mxu0 %v2527
          %2857 = vmatpush1.bf16.msra.mxu0 %v2526
          %2858 = vmatprep.subr.bf16.mxu0 %v2531
          %2859 = vmatpush1.bf16.msra.mxu0 %v2530
          %2860 = vmatprep.subr.bf16.mxu0 %v2535
          %2861 = vmatpush1.bf16.msra.mxu0 %v2534
          %2862 = vmatprep.subr.bf16.mxu0 %v2539
          %2863 = vmatpush1.bf16.msra.mxu0 %v2538
          %2864 = vmatprep.subr.bf16.mxu0 %v2543
          %2865 = vmatpush1.bf16.msra.mxu0 %v2542
          %2866 = vmatprep.subr.bf16.mxu0 %v2547
          %2867 = vmatpush1.bf16.msra.mxu0 %v2546
          %2868 = vmatprep.subr.bf16.mxu0 %v2551
          %2869 = vmatpush1.bf16.msra.mxu0 %v2550
          %2870 = vmatprep.subr.bf16.mxu0 %v2555
          %2871 = vmatpush1.bf16.msra.mxu0 %v2554
          %2872 = vmatprep.subr.bf16.mxu0 %v2559
          %2873 = vmatpush1.bf16.msra.mxu0 %v2558
          %2874 = vmatprep.subr.bf16.mxu0 %v2563
          %2875 = vmatpush1.bf16.msra.mxu0 %v2562
          %2876 = vmatprep.subr.bf16.mxu0 %v2567
          %2877 = vmatpush1.bf16.msra.mxu0 %v2566
          %2878 = vmatprep.subr.bf16.mxu0 %v2571
          %2879 = vmatpush1.bf16.msra.mxu0 %v2570
          %2880 = vmatprep.mubr.bf16.mxu0 %v1591
          %2881 = vmatmul.mubr.bf16.gmra.mrb[0].mxu0 %v1590
          %v2882 = vpop.f32.mrb[0].mxu0
          %v2883 = vadd.f32 %v2842, %v2882
          %v2884 = vpop.f32.mrb[0].mxu0
          %v2885 = vadd.f32 %v2844, %v2884
          %v2886 = vpop.f32.mrb[0].mxu0
          %v2887 = vpop.f32.mrb[0].mxu0
          %2888 = vdwg.mxu0
          %2889 = vmatprep.subr.bf16.mxu0 %v2385
          %2890 = vmatpush1.bf16.msra.mxu0 %v2384
          %2891 = vmatprep.subr.bf16.mxu0 %v2389
          %2892 = vmatpush1.bf16.msra.mxu0 %v2388
          %2893 = vmatprep.subr.bf16.mxu0 %v2393
          %2894 = vmatpush1.bf16.msra.mxu0 %v2392
          %2895 = vmatprep.subr.bf16.mxu0 %v2397
          %2896 = vmatpush1.bf16.msra.mxu0 %v2396
          %2897 = vmatprep.subr.bf16.mxu0 %v2401
          %2898 = vmatpush1.bf16.msra.mxu0 %v2400
          %2899 = vmatprep.subr.bf16.mxu0 %v2405
          %2900 = vmatpush1.bf16.msra.mxu0 %v2404
          %2901 = vmatprep.subr.bf16.mxu0 %v2409
          %2902 = vmatpush1.bf16.msra.mxu0 %v2408
          %2903 = vmatprep.subr.bf16.mxu0 %v2413
          %2904 = vmatpush1.bf16.msra.mxu0 %v2412
          %2905 = vmatprep.subr.bf16.mxu0 %v2417
          %2906 = vmatpush1.bf16.msra.mxu0 %v2416
          %2907 = vmatprep.subr.bf16.mxu0 %v2421
          %2908 = vmatpush1.bf16.msra.mxu0 %v2420
          %2909 = vmatprep.subr.bf16.mxu0 %v2425
          %2910 = vmatpush1.bf16.msra.mxu0 %v2424
          %2911 = vmatprep.subr.bf16.mxu0 %v2429
          %2912 = vmatpush1.bf16.msra.mxu0 %v2428
          %2913 = vmatprep.subr.bf16.mxu0 %v2433
          %2914 = vmatpush1.bf16.msra.mxu0 %v2432
          %2915 = vmatprep.subr.bf16.mxu0 %v2437
          %2916 = vmatpush1.bf16.msra.mxu0 %v2436
          %2917 = vmatprep.subr.bf16.mxu0 %v2441
          %2918 = vmatpush1.bf16.msra.mxu0 %v2440
          %2919 = vmatprep.subr.bf16.mxu0 %v2445
          %2920 = vmatpush1.bf16.msra.mxu0 %v2444
          %2921 = vmatprep.mubr.bf16.mxu0 %v1587
          %2922 = vmatmul.mubr.bf16.gmra.mrb[0].mxu0 %v1586
          %v2923 = vpop.f32.mrb[0].mxu0
          %v2924 = vadd.f32 %v1797, %v2923
          %v2925 = vpop.f32.mrb[0].mxu0
          %v2926 = vadd.f32 %v1801, %v2925
          %v2927 = vpop.f32.mrb[0].mxu0
          %v2928 = vpop.f32.mrb[0].mxu0
          %2929 = vdwg.mxu0
          %2930 = vmatprep.subr.bf16.mxu0 %v2449
          %2931 = vmatpush1.bf16.msra.mxu0 %v2448
          %2932 = vmatprep.subr.bf16.mxu0 %v2453
          %2933 = vmatpush1.bf16.msra.mxu0 %v2452
          %2934 = vmatprep.subr.bf16.mxu0 %v2457
          %2935 = vmatpush1.bf16.msra.mxu0 %v2456
          %2936 = vmatprep.subr.bf16.mxu0 %v2461
          %2937 = vmatpush1.bf16.msra.mxu0 %v2460
          %2938 = vmatprep.subr.bf16.mxu0 %v2465
          %2939 = vmatpush1.bf16.msra.mxu0 %v2464
          %2940 = vmatprep.subr.bf16.mxu0 %v2469
          %2941 = vmatpush1.bf16.msra.mxu0 %v2468
          %2942 = vmatprep.subr.bf16.mxu0 %v2473
          %2943 = vmatpush1.bf16.msra.mxu0 %v2472
          %2944 = vmatprep.subr.bf16.mxu0 %v2477
          %2945 = vmatpush1.bf16.msra.mxu0 %v2476
          %2946 = vmatprep.subr.bf16.mxu0 %v2481
          %2947 = vmatpush1.bf16.msra.mxu0 %v2480
          %2948 = vmatprep.subr.bf16.mxu0 %v2485
          %2949 = vmatpush1.bf16.msra.mxu0 %v2484
          %2950 = vmatprep.subr.bf16.mxu0 %v2489
          %2951 = vmatpush1.bf16.msra.mxu0 %v2488
          %2952 = vmatprep.subr.bf16.mxu0 %v2493
          %2953 = vmatpush1.bf16.msra.mxu0 %v2492
          %2954 = vmatprep.subr.bf16.mxu0 %v2497
          %2955 = vmatpush1.bf16.msra.mxu0 %v2496
          %2956 = vmatprep.subr.bf16.mxu0 %v2501
          %2957 = vmatpush1.bf16.msra.mxu0 %v2500
          %2958 = vmatprep.subr.bf16.mxu0 %v2505
          %2959 = vmatpush1.bf16.msra.mxu0 %v2504
          %2960 = vmatprep.subr.bf16.mxu0 %v2509
          %2961 = vmatpush1.bf16.msra.mxu0 %v2508
          %2962 = vmatprep.mubr.bf16.mxu0 %v1589
          %2963 = vmatmul.mubr.bf16.gmra.mrb[0].mxu0 %v1588
          %v2964 = vpop.f32.mrb[0].mxu0
          %v2965 = vadd.f32 %v2924, %v2964
          %v2966 = vpop.f32.mrb[0].mxu0
          %v2967 = vadd.f32 %v2926, %v2966
          %v2968 = vpop.f32.mrb[0].mxu0
          %v2969 = vpop.f32.mrb[0].mxu0
          %2970 = vdwg.mxu0
          %2971 = vmatprep.subr.bf16.mxu0 %v2513
          %2972 = vmatpush1.bf16.msra.mxu0 %v2512
          %2973 = vmatprep.subr.bf16.mxu0 %v2517
          %2974 = vmatpush1.bf16.msra.mxu0 %v2516
          %2975 = vmatprep.subr.bf16.mxu0 %v2521
          %2976 = vmatpush1.bf16.msra.mxu0 %v2520
          %2977 = vmatprep.subr.bf16.mxu0 %v2525
          %2978 = vmatpush1.bf16.msra.mxu0 %v2524
          %2979 = vmatprep.subr.bf16.mxu0 %v2529
          %2980 = vmatpush1.bf16.msra.mxu0 %v2528
          %2981 = vmatprep.subr.bf16.mxu0 %v2533
          %2982 = vmatpush1.bf16.msra.mxu0 %v2532
          %2983 = vmatprep.subr.bf16.mxu0 %v2537
          %2984 = vmatpush1.bf16.msra.mxu0 %v2536
          %2985 = vmatprep.subr.bf16.mxu0 %v2541
          %2986 = vmatpush1.bf16.msra.mxu0 %v2540
          %2987 = vmatprep.subr.bf16.mxu0 %v2545
          %2988 = vmatpush1.bf16.msra.mxu0 %v2544
          %2989 = vmatprep.subr.bf16.mxu0 %v2549
          %2990 = vmatpush1.bf16.msra.mxu0 %v2548
          %2991 = vmatprep.subr.bf16.mxu0 %v2553
          %2992 = vmatpush1.bf16.msra.mxu0 %v2552
          %2993 = vmatprep.subr.bf16.mxu0 %v2557
          %2994 = vmatpush1.bf16.msra.mxu0 %v2556
          %2995 = vmatprep.subr.bf16.mxu0 %v2561
          %2996 = vmatpush1.bf16.msra.mxu0 %v2560
          %2997 = vmatprep.subr.bf16.mxu0 %v2565
          %2998 = vmatpush1.bf16.msra.mxu0 %v2564
          %2999 = vmatprep.subr.bf16.mxu0 %v2569
          %3000 = vmatpush1.bf16.msra.mxu0 %v2568
          %3001 = vmatprep.subr.bf16.mxu0 %v2573
          %3002 = vmatpush1.bf16.msra.mxu0 %v2572
          %3003 = vmatprep.mubr.bf16.mxu0 %v1591
          %3004 = vmatmul.mubr.bf16.gmra.mrb[0].mxu0 %v1590
          %v3005 = vpop.f32.mrb[0].mxu0
          %v3006 = vadd.f32 %v2965, %v3005
          %v3007 = vpop.f32.mrb[0].mxu0
          %v3008 = vadd.f32 %v2967, %v3007
          %v3009 = vpop.f32.mrb[0].mxu0
          %v3010 = vpop.f32.mrb[0].mxu0
          %3011 = vdwg.mxu0
          %v3012 = vmax.f32 %v2883, 0.0
          %v3013 = vmax.f32 %v2885, 0.0
          %v3014 = vmax.f32 %v3006, 0.0
          %v3015 = vmax.f32 %v3008, 0.0
          %v3016 = vpack.c.bf16 %v3012, %v3012
          %v3017 = vpack.c.bf16 %v3013, %v3013
          %v3018 = vpack.c.bf16 %v3014, %v3014
          %v3019 = vpack.c.bf16 %v3015, %v3015
          %v3020 = vld [vmem:[#allocation18] sm:$0xff]
          %v3021 = vld [vmem:[#allocation18 + $0x8] sm:$0xff]
          %v3022 = vld [vmem:[#allocation18 + $0x10] sm:$0xff]
          %v3023 = vld [vmem:[#allocation18 + $0x18] sm:$0xff]
          %v3024 = vld [vmem:[#allocation18 + $0x20] sm:$0xff]
          %v3025 = vld [vmem:[#allocation18 + $0x28] sm:$0xff]
          %v3026 = vld [vmem:[#allocation18 + $0x30] sm:$0xff]
          %v3027 = vld [vmem:[#allocation18 + $0x38] sm:$0xff]
          %v3028 = vld [vmem:[#allocation18 + $0x40] sm:$0xff]
          %v3029 = vld [vmem:[#allocation18 + $0x48] sm:$0xff]
          %v3030 = vld [vmem:[#allocation18 + $0x50] sm:$0xff]
          %v3031 = vld [vmem:[#allocation18 + $0x58] sm:$0xff]
          %v3032 = vld [vmem:[#allocation18 + $0x60] sm:$0xff]
          %v3033 = vld [vmem:[#allocation18 + $0x68] sm:$0xff]
          %v3034 = vld [vmem:[#allocation18 + $0x70] sm:$0xff]
          %v3035 = vld [vmem:[#allocation18 + $0x78] sm:$0xff]
          %v3036 = vld [vmem:[#allocation18 + $0x80] sm:$0xff]
          %v3037 = vld [vmem:[#allocation18 + $0x88] sm:$0xff]
          %v3038 = vld [vmem:[#allocation18 + $0x90] sm:$0xff]
          %v3039 = vld [vmem:[#allocation18 + $0x98] sm:$0xff]
          %v3040 = vld [vmem:[#allocation18 + $0xa0] sm:$0xff]
          %v3041 = vld [vmem:[#allocation18 + $0xa8] sm:$0xff]
          %v3042 = vld [vmem:[#allocation18 + $0xb0] sm:$0xff]
          %v3043 = vld [vmem:[#allocation18 + $0xb8] sm:$0xff]
          %v3044 = vld [vmem:[#allocation18 + $0xc0] sm:$0xff]
          %v3045 = vld [vmem:[#allocation18 + $0xc8] sm:$0xff]
          %v3046 = vld [vmem:[#allocation18 + $0xd0] sm:$0xff]
          %v3047 = vld [vmem:[#allocation18 + $0xd8] sm:$0xff]
          %v3048 = vld [vmem:[#allocation18 + $0xe0] sm:$0xff]
          %v3049 = vld [vmem:[#allocation18 + $0xe8] sm:$0xff]
          %v3050 = vld [vmem:[#allocation18 + $0xf0] sm:$0xff]
          %v3051 = vld [vmem:[#allocation18 + $0xf8] sm:$0xff]
          %v3052 = vld [vmem:[#allocation18 + $0x100] sm:$0xff]
          %v3053 = vld [vmem:[#allocation18 + $0x108] sm:$0xff]
          %v3054 = vld [vmem:[#allocation18 + $0x110] sm:$0xff]
          %v3055 = vld [vmem:[#allocation18 + $0x118] sm:$0xff]
          %v3056 = vld [vmem:[#allocation18 + $0x120] sm:$0xff]
          %v3057 = vld [vmem:[#allocation18 + $0x128] sm:$0xff]
          %v3058 = vld [vmem:[#allocation18 + $0x130] sm:$0xff]
          %v3059 = vld [vmem:[#allocation18 + $0x138] sm:$0xff]
          %v3060 = vld [vmem:[#allocation18 + $0x140] sm:$0xff]
          %v3061 = vld [vmem:[#allocation18 + $0x148] sm:$0xff]
          %v3062 = vld [vmem:[#allocation18 + $0x150] sm:$0xff]
          %v3063 = vld [vmem:[#allocation18 + $0x158] sm:$0xff]
          %v3064 = vld [vmem:[#allocation18 + $0x160] sm:$0xff]
          %v3065 = vld [vmem:[#allocation18 + $0x168] sm:$0xff]
          %v3066 = vld [vmem:[#allocation18 + $0x170] sm:$0xff]
          %v3067 = vld [vmem:[#allocation18 + $0x178] sm:$0xff]
          %v3068 = vld [vmem:[#allocation18 + $0x180] sm:$0xff]
          %v3069 = vld [vmem:[#allocation18 + $0x188] sm:$0xff]
          %v3070 = vld [vmem:[#allocation18 + $0x190] sm:$0xff]
          %v3071 = vld [vmem:[#allocation18 + $0x198] sm:$0xff]
          %v3072 = vld [vmem:[#allocation18 + $0x1a0] sm:$0xff]
          %v3073 = vld [vmem:[#allocation18 + $0x1a8] sm:$0xff]
          %v3074 = vld [vmem:[#allocation18 + $0x1b0] sm:$0xff]
          %v3075 = vld [vmem:[#allocation18 + $0x1b8] sm:$0xff]
          %v3076 = vld [vmem:[#allocation18 + $0x1c0] sm:$0xff]
          %v3077 = vld [vmem:[#allocation18 + $0x1c8] sm:$0xff]
          %v3078 = vld [vmem:[#allocation18 + $0x1d0] sm:$0xff]
          %v3079 = vld [vmem:[#allocation18 + $0x1d8] sm:$0xff]
          %v3080 = vld [vmem:[#allocation18 + $0x1e0] sm:$0xff]
          %v3081 = vld [vmem:[#allocation18 + $0x1e8] sm:$0xff]
          %v3082 = vld [vmem:[#allocation18 + $0x1f0] sm:$0xff]
          %v3083 = vld [vmem:[#allocation18 + $0x1f8] sm:$0xff]
          %v3084 = vld [vmem:[#allocation19] sm:$0x3]
          %v3086 = vlaneseq
          %v3087 = vshrl.u32 %v3086, 7
          %v3088 = vsub.s32 0, %v3087
          %v3089 = vrot.slane %v3084, %v3088
          %v3090 = vlaneseq
          %v3091 = vshrl.u32 %v3090, 7
          %v3092 = vsub.s32 1, %v3091
          %v3093 = vrot.slane %v3084, %v3092
          %v3160 = vunpack.c.l.b16 %v3020
          %v3161 = vunpack.c.h.b16 %v3020
          %v3162 = vunpack.c.l.b16 %v3021
          %v3163 = vunpack.c.h.b16 %v3021
          %v3164 = vunpack.c.l.b16 %v3022
          %v3165 = vunpack.c.h.b16 %v3022
          %v3166 = vunpack.c.l.b16 %v3023
          %v3167 = vunpack.c.h.b16 %v3023
          %v3168 = vunpack.c.l.b16 %v3024
          %v3169 = vunpack.c.h.b16 %v3024
          %v3170 = vunpack.c.l.b16 %v3025
          %v3171 = vunpack.c.h.b16 %v3025
          %v3172 = vunpack.c.l.b16 %v3026
          %v3173 = vunpack.c.h.b16 %v3026
          %v3174 = vunpack.c.l.b16 %v3027
          %v3175 = vunpack.c.h.b16 %v3027
          %v3176 = vunpack.c.l.b16 %v3028
          %v3177 = vunpack.c.h.b16 %v3028
          %v3178 = vunpack.c.l.b16 %v3029
          %v3179 = vunpack.c.h.b16 %v3029
          %v3180 = vunpack.c.l.b16 %v3030
          %v3181 = vunpack.c.h.b16 %v3030
          %v3182 = vunpack.c.l.b16 %v3031
          %v3183 = vunpack.c.h.b16 %v3031
          %v3184 = vunpack.c.l.b16 %v3032
          %v3185 = vunpack.c.h.b16 %v3032
          %v3186 = vunpack.c.l.b16 %v3033
          %v3187 = vunpack.c.h.b16 %v3033
          %v3188 = vunpack.c.l.b16 %v3034
          %v3189 = vunpack.c.h.b16 %v3034
          %v3190 = vunpack.c.l.b16 %v3035
          %v3191 = vunpack.c.h.b16 %v3035
          %v3192 = vunpack.c.l.b16 %v3036
          %v3193 = vunpack.c.h.b16 %v3036
          %v3194 = vunpack.c.l.b16 %v3037
          %v3195 = vunpack.c.h.b16 %v3037
          %v3196 = vunpack.c.l.b16 %v3038
          %v3197 = vunpack.c.h.b16 %v3038
          %v3198 = vunpack.c.l.b16 %v3039
          %v3199 = vunpack.c.h.b16 %v3039
          %v3200 = vunpack.c.l.b16 %v3040
          %v3201 = vunpack.c.h.b16 %v3040
          %v3202 = vunpack.c.l.b16 %v3041
          %v3203 = vunpack.c.h.b16 %v3041
          %v3204 = vunpack.c.l.b16 %v3042
          %v3205 = vunpack.c.h.b16 %v3042
          %v3206 = vunpack.c.l.b16 %v3043
          %v3207 = vunpack.c.h.b16 %v3043
          %v3208 = vunpack.c.l.b16 %v3044
          %v3209 = vunpack.c.h.b16 %v3044
          %v3210 = vunpack.c.l.b16 %v3045
          %v3211 = vunpack.c.h.b16 %v3045
          %v3212 = vunpack.c.l.b16 %v3046
          %v3213 = vunpack.c.h.b16 %v3046
          %v3214 = vunpack.c.l.b16 %v3047
          %v3215 = vunpack.c.h.b16 %v3047
          %v3216 = vunpack.c.l.b16 %v3048
          %v3217 = vunpack.c.h.b16 %v3048
          %v3218 = vunpack.c.l.b16 %v3049
          %v3219 = vunpack.c.h.b16 %v3049
          %v3220 = vunpack.c.l.b16 %v3050
          %v3221 = vunpack.c.h.b16 %v3050
          %v3222 = vunpack.c.l.b16 %v3051
          %v3223 = vunpack.c.h.b16 %v3051
          %v3224 = vunpack.c.l.b16 %v3052
          %v3225 = vunpack.c.h.b16 %v3052
          %v3226 = vunpack.c.l.b16 %v3053
          %v3227 = vunpack.c.h.b16 %v3053
          %v3228 = vunpack.c.l.b16 %v3054
          %v3229 = vunpack.c.h.b16 %v3054
          %v3230 = vunpack.c.l.b16 %v3055
          %v3231 = vunpack.c.h.b16 %v3055
          %v3232 = vunpack.c.l.b16 %v3056
          %v3233 = vunpack.c.h.b16 %v3056
          %v3234 = vunpack.c.l.b16 %v3057
          %v3235 = vunpack.c.h.b16 %v3057
          %v3236 = vunpack.c.l.b16 %v3058
          %v3237 = vunpack.c.h.b16 %v3058
          %v3238 = vunpack.c.l.b16 %v3059
          %v3239 = vunpack.c.h.b16 %v3059
          %v3240 = vunpack.c.l.b16 %v3060
          %v3241 = vunpack.c.h.b16 %v3060
          %v3242 = vunpack.c.l.b16 %v3061
          %v3243 = vunpack.c.h.b16 %v3061
          %v3244 = vunpack.c.l.b16 %v3062
          %v3245 = vunpack.c.h.b16 %v3062
          %v3246 = vunpack.c.l.b16 %v3063
          %v3247 = vunpack.c.h.b16 %v3063
          %v3248 = vunpack.c.l.b16 %v3064
          %v3249 = vunpack.c.h.b16 %v3064
          %v3250 = vunpack.c.l.b16 %v3065
          %v3251 = vunpack.c.h.b16 %v3065
          %v3252 = vunpack.c.l.b16 %v3066
          %v3253 = vunpack.c.h.b16 %v3066
          %v3254 = vunpack.c.l.b16 %v3067
          %v3255 = vunpack.c.h.b16 %v3067
          %v3256 = vunpack.c.l.b16 %v3068
          %v3257 = vunpack.c.h.b16 %v3068
          %v3258 = vunpack.c.l.b16 %v3069
          %v3259 = vunpack.c.h.b16 %v3069
          %v3260 = vunpack.c.l.b16 %v3070
          %v3261 = vunpack.c.h.b16 %v3070
          %v3262 = vunpack.c.l.b16 %v3071
          %v3263 = vunpack.c.h.b16 %v3071
          %v3264 = vunpack.c.l.b16 %v3072
          %v3265 = vunpack.c.h.b16 %v3072
          %v3266 = vunpack.c.l.b16 %v3073
          %v3267 = vunpack.c.h.b16 %v3073
          %v3268 = vunpack.c.l.b16 %v3074
          %v3269 = vunpack.c.h.b16 %v3074
          %v3270 = vunpack.c.l.b16 %v3075
          %v3271 = vunpack.c.h.b16 %v3075
          %v3272 = vunpack.c.l.b16 %v3076
          %v3273 = vunpack.c.h.b16 %v3076
          %v3274 = vunpack.c.l.b16 %v3077
          %v3275 = vunpack.c.h.b16 %v3077
          %v3276 = vunpack.c.l.b16 %v3078
          %v3277 = vunpack.c.h.b16 %v3078
          %v3278 = vunpack.c.l.b16 %v3079
          %v3279 = vunpack.c.h.b16 %v3079
          %v3280 = vunpack.c.l.b16 %v3080
          %v3281 = vunpack.c.h.b16 %v3080
          %v3282 = vunpack.c.l.b16 %v3081
          %v3283 = vunpack.c.h.b16 %v3081
          %v3284 = vunpack.c.l.b16 %v3082
          %v3285 = vunpack.c.h.b16 %v3082
          %v3286 = vunpack.c.l.b16 %v3083
          %v3287 = vunpack.c.h.b16 %v3083
          %v3288 = vpack.c.b16 %v3162, %v3160
          %v3289 = vpack.c.b16 %v3163, %v3161
          %v3290 = vpack.c.b16 %v3166, %v3164
          %v3291 = vpack.c.b16 %v3167, %v3165
          %v3292 = vpack.c.b16 %v3170, %v3168
          %v3293 = vpack.c.b16 %v3171, %v3169
          %v3294 = vpack.c.b16 %v3174, %v3172
          %v3295 = vpack.c.b16 %v3175, %v3173
          %v3296 = vpack.c.b16 %v3178, %v3176
          %v3297 = vpack.c.b16 %v3179, %v3177
          %v3298 = vpack.c.b16 %v3182, %v3180
          %v3299 = vpack.c.b16 %v3183, %v3181
          %v3300 = vpack.c.b16 %v3186, %v3184
          %v3301 = vpack.c.b16 %v3187, %v3185
          %v3302 = vpack.c.b16 %v3190, %v3188
          %v3303 = vpack.c.b16 %v3191, %v3189
          %v3304 = vpack.c.b16 %v3194, %v3192
          %v3305 = vpack.c.b16 %v3195, %v3193
          %v3306 = vpack.c.b16 %v3198, %v3196
          %v3307 = vpack.c.b16 %v3199, %v3197
          %v3308 = vpack.c.b16 %v3202, %v3200
          %v3309 = vpack.c.b16 %v3203, %v3201
          %v3310 = vpack.c.b16 %v3206, %v3204
          %v3311 = vpack.c.b16 %v3207, %v3205
          %v3312 = vpack.c.b16 %v3210, %v3208
          %v3313 = vpack.c.b16 %v3211, %v3209
          %v3314 = vpack.c.b16 %v3214, %v3212
          %v3315 = vpack.c.b16 %v3215, %v3213
          %v3316 = vpack.c.b16 %v3218, %v3216
          %v3317 = vpack.c.b16 %v3219, %v3217
          %v3318 = vpack.c.b16 %v3222, %v3220
          %v3319 = vpack.c.b16 %v3223, %v3221
          %v3320 = vpack.c.b16 %v3226, %v3224
          %v3321 = vpack.c.b16 %v3227, %v3225
          %v3322 = vpack.c.b16 %v3230, %v3228
          %v3323 = vpack.c.b16 %v3231, %v3229
          %v3324 = vpack.c.b16 %v3234, %v3232
          %v3325 = vpack.c.b16 %v3235, %v3233
          %v3326 = vpack.c.b16 %v3238, %v3236
          %v3327 = vpack.c.b16 %v3239, %v3237
          %v3328 = vpack.c.b16 %v3242, %v3240
          %v3329 = vpack.c.b16 %v3243, %v3241
          %v3330 = vpack.c.b16 %v3246, %v3244
          %v3331 = vpack.c.b16 %v3247, %v3245
          %v3332 = vpack.c.b16 %v3250, %v3248
          %v3333 = vpack.c.b16 %v3251, %v3249
          %v3334 = vpack.c.b16 %v3254, %v3252
          %v3335 = vpack.c.b16 %v3255, %v3253
          %v3336 = vpack.c.b16 %v3258, %v3256
          %v3337 = vpack.c.b16 %v3259, %v3257
          %v3338 = vpack.c.b16 %v3262, %v3260
          %v3339 = vpack.c.b16 %v3263, %v3261
          %v3340 = vpack.c.b16 %v3266, %v3264
          %v3341 = vpack.c.b16 %v3267, %v3265
          %v3342 = vpack.c.b16 %v3270, %v3268
          %v3343 = vpack.c.b16 %v3271, %v3269
          %v3344 = vpack.c.b16 %v3274, %v3272
          %v3345 = vpack.c.b16 %v3275, %v3273
          %v3346 = vpack.c.b16 %v3278, %v3276
          %v3347 = vpack.c.b16 %v3279, %v3277
          %v3348 = vpack.c.b16 %v3282, %v3280
          %v3349 = vpack.c.b16 %v3283, %v3281
          %v3350 = vpack.c.b16 %v3286, %v3284
          %v3351 = vpack.c.b16 %v3287, %v3285
          %3416 = vmatprep.subr.bf16.mxu0 %v3289
          %3417 = vmatpush1.bf16.msra.mxu0 %v3288
          %3418 = vmatprep.subr.bf16.mxu0 %v3291
          %3419 = vmatpush1.bf16.msra.mxu0 %v3290
          %3420 = vmatprep.subr.bf16.mxu0 %v3293
          %3421 = vmatpush1.bf16.msra.mxu0 %v3292
          %3422 = vmatprep.subr.bf16.mxu0 %v3295
          %3423 = vmatpush1.bf16.msra.mxu0 %v3294
          %3424 = vmatprep.subr.bf16.mxu0 %v3297
          %3425 = vmatpush1.bf16.msra.mxu0 %v3296
          %3426 = vmatprep.subr.bf16.mxu0 %v3299
          %3427 = vmatpush1.bf16.msra.mxu0 %v3298
          %3428 = vmatprep.subr.bf16.mxu0 %v3301
          %3429 = vmatpush1.bf16.msra.mxu0 %v3300
          %3430 = vmatprep.subr.bf16.mxu0 %v3303
          %3431 = vmatpush1.bf16.msra.mxu0 %v3302
          %3432 = vmatprep.subr.bf16.mxu0 %v3305
          %3433 = vmatpush1.bf16.msra.mxu0 %v3304
          %3434 = vmatprep.subr.bf16.mxu0 %v3307
          %3435 = vmatpush1.bf16.msra.mxu0 %v3306
          %3436 = vmatprep.subr.bf16.mxu0 %v3309
          %3437 = vmatpush1.bf16.msra.mxu0 %v3308
          %3438 = vmatprep.subr.bf16.mxu0 %v3311
          %3439 = vmatpush1.bf16.msra.mxu0 %v3310
          %3440 = vmatprep.subr.bf16.mxu0 %v3313
          %3441 = vmatpush1.bf16.msra.mxu0 %v3312
          %3442 = vmatprep.subr.bf16.mxu0 %v3315
          %3443 = vmatpush1.bf16.msra.mxu0 %v3314
          %3444 = vmatprep.subr.bf16.mxu0 %v3317
          %3445 = vmatpush1.bf16.msra.mxu0 %v3316
          %3446 = vmatprep.subr.bf16.mxu0 %v3319
          %3447 = vmatpush1.bf16.msra.mxu0 %v3318
          %3448 = vmatprep.mubr.bf16.mxu0 %v3017
          %3449 = vmatmul.mubr.bf16.gmra.mrb[0].mxu0 %v3016
          %v3450 = vpop.f32.mrb[0].mxu0
          %v3451 = vadd.f32 %v3089, %v3450
          %v3452 = vpop.f32.mrb[0].mxu0
          %v3453 = vadd.f32 %v3093, %v3452
          %v3454 = vpop.f32.mrb[0].mxu0
          %v3455 = vpop.f32.mrb[0].mxu0
          %3456 = vdwg.mxu0
          %3457 = vmatprep.subr.bf16.mxu0 %v3321
          %3458 = vmatpush1.bf16.msra.mxu0 %v3320
          %3459 = vmatprep.subr.bf16.mxu0 %v3323
          %3460 = vmatpush1.bf16.msra.mxu0 %v3322
          %3461 = vmatprep.subr.bf16.mxu0 %v3325
          %3462 = vmatpush1.bf16.msra.mxu0 %v3324
          %3463 = vmatprep.subr.bf16.mxu0 %v3327
          %3464 = vmatpush1.bf16.msra.mxu0 %v3326
          %3465 = vmatprep.subr.bf16.mxu0 %v3329
          %3466 = vmatpush1.bf16.msra.mxu0 %v3328
          %3467 = vmatprep.subr.bf16.mxu0 %v3331
          %3468 = vmatpush1.bf16.msra.mxu0 %v3330
          %3469 = vmatprep.subr.bf16.mxu0 %v3333
          %3470 = vmatpush1.bf16.msra.mxu0 %v3332
          %3471 = vmatprep.subr.bf16.mxu0 %v3335
          %3472 = vmatpush1.bf16.msra.mxu0 %v3334
          %3473 = vmatprep.subr.bf16.mxu0 %v3337
          %3474 = vmatpush1.bf16.msra.mxu0 %v3336
          %3475 = vmatprep.subr.bf16.mxu0 %v3339
          %3476 = vmatpush1.bf16.msra.mxu0 %v3338
          %3477 = vmatprep.subr.bf16.mxu0 %v3341
          %3478 = vmatpush1.bf16.msra.mxu0 %v3340
          %3479 = vmatprep.subr.bf16.mxu0 %v3343
          %3480 = vmatpush1.bf16.msra.mxu0 %v3342
          %3481 = vmatprep.subr.bf16.mxu0 %v3345
          %3482 = vmatpush1.bf16.msra.mxu0 %v3344
          %3483 = vmatprep.subr.bf16.mxu0 %v3347
          %3484 = vmatpush1.bf16.msra.mxu0 %v3346
          %3485 = vmatprep.subr.bf16.mxu0 %v3349
          %3486 = vmatpush1.bf16.msra.mxu0 %v3348
          %3487 = vmatprep.subr.bf16.mxu0 %v3351
          %3488 = vmatpush1.bf16.msra.mxu0 %v3350
          %3489 = vmatprep.mubr.bf16.mxu0 %v3019
          %3490 = vmatmul.mubr.bf16.gmra.mrb[0].mxu0 %v3018
          %v3491 = vpop.f32.mrb[0].mxu0
          %v3492 = vadd.f32 %v3451, %v3491
          %v3493 = vpop.f32.mrb[0].mxu0
          %v3494 = vadd.f32 %v3453, %v3493
          %v3495 = vpop.f32.mrb[0].mxu0
          %v3496 = vpop.f32.mrb[0].mxu0
          %3497 = vdwg.mxu0
          %v3498 = vmax.f32 %v3492, 0.0
          %v3499 = vmax.f32 %v3494, 0.0
          %v3500 = vpack.c.bf16 %v3498, %v3498
          %v3501 = vpack.c.bf16 %v3499, %v3499
          %v3502 = vld [vmem:[#allocation21] sm:$0xf]
          %v3503 = vld [vmem:[#allocation21 + $0x4] sm:$0xf]
          %v3504 = vld [vmem:[#allocation21 + $0x8] sm:$0xf]
          %v3505 = vld [vmem:[#allocation21 + $0xc] sm:$0xf]
          %v3506 = vld [vmem:[#allocation21 + $0x10] sm:$0xf]
          %v3507 = vld [vmem:[#allocation21 + $0x14] sm:$0xf]
          %v3508 = vld [vmem:[#allocation21 + $0x18] sm:$0xf]
          %v3509 = vld [vmem:[#allocation21 + $0x1c] sm:$0xf]
          %v3510 = vld [vmem:[#allocation21 + $0x20] sm:$0xf]
          %v3511 = vld [vmem:[#allocation21 + $0x24] sm:$0xf]
          %v3512 = vld [vmem:[#allocation21 + $0x28] sm:$0xf]
          %v3513 = vld [vmem:[#allocation21 + $0x2c] sm:$0xf]
          %v3514 = vld [vmem:[#allocation21 + $0x30] sm:$0xf]
          %v3515 = vld [vmem:[#allocation21 + $0x34] sm:$0xf]
          %v3516 = vld [vmem:[#allocation21 + $0x38] sm:$0xf]
          %v3517 = vld [vmem:[#allocation21 + $0x3c] sm:$0xf]
          %v3518 = vld [vmem:[#allocation21 + $0x40] sm:$0xf]
          %v3519 = vld [vmem:[#allocation21 + $0x44] sm:$0xf]
          %v3520 = vld [vmem:[#allocation21 + $0x48] sm:$0xf]
          %v3521 = vld [vmem:[#allocation21 + $0x4c] sm:$0xf]
          %v3522 = vld [vmem:[#allocation21 + $0x50] sm:$0xf]
          %v3523 = vld [vmem:[#allocation21 + $0x54] sm:$0xf]
          %v3524 = vld [vmem:[#allocation21 + $0x58] sm:$0xf]
          %v3525 = vld [vmem:[#allocation21 + $0x5c] sm:$0xf]
          %v3526 = vld [vmem:[#allocation21 + $0x60] sm:$0xf]
          %v3527 = vld [vmem:[#allocation21 + $0x64] sm:$0xf]
          %v3528 = vld [vmem:[#allocation21 + $0x68] sm:$0xf]
          %v3529 = vld [vmem:[#allocation21 + $0x6c] sm:$0xf]
          %v3530 = vld [vmem:[#allocation21 + $0x70] sm:$0xf]
          %v3531 = vld [vmem:[#allocation21 + $0x74] sm:$0xf]
          %v3532 = vld [vmem:[#allocation21 + $0x78] sm:$0xf]
          %v3533 = vld [vmem:[#allocation21 + $0x7c] sm:$0xf]
          %v3534 = vld [vmem:[#allocation22] sm:$0x1]
          %v3536 = vlaneseq
          %v3537 = vshrl.u32 %v3536, 7
          %v3538 = vsub.s32 0, %v3537
          %v3539 = vrot.slane %v3534, %v3538
          %v3573 = vunpack.c.l.b16 %v3502
          %v3574 = vunpack.c.l.b16 %v3503
          %v3575 = vunpack.c.l.b16 %v3504
          %v3576 = vunpack.c.l.b16 %v3505
          %v3577 = vunpack.c.l.b16 %v3506
          %v3578 = vunpack.c.l.b16 %v3507
          %v3579 = vunpack.c.l.b16 %v3508
          %v3580 = vunpack.c.l.b16 %v3509
          %v3581 = vunpack.c.l.b16 %v3510
          %v3582 = vunpack.c.l.b16 %v3511
          %v3583 = vunpack.c.l.b16 %v3512
          %v3584 = vunpack.c.l.b16 %v3513
          %v3585 = vunpack.c.l.b16 %v3514
          %v3586 = vunpack.c.l.b16 %v3515
          %v3587 = vunpack.c.l.b16 %v3516
          %v3588 = vunpack.c.l.b16 %v3517
          %v3589 = vunpack.c.l.b16 %v3518
          %v3590 = vunpack.c.l.b16 %v3519
          %v3591 = vunpack.c.l.b16 %v3520
          %v3592 = vunpack.c.l.b16 %v3521
          %v3593 = vunpack.c.l.b16 %v3522
          %v3594 = vunpack.c.l.b16 %v3523
          %v3595 = vunpack.c.l.b16 %v3524
          %v3596 = vunpack.c.l.b16 %v3525
          %v3597 = vunpack.c.l.b16 %v3526
          %v3598 = vunpack.c.l.b16 %v3527
          %v3599 = vunpack.c.l.b16 %v3528
          %v3600 = vunpack.c.l.b16 %v3529
          %v3601 = vunpack.c.l.b16 %v3530
          %v3602 = vunpack.c.l.b16 %v3531
          %v3603 = vunpack.c.l.b16 %v3532
          %v3604 = vunpack.c.l.b16 %v3533
          %v3605 = vpack.c.b16 %v3574, %v3573
          %v3606 = vpack.c.b16 %v3576, %v3575
          %v3607 = vpack.c.b16 %v3578, %v3577
          %v3608 = vpack.c.b16 %v3580, %v3579
          %v3609 = vpack.c.b16 %v3582, %v3581
          %v3610 = vpack.c.b16 %v3584, %v3583
          %v3611 = vpack.c.b16 %v3586, %v3585
          %v3612 = vpack.c.b16 %v3588, %v3587
          %v3613 = vpack.c.b16 %v3590, %v3589
          %v3614 = vpack.c.b16 %v3592, %v3591
          %v3615 = vpack.c.b16 %v3594, %v3593
          %v3616 = vpack.c.b16 %v3596, %v3595
          %v3617 = vpack.c.b16 %v3598, %v3597
          %v3618 = vpack.c.b16 %v3600, %v3599
          %v3619 = vpack.c.b16 %v3602, %v3601
          %v3620 = vpack.c.b16 %v3604, %v3603
          %3637 = vmatprep.subr.bf16.mxu0 0
          %3638 = vmatpush1.bf16.msra.mxu0 %v3605
          %3639 = vmatprep.subr.bf16.mxu0 0
          %3640 = vmatpush1.bf16.msra.mxu0 %v3606
          %3641 = vmatprep.subr.bf16.mxu0 0
          %3642 = vmatpush1.bf16.msra.mxu0 %v3607
          %3643 = vmatprep.subr.bf16.mxu0 0
          %3644 = vmatpush1.bf16.msra.mxu0 %v3608
          %3645 = vmatprep.subr.bf16.mxu0 0
          %3646 = vmatpush1.bf16.msra.mxu0 %v3609
          %3647 = vmatprep.subr.bf16.mxu0 0
          %3648 = vmatpush1.bf16.msra.mxu0 %v3610
          %3649 = vmatprep.subr.bf16.mxu0 0
          %3650 = vmatpush1.bf16.msra.mxu0 %v3611
          %3651 = vmatprep.subr.bf16.mxu0 0
          %3652 = vmatpush1.bf16.msra.mxu0 %v3612
          %3653 = vmatprep.subr.bf16.mxu0 0
          %3654 = vmatpush1.bf16.msra.mxu0 %v3613
          %3655 = vmatprep.subr.bf16.mxu0 0
          %3656 = vmatpush1.bf16.msra.mxu0 %v3614
          %3657 = vmatprep.subr.bf16.mxu0 0
          %3658 = vmatpush1.bf16.msra.mxu0 %v3615
          %3659 = vmatprep.subr.bf16.mxu0 0
          %3660 = vmatpush1.bf16.msra.mxu0 %v3616
          %3661 = vmatprep.subr.bf16.mxu0 0
          %3662 = vmatpush1.bf16.msra.mxu0 %v3617
          %3663 = vmatprep.subr.bf16.mxu0 0
          %3664 = vmatpush1.bf16.msra.mxu0 %v3618
          %3665 = vmatprep.subr.bf16.mxu0 0
          %3666 = vmatpush1.bf16.msra.mxu0 %v3619
          %3667 = vmatprep.subr.bf16.mxu0 0
          %3668 = vmatpush1.bf16.msra.mxu0 %v3620
          %3669 = vmatprep.mubr.bf16.mxu0 %v3501
          %3670 = vmatmul.mubr.bf16.gmra.mrb[0].mxu0 %v3500
          %v3671 = vpop.f32.mrb[0].mxu0
          %v3672 = vadd.f32 %v3539, %v3671
          %v3673 = vpop.f32.mrb[0].mxu0
          %v3674 = vpop.f32.mrb[0].mxu0
          %v3675 = vpop.f32.mrb[0].mxu0
          %3676 = vdwg.mxu0
          %v3677 = vmax.f32 %v3672, 0.0
          %v3678 = vpack.c.bf16 %v3677, %v3677
          %v3679 = vld [vmem:[%s14] sm:$0xf]
          %v3680 = vld [vmem:[%s14 + $0x4] sm:$0xf]
          %v3681 = vld [vmem:[%s14 + $0x8] sm:$0xf]
          %v3682 = vld [vmem:[%s14 + $0xc] sm:$0xf]
          %v3683 = vld [vmem:[%s14 + $0x10] sm:$0xf]
          %v3684 = vld [vmem:[%s14 + $0x14] sm:$0xf]
          %v3685 = vld [vmem:[%s14 + $0x18] sm:$0xf]
          %v3686 = vld [vmem:[%s14 + $0x1c] sm:$0xf]
          %v3687 = vld [vmem:[%s14 + $0x20] sm:$0xf]
          %v3688 = vld [vmem:[%s14 + $0x24] sm:$0xf]
          %v3689 = vld [vmem:[%s14 + $0x28] sm:$0xf]
          %v3690 = vld [vmem:[%s14 + $0x2c] sm:$0xf]
          %v3691 = vld [vmem:[%s14 + $0x30] sm:$0xf]
          %v3692 = vld [vmem:[%s14 + $0x34] sm:$0xf]
          %v3693 = vld [vmem:[%s14 + $0x38] sm:$0xf]
          %v3694 = vld [vmem:[%s14 + $0x3c] sm:$0xf]
          %v3695 = vld [vmem:[%s15] sm:$0x1]
          %v3697 = vlaneseq
          %v3698 = vshrl.u32 %v3697, 7
          %v3699 = vsub.s32 0, %v3698
          %v3700 = vrot.slane %v3695, %v3699
          %v3718 = vunpack.c.l.b16 %v3679
          %v3719 = vunpack.c.l.b16 %v3680
          %v3720 = vunpack.c.l.b16 %v3681
          %v3721 = vunpack.c.l.b16 %v3682
          %v3722 = vunpack.c.l.b16 %v3683
          %v3723 = vunpack.c.l.b16 %v3684
          %v3724 = vunpack.c.l.b16 %v3685
          %v3725 = vunpack.c.l.b16 %v3686
          %v3726 = vunpack.c.l.b16 %v3687
          %v3727 = vunpack.c.l.b16 %v3688
          %v3728 = vunpack.c.l.b16 %v3689
          %v3729 = vunpack.c.l.b16 %v3690
          %v3730 = vunpack.c.l.b16 %v3691
          %v3731 = vunpack.c.l.b16 %v3692
          %v3732 = vunpack.c.l.b16 %v3693
          %v3733 = vunpack.c.l.b16 %v3694
          %v3734 = vpack.c.b16 %v3719, %v3718
          %v3735 = vpack.c.b16 %v3721, %v3720
          %v3736 = vpack.c.b16 %v3723, %v3722
          %v3737 = vpack.c.b16 %v3725, %v3724
          %v3738 = vpack.c.b16 %v3727, %v3726
          %v3739 = vpack.c.b16 %v3729, %v3728
          %v3740 = vpack.c.b16 %v3731, %v3730
          %v3741 = vpack.c.b16 %v3733, %v3732
          %3750 = vmatprep.subr.bf16.mxu0 0
          %3751 = vmatpush1.bf16.msra.mxu0 %v3734
          %3752 = vmatprep.subr.bf16.mxu0 0
          %3753 = vmatpush1.bf16.msra.mxu0 %v3735
          %3754 = vmatprep.subr.bf16.mxu0 0
          %3755 = vmatpush1.bf16.msra.mxu0 %v3736
          %3756 = vmatprep.subr.bf16.mxu0 0
          %3757 = vmatpush1.bf16.msra.mxu0 %v3737
          %3758 = vmatprep.subr.bf16.mxu0 0
          %3759 = vmatpush1.bf16.msra.mxu0 %v3738
          %3760 = vmatprep.subr.bf16.mxu0 0
          %3761 = vmatpush1.bf16.msra.mxu0 %v3739
          %3762 = vmatprep.subr.bf16.mxu0 0
          %3763 = vmatpush1.bf16.msra.mxu0 %v3740
          %3764 = vmatprep.subr.bf16.mxu0 0
          %3765 = vmatpush1.bf16.msra.mxu0 %v3741
          %3766 = vmatprep.subr.bf16.mxu0 0
          %3767 = vmatpush1.bf16.msra.mxu0 0
          %3768 = vmatprep.subr.bf16.mxu0 0
          %3769 = vmatpush1.bf16.msra.mxu0 0
          %3770 = vmatprep.subr.bf16.mxu0 0
          %3771 = vmatpush1.bf16.msra.mxu0 0
          %3772 = vmatprep.subr.bf16.mxu0 0
          %3773 = vmatpush1.bf16.msra.mxu0 0
          %3774 = vmatprep.subr.bf16.mxu0 0
          %3775 = vmatpush1.bf16.msra.mxu0 0
          %3776 = vmatprep.subr.bf16.mxu0 0
          %3777 = vmatpush1.bf16.msra.mxu0 0
          %3778 = vmatprep.subr.bf16.mxu0 0
          %3779 = vmatpush1.bf16.msra.mxu0 0
          %3780 = vmatprep.subr.bf16.mxu0 0
          %3781 = vmatpush1.bf16.msra.mxu0 0
          %3782 = vmatprep.mubr.bf16.mxu0 0
          %3783 = vmatmul.mubr.bf16.gmra.mrb[0].mxu0 %v3678
          %v3784 = vpop.f32.mrb[0].mxu0
          %v3785 = vadd.f32 %v3700, %v3784
          %v3786 = vpop.f32.mrb[0].mxu0
          %v3787 = vpop.f32.mrb[0].mxu0
          %v3788 = vpop.f32.mrb[0].mxu0
          %3789 = vdwg.mxu0
          %3790 = vst [vmem:[#allocation25] sm:$0xff] %v3785
        $region140: #{tpu_custom_call.1} parent=83 // pred_fallthru
          _
        // Predicated region
        $region141: #{tpu_custom_call.1} parent=83 // pred_check
          %p3791 = pneg %p414
        $region142: #{tpu_custom_call.1} parent=83 // pred_check_branch
          %3793 = sbr.rel (%p3791) target = $region144
        $region143: #{tpu_custom_call.1} parent=83 // pred_region
          %s3795 = ssub.s32 128, 128
          %3796 = vsyncadd [#allocation6], %s3795
          %s3797 = smul.addr %s45, 128
          %s3798 = scalar_lea.hbm %s16, %s3797
          %s3800 = sshll.u32 [#allocation24], 4
          %s3801 = int_to_ptr.vmem [resolvable:$true] %s3800
          %3803 = dma.vmem_to_hbm [thread:$0]  %s3801, 128, %s3798, [#allocation6]
        $region144: #{tpu_custom_call.1} parent=83 // pred_fallthru
          _
        // Predicated region
        $region145: #{tpu_custom_call.1} parent=83 // pred_check
          %p3804 = pneg %p440
        $region146: #{tpu_custom_call.1} parent=83 // pred_check_branch
          %3806 = sbr.rel (%p3804) target = $region148
        $region147: #{tpu_custom_call.1} parent=83 // pred_region
          %s3808 = ssub.s32 128, 128
          %3809 = vsyncadd [#allocation26], %s3808
          %s3810 = smul.addr %s45, 128
          %s3811 = scalar_lea.hbm %s17, %s3810
          %s3813 = sshll.u32 [#allocation25], 4
          %s3814 = int_to_ptr.vmem [resolvable:$true] %s3813
          %3816 = dma.vmem_to_hbm [thread:$0]  %s3814, 128, %s3811, [#allocation26]
        $region148: #{tpu_custom_call.1} parent=83 // pred_fallthru
          _
        // Predicated region
        $region149: #{tpu_custom_call.1} parent=83 // pred_check
          %p3817 = pneg %p466
        $region150: #{tpu_custom_call.1} parent=83 // pred_check_branch
          %3819 = sbr.rel (%p3817) target = $region152
        $region151: #{tpu_custom_call.1} parent=83 // pred_region
          %s3821 = ssub.s32 128, 128
          %3822 = vsyncadd [#allocation26], %s3821
          %s3823 = smul.addr %s45, 128
          %s3824 = scalar_lea.hbm %s18, %s3823
          %s3826 = sshll.u32 [#allocation27], 4
          %s3827 = int_to_ptr.vmem [resolvable:$true] %s3826
          %3829 = dma.vmem_to_hbm [thread:$0]  %s3827, 128, %s3824, [#allocation26]
        $region152: #{tpu_custom_call.1} parent=83 // pred_fallthru
          _
        // Predicated region
        $region153: #{tpu_custom_call.1} parent=83 // pred_check
          %p3830 = pneg %p414
        $region154: #{tpu_custom_call.1} parent=83 // pred_check_branch
          %3832 = sbr.rel (%p3830) target = $region156
        $region155: #{tpu_custom_call.1} parent=83 // pred_region
          %3833 = dma.done [#allocation6], 128
        $region156: #{tpu_custom_call.1} parent=83 // pred_fallthru
          _
        // Predicated region
        $region157: #{tpu_custom_call.1} parent=83 // pred_check
          %p3834 = pneg %p440
        $region158: #{tpu_custom_call.1} parent=83 // pred_check_branch
          %3836 = sbr.rel (%p3834) target = $region160
        $region159: #{tpu_custom_call.1} parent=83 // pred_region
          %3837 = dma.done [#allocation26], 128
        $region160: #{tpu_custom_call.1} parent=83 // pred_fallthru
          _
        // Predicated region
        $region161: #{tpu_custom_call.1} parent=83 // pred_check
          %p3838 = pneg %p466
        $region162: #{tpu_custom_call.1} parent=83 // pred_check_branch
          %3840 = sbr.rel (%p3838) target = $region164
        $region163: #{tpu_custom_call.1} parent=83 // pred_region
          %3841 = dma.done [#allocation26], 128
        $region164: #{tpu_custom_call.1} parent=83 // pred_fallthru
          _
      $region84: #{tpu_custom_call.1} parent=5 // pred_fallthru
        _
      %p3842 = scmp.le.s32.totalorder 2, %s36
      // Predicated region
      $region165: #{tpu_custom_call.1} parent=5 // pred_check
        %p3843 = pneg %p3842
      $region166: #{tpu_custom_call.1} parent=5 // pred_check_branch
        %3845 = sbr.rel (%p3843) target = $region168
      $region167: #{tpu_custom_call.1} parent=5 // pred_region
        %s3846 = ssub.s32 %s36, 2
      $region168: #{tpu_custom_call.1} parent=5 // pred_fallthru
        _
    $region6: #{tpu_custom_call.1} parent=1 // loop_footer
      %s40 = sadd.s32 1, %s36
    $region7: #{tpu_custom_call.1} parent=1 // loop_footer_branch
      %35 = sbr.rel target = $region3
    $region8: #{tpu_custom_call.1} parent=1 // loop_exit
      _
    %3847 = vsyncpa [#allocation5], 1
    %s3848 = scalar_lea.sflag [#allocation5], 1
    %3849 = vsyncpa %s3848, 1
    %3850 = vsyncpa [#allocation8], 1
    %3851 = vsyncpa [#allocation11], 1
    %3852 = vsyncpa [#allocation14], 1
    %3853 = vsyncpa [#allocation17], 1
    %3854 = vsyncpa [#allocation20], 1
    %3855 = vsyncpa [#allocation23], 1
    %3856 = vsyncpa [#allocation6], 1
    %s3857 = scalar_lea.sflag [#allocation6], 1
    %3858 = vsyncpa %s3857, 1
    %3859 = vsyncpa [#allocation26], 1

</llo_original>
